<compile_context>
chip_gen: v6e
topology: v6e:2x2x1
jax: 0.10.0
libtpu: 0.0.40
codegen_flags: <defaults>
</compile_context>

<pallas_src>
import jax
import jax.numpy as jnp
from jax.experimental import pallas as pl
from jax.experimental.pallas import tpu as pltpu


def _round_up(n, m):
    return ((n + m - 1) // m) * m


# ----------------------------------------------------------------------------
# Fused per-head kernel (runs once per grid step; grid axis = Q head index)
# ----------------------------------------------------------------------------
def _fused_acq_kernel(pooled_ref, actions_ref,
                      bb_w1_ref, bb_b1_ref,
                      bb_w2q_ref, bb_w2s_ref, bb_b2_ref,
                      a_w1_ref, a_b1_ref, a_w2_ref, a_b2_ref,
                      f_w1sq_ref, f_w1ss_ref, f_w1a_ref, f_b1_ref,
                      f_w2_ref, f_b2_ref,
                      o_ref):
    f32 = jnp.float32
    bf16 = jnp.bfloat16

    # Surrogate backbone head with conv1 folded in:
    #   pooled taps [Bp, CKp] -> 1280 -> 1024 (=1000 zero-padded).
    h1 = jnp.dot(pooled_ref[...].astype(bf16), bb_w1_ref[...],
                 preferred_element_type=f32) + bb_b1_ref[...]
    h1 = jnp.maximum(h1, 0.0)                                            # [Bp, 1280]

    # int8 weight -> bf16 dequant on the VPU; per-output-channel scale folded
    # into the f32 result of the dot (cheap [Bp, 1024] multiply).
    bb_w2 = bb_w2q_ref[...].astype(bf16)
    s_out = (jnp.dot(h1.astype(bf16), bb_w2, preferred_element_type=f32)
             * bb_w2s_ref[...] + bb_b2_ref[...])
    s_out = jnp.maximum(s_out, 0.0)            # ReLU == self.act          [Bp, 1024]

    # action_net: Linear(A,64)+ReLU, Linear(64,256)+ReLU (64 padded to 128).
    a1 = jnp.maximum(
        jnp.dot(actions_ref[...].astype(bf16), a_w1_ref[...],
                preferred_element_type=f32) + a_b1_ref[...], 0.0)        # [Bp, 128]
    a2 = jnp.maximum(
        jnp.dot(a1.astype(bf16), a_w2_ref[...],
                preferred_element_type=f32) + a_b2_ref[...], 0.0)        # [Bp, 256]

    # fcn layer 1 with the concat folded into two matmuls (int8 s-half).
    f_w1s = f_w1sq_ref[...].astype(bf16)
    x1 = (jnp.dot(s_out.astype(bf16), f_w1s, preferred_element_type=f32)
          * f_w1ss_ref[...]
          + jnp.dot(a2.astype(bf16), f_w1a_ref[...], preferred_element_type=f32)
          + f_b1_ref[...])
    x1 = jnp.maximum(x1, 0.0)                                            # [Bp, 256]

    # fcn layer 2 (no activation); N zero-padded to 128 lanes.
    o_ref[...] = (jnp.dot(x1.astype(bf16), f_w2_ref[...], preferred_element_type=f32)
                  + f_b2_ref[...]).astype(o_ref.dtype)


_WEIGHT_ORDER = ("bb_w1", "bb_b1",
                 "bb_w2_q", "bb_w2_s", "bb_b2",
                 "a_w1", "a_b1", "a_w2", "a_b2",
                 "f_w1_s_q", "f_w1_s_s", "f_w1_a", "f_b1",
                 "f_w2", "f_b2")


def _fused_acq_call(pooled, actions, packed, core_parallel=False):
    Bp, CKp = pooled.shape
    Ap = actions.shape[-1]
    n_out = packed["f_w2"].shape[-1]

    weights = [packed[k] for k in _WEIGHT_ORDER]
    # Per-head weights are stacked on a leading axis of size 2; squeeze it out.
    w_specs = [pl.BlockSpec((None,) + tuple(w.shape[1:]), lambda h: (h, 0, 0))
               for w in weights]

    head_sem = (pltpu.CORE_PARALLEL,) if core_parallel else ("arbitrary",)

    return pl.pallas_call(
        _fused_acq_kernel,
        out_shape=jax.ShapeDtypeStruct((2, Bp, n_out), jnp.float32),
        grid=(2,),                                   # one grid step per Q head
        in_specs=[pl.BlockSpec((Bp, CKp), lambda h: (0, 0)),   # shared activations
                  pl.BlockSpec((Bp, Ap), lambda h: (0, 0))] + w_specs,
        out_specs=pl.BlockSpec((None, Bp, n_out), lambda h: (h, 0, 0)),
        compiler_params=pltpu.CompilerParams(
            dimension_semantics=head_sem,            # one head per TC on v7x
            vmem_limit_bytes=32 * 1024 * 1024),
    )(pooled, actions, *weights)


# ----------------------------------------------------------------------------
# Wrapper-side pooled conv taps (linear conv1 + global-avg-pool hoisted out).
# No im2col tensor is materialised: 9 strided-slice means -> [B, C*9].
# ----------------------------------------------------------------------------
def pooled_conv_taps(x, k=3, stride=2, pad=1):
    B, C, H, W = x.shape
    xp = jnp.pad(x, ((0, 0), (0, 0), (pad, pad), (pad, pad)))
    Ho = (H + 2 * pad - k) // stride + 1
    Wo = (W + 2 * pad - k) // stride + 1
    taps = []
    for i in range(k):
        for j in range(k):
            taps.append(
                xp[:, :, i:i + stride * Ho:stride, j:j + stride * Wo:stride]
                .mean(axis=(2, 3)))                   # [B, C]
    t = jnp.stack(taps, axis=2)                       # [B, C, k*k]  (tap fastest)
    return t.reshape(B, C * k * k)


# Reference-only im2col (kept unfused to independently validate the
# pool-before-conv1 / conv1-fold trick).
def _im2col_ref(x, k=3, stride=2, pad=1):
    B, C, H, W = x.shape
    xp = jnp.pad(x, ((0, 0), (0, 0), (pad, pad), (pad, pad)))
    Ho = (H + 2 * pad - k) // stride + 1
    Wo = (W + 2 * pad - k) // stride + 1
    taps = []
    for i in range(k):
        for j in range(k):
            taps.append(xp[:, :, i:i + stride * Ho:stride, j:j + stride * Wo:stride])
    p = jnp.stack(taps, axis=2)                       # [B, C, k*k, Ho, Wo]
    p = p.transpose(0, 3, 4, 1, 2).reshape(B, Ho, Wo, C * k * k)
    return p, Ho, Wo


# ----------------------------------------------------------------------------
# Parameters (deterministic synthetic init), padding / bf16 / int8 packing
# ----------------------------------------------------------------------------
def _dense_init(key, fan_in, fan_out):
    kw, kb = jax.random.split(key)
    scale = 1.0 / jnp.sqrt(jnp.float32(fan_in))
    w = jax.random.normal(kw, (fan_in, fan_out), jnp.float32) * scale
    b = jax.random.normal(kb, (fan_out,), jnp.float32) * 0.01
    return w, b


def init_qnet_params(key, cfg):
    """Unpadded f32 params; Linear weights stored as [in, out]."""
    C = cfg["motion_batch"]
    keys = jax.random.split(key, 7)
    p = {}
    # conv1: Conv2d(C, 32, k=3, s=2, p=1, bias=False) -> [C*9, 32]
    p["conv1_w"] = jax.random.normal(keys[0], (C * 9, 32), jnp.float32) / jnp.sqrt(
        jnp.float32(C * 9))
    # surrogate mnasnet1_0 backbone: pool -> 1280 -> 1000
    p["bb_w1"], p["bb_b1"] = _dense_init(keys[1], 32, 1280)
    p["bb_w2"], p["bb_b2"] = _dense_init(keys[2], 1280, 1000)
    # action_net: Linear(action_dim, 64) ReLU Linear(64, 256) ReLU
    p["a_w1"], p["a_b1"] = _dense_init(keys[3], cfg["action_dim"], 64)
    p["a_w2"], p["a_b2"] = _dense_init(keys[4], 64, 256)
    # fcn: Linear(1256, 256) ReLU Linear(256, output_dim)
    p["f_w1"], p["f_b1"] = _dense_init(keys[5], 1256, 256)
    p["f_w2"], p["f_b2"] = _dense_init(keys[6], 256, cfg["output_dim"])
    return p


def _pad2d(x, rows, cols):
    r, c = x.shape
    return jnp.pad(x, ((0, rows - r), (0, cols - c)))


def _pad1d(x, n):
    return jnp.pad(x, ((0, n - x.shape[0]),))


def _quant_int8_cols(w):
    """Symmetric per-output-channel (column) int8 quantization."""
    amax = jnp.max(jnp.abs(w), axis=0, keepdims=True)        # [1, N]
    scale = jnp.maximum(amax, 1e-8) / 127.0
    q = jnp.clip(jnp.round(w / scale), -127, 127).astype(jnp.int8)
    return q, scale.astype(jnp.float32)


def pack_ac_params(p1, p2, cfg):
    """Fold conv1 into the backbone's first Linear, pad lane dims to 128-multiples
    and contraction dims to 16-multiples, cast weights to bf16, int8-quantize the
    two dominant weights, and stack the two heads on a leading axis of size 2."""
    A = cfg["action_dim"]
    out_dim = cfg["output_dim"]
    C = cfg["motion_batch"]
    ck_pad = _round_up(C * 9, 16)         # 36 -> 48
    a_pad = _round_up(A, 16)              # 3  -> 16
    n_bb2 = _round_up(1000, 128)          # 1024
    n_a1 = _round_up(64, 128)             # 128
    n_out = _round_up(out_dim, 128)       # >= 128

    def per_head(p):
        d = {}
        # conv1 (linear, bias=False) folded into the surrogate backbone's first Linear.
        fused_w1 = p["conv1_w"] @ p["bb_w1"]                                    # [C*9, 1280]
        d["bb_w1"] = _pad2d(fused_w1, ck_pad, 1280).astype(jnp.bfloat16)        # [48, 1280]
        d["bb_b1"] = p["bb_b1"].reshape(1, -1).astype(jnp.float32)
        w2 = _pad2d(p["bb_w2"], 1280, n_bb2)
        d["bb_w2_q"], d["bb_w2_s"] = _quant_int8_cols(w2)                       # [1280,1024] i8
        d["bb_b2"] = _pad1d(p["bb_b2"], n_bb2).reshape(1, -1).astype(jnp.float32)
        d["a_w1"] = _pad2d(p["a_w1"], a_pad, n_a1).astype(jnp.bfloat16)         # [16, 128]
        d["a_b1"] = _pad1d(p["a_b1"], n_a1).reshape(1, -1).astype(jnp.float32)
        d["a_w2"] = _pad2d(p["a_w2"], n_a1, 256).astype(jnp.bfloat16)           # [128, 256]
        d["a_b2"] = p["a_b2"].reshape(1, -1).astype(jnp.float32)
        w1s = _pad2d(p["f_w1"][:1000], n_bb2, 256)
        d["f_w1_s_q"], d["f_w1_s_s"] = _quant_int8_cols(w1s)                    # [1024,256] i8
        d["f_w1_a"] = p["f_w1"][1000:].astype(jnp.bfloat16)                     # [256, 256]
        d["f_b1"] = p["f_b1"].reshape(1, -1).astype(jnp.float32)
        d["f_w2"] = _pad2d(p["f_w2"], 256, n_out).astype(jnp.bfloat16)          # [256, 128]
        d["f_b2"] = _pad1d(p["f_b2"], n_out).reshape(1, -1).astype(jnp.float32)
        return d

    h1, h2 = per_head(p1), per_head(p2)
    return {k: jnp.stack([h1[k], h2[k]], axis=0) for k in h1}


# ----------------------------------------------------------------------------
# Forward pass
# ----------------------------------------------------------------------------
def make_acnet_forward(cfg, core_parallel=False):
    out_dim = cfg["output_dim"]

    def forward(packed, states, actions):
        B = states.shape[0]
        pooled = pooled_conv_taps(states, k=3, stride=2, pad=1)    # [B, C*9]
        CK = pooled.shape[-1]
        CKp = packed["bb_w1"].shape[1]
        Ap = packed["a_w1"].shape[1]

        Bp = _round_up(B, 8)                       # pad M to a full sublane
        pooled_p = jnp.pad(pooled, ((0, Bp - B), (0, CKp - CK))).astype(jnp.float32)
        actions_p = jnp.pad(actions,
                            ((0, Bp - B), (0, Ap - actions.shape[-1]))).astype(jnp.float32)

        out = _fused_acq_call(pooled_p, actions_p, packed, core_parallel)  # [2, Bp, n_pad]
        return out[0, :B, :out_dim], out[1, :B, :out_dim]

    return forward


# Pure-JAX reference (unfused, unpadded, f32) for correctness checking.
def qnet_ref(p, states, actions):
    B = states.shape[0]
    patches, Ho, Wo = _im2col_ref(states, k=3, stride=2, pad=1)
    CK = patches.shape[-1]
    s = patches.reshape(B * Ho * Wo, CK) @ p["conv1_w"]          # conv1 (no bias)
    s = s.reshape(B, Ho * Wo, 32).mean(axis=1)                   # surrogate pool
    s = jax.nn.relu(s @ p["bb_w1"] + p["bb_b1"])
    s = jax.nn.relu(s @ p["bb_w2"] + p["bb_b2"])                 # + self.act
    a = jax.nn.relu(actions @ p["a_w1"] + p["a_b1"])
    a = jax.nn.relu(a @ p["a_w2"] + p["a_b2"])
    x = jnp.concatenate([s, a], axis=-1)
    x = jax.nn.relu(x @ p["f_w1"] + p["f_b1"])
    return x @ p["f_w2"] + p["f_b2"]


# ----------------------------------------------------------------------------
if __name__ == "__main__":
    cfg = {"motion_batch": 4, "action_dim": 3, "output_dim": 1}
    B, H, W = 2, 16, 16

    root = jax.random.PRNGKey(0)
    k_q1, k_q2, k_s, k_a = jax.random.split(root, 4)
    p1 = init_qnet_params(k_q1, cfg)
    p2 = init_qnet_params(k_q2, cfg)
    packed = pack_ac_params(p1, p2, cfg)

    states = jax.random.normal(k_s, (B, cfg["motion_batch"], H, W), jnp.float32)
    actions = jax.random.normal(k_a, (B, cfg["action_dim"]), jnp.float32)

    # Use CORE_PARALLEL only on 2-TC chips (v7x); fall back if unsupported.
    try:
        kind = jax.devices()[0].device_kind.lower()
    except Exception:
        kind = ""
    want_core_parallel = ("v7" in kind) or ("tpu7" in kind)

    q1 = q2 = None
    if want_core_parallel:
        try:
            fwd = jax.jit(make_acnet_forward(cfg, core_parallel=True))
            q1, q2 = fwd(packed, states, actions)
            jax.block_until_ready((q1, q2))
        except Exception:
            q1 = q2 = None
    if q1 is None:
        fwd = jax.jit(make_acnet_forward(cfg, core_parallel=False))
        q1, q2 = fwd(packed, states, actions)
        jax.block_until_ready((q1, q2))

    assert q1.shape == (B, cfg["output_dim"]) and q2.shape == (B, cfg["output_dim"])
    assert jnp.all(jnp.isfinite(q1)) and jnp.all(jnp.isfinite(q2))

    # Validate against the unfused f32 reference (bf16 + per-channel int8
    # weights => loose tolerance).
    r1 = qnet_ref(p1, states, actions)
    r2 = qnet_ref(p2, states, actions)
    assert jnp.allclose(q1, r1, rtol=5e-2, atol=5e-2)
    assert jnp.allclose(q2, r2, rtol=5e-2, atol=5e-2)

    print("KERNEL_OK")
</pallas_src>

<mosaic_0001>
module attributes {stable_mosaic.version = 11 : i64} {
  func.func @_fused_acq_kernel(%arg0: i32, %arg1: memref<8x48xf32, #tpu.memory_space<vmem>>, %arg2: memref<8x16xf32, #tpu.memory_space<vmem>>, %arg3: memref<1x48x1280xbf16, #tpu.memory_space<vmem>>, %arg4: memref<1x1x1280xf32, #tpu.memory_space<vmem>>, %arg5: memref<1x1280x1024xi8, #tpu.memory_space<vmem>>, %arg6: memref<1x1x1024xf32, #tpu.memory_space<vmem>>, %arg7: memref<1x1x1024xf32, #tpu.memory_space<vmem>>, %arg8: memref<1x16x128xbf16, #tpu.memory_space<vmem>>, %arg9: memref<1x1x128xf32, #tpu.memory_space<vmem>>, %arg10: memref<1x128x256xbf16, #tpu.memory_space<vmem>>, %arg11: memref<1x1x256xf32, #tpu.memory_space<vmem>>, %arg12: memref<1x1024x256xi8, #tpu.memory_space<vmem>>, %arg13: memref<1x1x256xf32, #tpu.memory_space<vmem>>, %arg14: memref<1x256x256xbf16, #tpu.memory_space<vmem>>, %arg15: memref<1x1x256xf32, #tpu.memory_space<vmem>>, %arg16: memref<1x256x128xbf16, #tpu.memory_space<vmem>>, %arg17: memref<1x1x128xf32, #tpu.memory_space<vmem>>, %arg18: memref<1x8x128xf32, #tpu.memory_space<vmem>>) attributes {dimension_semantics = [#tpu.dimension_semantics<arbitrary>], iteration_bounds = array<i64: 2>, scalar_prefetch = 0 : i64, scratch_operands = 0 : i64, tpu.core_type = #tpu.core_type<tc>, window_params = [{pipeline_mode = #tpu.pipeline_mode<synchronous>, transform_indices = @transform_0, window_bounds = array<i64: 8, 48>}, {pipeline_mode = #tpu.pipeline_mode<synchronous>, transform_indices = @transform_1, window_bounds = array<i64: 8, 16>}, {transform_indices = @transform_2, window_bounds = array<i64: 1, 48, 1280>}, {transform_indices = @transform_3, window_bounds = array<i64: 1, 1, 1280>}, {transform_indices = @transform_4, window_bounds = array<i64: 1, 1280, 1024>}, {transform_indices = @transform_5, window_bounds = array<i64: 1, 1, 1024>}, {transform_indices = @transform_6, window_bounds = array<i64: 1, 1, 1024>}, {transform_indices = @transform_7, window_bounds = array<i64: 1, 16, 128>}, {transform_indices = @transform_8, window_bounds = array<i64: 1, 1, 128>}, {transform_indices = @transform_9, window_bounds = array<i64: 1, 128, 256>}, {transform_indices = @transform_10, window_bounds = array<i64: 1, 1, 256>}, {transform_indices = @transform_11, window_bounds = array<i64: 1, 1024, 256>}, {transform_indices = @transform_12, window_bounds = array<i64: 1, 1, 256>}, {transform_indices = @transform_13, window_bounds = array<i64: 1, 256, 256>}, {transform_indices = @transform_14, window_bounds = array<i64: 1, 1, 256>}, {transform_indices = @transform_15, window_bounds = array<i64: 1, 256, 128>}, {transform_indices = @transform_16, window_bounds = array<i64: 1, 1, 128>}, {transform_indices = @transform_17, window_bounds = array<i64: 1, 8, 128>}]} {
    %c0 = arith.constant 0 : index
    %c0_0 = arith.constant 0 : index
    %0 = vector.load %arg1[%c0, %c0_0] : memref<8x48xf32, #tpu.memory_space<vmem>>, vector<8x48xf32>
    %1 = arith.truncf %0 : vector<8x48xf32> to vector<8x48xbf16>
    %c0_1 = arith.constant 0 : index
    %c0_2 = arith.constant 0 : index
    %c0_3 = arith.constant 0 : index
    %2 = vector.load %arg3[%c0_1, %c0_2, %c0_3] : memref<1x48x1280xbf16, #tpu.memory_space<vmem>>, vector<1x48x1280xbf16>
    %3 = vector.shape_cast %2 : vector<1x48x1280xbf16> to vector<48x1280xbf16>
    %cst = arith.constant dense<0.000000e+00> : vector<8x1280xf32>
    %4 = tpu.matmul %1, %3, %cst {dimension_numbers = #tpu.dot_dimension_numbers<[1], [0], [0], [1], [0, 0, 1, 1], [], []>} : vector<8x48xbf16>, vector<48x1280xbf16>, vector<8x1280xf32> -> vector<8x1280xf32>
    %c0_4 = arith.constant 0 : index
    %c0_5 = arith.constant 0 : index
    %c0_6 = arith.constant 0 : index
    %5 = vector.load %arg4[%c0_4, %c0_5, %c0_6] : memref<1x1x1280xf32, #tpu.memory_space<vmem>>, vector<1x1x1280xf32>
    %6 = vector.shape_cast %5 : vector<1x1x1280xf32> to vector<1x1280xf32>
    %7 = vector.broadcast %6 : vector<1x1280xf32> to vector<8x1280xf32>
    %8 = arith.addf %4, %7 : vector<8x1280xf32>
    %cst_7 = arith.constant 0.000000e+00 : f32
    %9 = vector.broadcast %cst_7 : f32 to vector<8x1280xf32>
    %10 = arith.maximumf %8, %9 : vector<8x1280xf32>
    %c0_8 = arith.constant 0 : index
    %c0_9 = arith.constant 0 : index
    %c0_10 = arith.constant 0 : index
    %11 = vector.load %arg5[%c0_8, %c0_9, %c0_10] : memref<1x1280x1024xi8, #tpu.memory_space<vmem>>, vector<1x1280x1024xi8>
    %12 = vector.shape_cast %11 : vector<1x1280x1024xi8> to vector<1280x1024xi8>
    %13 = arith.sitofp %12 : vector<1280x1024xi8> to vector<1280x1024xbf16>
    %14 = arith.truncf %10 : vector<8x1280xf32> to vector<8x1280xbf16>
    %cst_11 = arith.constant dense<0.000000e+00> : vector<8x1024xf32>
    %15 = tpu.matmul %14, %13, %cst_11 {dimension_numbers = #tpu.dot_dimension_numbers<[1], [0], [0], [1], [0, 0, 1, 1], [], []>} : vector<8x1280xbf16>, vector<1280x1024xbf16>, vector<8x1024xf32> -> vector<8x1024xf32>
    %c0_12 = arith.constant 0 : index
    %c0_13 = arith.constant 0 : index
    %c0_14 = arith.constant 0 : index
    %16 = vector.load %arg6[%c0_12, %c0_13, %c0_14] : memref<1x1x1024xf32, #tpu.memory_space<vmem>>, vector<1x1x1024xf32>
    %17 = vector.shape_cast %16 : vector<1x1x1024xf32> to vector<1x1024xf32>
    %18 = vector.broadcast %17 : vector<1x1024xf32> to vector<8x1024xf32>
    %19 = arith.mulf %15, %18 : vector<8x1024xf32>
    %c0_15 = arith.constant 0 : index
    %c0_16 = arith.constant 0 : index
    %c0_17 = arith.constant 0 : index
    %20 = vector.load %arg7[%c0_15, %c0_16, %c0_17] : memref<1x1x1024xf32, #tpu.memory_space<vmem>>, vector<1x1x1024xf32>
    %21 = vector.shape_cast %20 : vector<1x1x1024xf32> to vector<1x1024xf32>
    %22 = vector.broadcast %21 : vector<1x1024xf32> to vector<8x1024xf32>
    %23 = arith.addf %19, %22 : vector<8x1024xf32>
    %cst_18 = arith.constant 0.000000e+00 : f32
    %24 = vector.broadcast %cst_18 : f32 to vector<8x1024xf32>
    %25 = arith.maximumf %23, %24 : vector<8x1024xf32>
    %c0_19 = arith.constant 0 : index
    %c0_20 = arith.constant 0 : index
    %26 = vector.load %arg2[%c0_19, %c0_20] : memref<8x16xf32, #tpu.memory_space<vmem>>, vector<8x16xf32>
    %27 = arith.truncf %26 : vector<8x16xf32> to vector<8x16xbf16>
    %c0_21 = arith.constant 0 : index
    %c0_22 = arith.constant 0 : index
    %c0_23 = arith.constant 0 : index
    %28 = vector.load %arg8[%c0_21, %c0_22, %c0_23] : memref<1x16x128xbf16, #tpu.memory_space<vmem>>, vector<1x16x128xbf16>
    %29 = vector.shape_cast %28 : vector<1x16x128xbf16> to vector<16x128xbf16>
    %cst_24 = arith.constant dense<0.000000e+00> : vector<8x128xf32>
    %30 = tpu.matmul %27, %29, %cst_24 {dimension_numbers = #tpu.dot_dimension_numbers<[1], [0], [0], [1], [0, 0, 1, 1], [], []>} : vector<8x16xbf16>, vector<16x128xbf16>, vector<8x128xf32> -> vector<8x128xf32>
    %c0_25 = arith.constant 0 : index
    %c0_26 = arith.constant 0 : index
    %c0_27 = arith.constant 0 : index
    %31 = vector.load %arg9[%c0_25, %c0_26, %c0_27] : memref<1x1x128xf32, #tpu.memory_space<vmem>>, vector<1x1x128xf32>
    %32 = vector.shape_cast %31 : vector<1x1x128xf32> to vector<1x128xf32>
    %33 = vector.broadcast %32 : vector<1x128xf32> to vector<8x128xf32>
    %34 = arith.addf %30, %33 : vector<8x128xf32>
    %cst_28 = arith.constant 0.000000e+00 : f32
    %35 = vector.broadcast %cst_28 : f32 to vector<8x128xf32>
    %36 = arith.maximumf %34, %35 : vector<8x128xf32>
    %37 = arith.truncf %36 : vector<8x128xf32> to vector<8x128xbf16>
    %c0_29 = arith.constant 0 : index
    %c0_30 = arith.constant 0 : index
    %c0_31 = arith.constant 0 : index
    %38 = vector.load %arg10[%c0_29, %c0_30, %c0_31] : memref<1x128x256xbf16, #tpu.memory_space<vmem>>, vector<1x128x256xbf16>
    %39 = vector.shape_cast %38 : vector<1x128x256xbf16> to vector<128x256xbf16>
    %cst_32 = arith.constant dense<0.000000e+00> : vector<8x256xf32>
    %40 = tpu.matmul %37, %39, %cst_32 {dimension_numbers = #tpu.dot_dimension_numbers<[1], [0], [0], [1], [0, 0, 1, 1], [], []>} : vector<8x128xbf16>, vector<128x256xbf16>, vector<8x256xf32> -> vector<8x256xf32>
    %c0_33 = arith.constant 0 : index
    %c0_34 = arith.constant 0 : index
    %c0_35 = arith.constant 0 : index
    %41 = vector.load %arg11[%c0_33, %c0_34, %c0_35] : memref<1x1x256xf32, #tpu.memory_space<vmem>>, vector<1x1x256xf32>
    %42 = vector.shape_cast %41 : vector<1x1x256xf32> to vector<1x256xf32>
    %43 = vector.broadcast %42 : vector<1x256xf32> to vector<8x256xf32>
    %44 = arith.addf %40, %43 : vector<8x256xf32>
    %cst_36 = arith.constant 0.000000e+00 : f32
    %45 = vector.broadcast %cst_36 : f32 to vector<8x256xf32>
    %46 = arith.maximumf %44, %45 : vector<8x256xf32>
    %c0_37 = arith.constant 0 : index
    %c0_38 = arith.constant 0 : index
    %c0_39 = arith.constant 0 : index
    %47 = vector.load %arg12[%c0_37, %c0_38, %c0_39] : memref<1x1024x256xi8, #tpu.memory_space<vmem>>, vector<1x1024x256xi8>
    %48 = vector.shape_cast %47 : vector<1x1024x256xi8> to vector<1024x256xi8>
    %49 = arith.sitofp %48 : vector<1024x256xi8> to vector<1024x256xbf16>
    %50 = arith.truncf %25 : vector<8x1024xf32> to vector<8x1024xbf16>
    %cst_40 = arith.constant dense<0.000000e+00> : vector<8x256xf32>
    %51 = tpu.matmul %50, %49, %cst_40 {dimension_numbers = #tpu.dot_dimension_numbers<[1], [0], [0], [1], [0, 0, 1, 1], [], []>} : vector<8x1024xbf16>, vector<1024x256xbf16>, vector<8x256xf32> -> vector<8x256xf32>
    %c0_41 = arith.constant 0 : index
    %c0_42 = arith.constant 0 : index
    %c0_43 = arith.constant 0 : index
    %52 = vector.load %arg13[%c0_41, %c0_42, %c0_43] : memref<1x1x256xf32, #tpu.memory_space<vmem>>, vector<1x1x256xf32>
    %53 = vector.shape_cast %52 : vector<1x1x256xf32> to vector<1x256xf32>
    %54 = vector.broadcast %53 : vector<1x256xf32> to vector<8x256xf32>
    %55 = arith.mulf %51, %54 : vector<8x256xf32>
    %56 = arith.truncf %46 : vector<8x256xf32> to vector<8x256xbf16>
    %c0_44 = arith.constant 0 : index
    %c0_45 = arith.constant 0 : index
    %c0_46 = arith.constant 0 : index
    %57 = vector.load %arg14[%c0_44, %c0_45, %c0_46] : memref<1x256x256xbf16, #tpu.memory_space<vmem>>, vector<1x256x256xbf16>
    %58 = vector.shape_cast %57 : vector<1x256x256xbf16> to vector<256x256xbf16>
    %cst_47 = arith.constant dense<0.000000e+00> : vector<8x256xf32>
    %59 = tpu.matmul %56, %58, %cst_47 {dimension_numbers = #tpu.dot_dimension_numbers<[1], [0], [0], [1], [0, 0, 1, 1], [], []>} : vector<8x256xbf16>, vector<256x256xbf16>, vector<8x256xf32> -> vector<8x256xf32>
    %60 = arith.addf %55, %59 : vector<8x256xf32>
    %c0_48 = arith.constant 0 : index
    %c0_49 = arith.constant 0 : index
    %c0_50 = arith.constant 0 : index
    %61 = vector.load %arg15[%c0_48, %c0_49, %c0_50] : memref<1x1x256xf32, #tpu.memory_space<vmem>>, vector<1x1x256xf32>
    %62 = vector.shape_cast %61 : vector<1x1x256xf32> to vector<1x256xf32>
    %63 = vector.broadcast %62 : vector<1x256xf32> to vector<8x256xf32>
    %64 = arith.addf %60, %63 : vector<8x256xf32>
    %cst_51 = arith.constant 0.000000e+00 : f32
    %65 = vector.broadcast %cst_51 : f32 to vector<8x256xf32>
    %66 = arith.maximumf %64, %65 : vector<8x256xf32>
    %67 = arith.truncf %66 : vector<8x256xf32> to vector<8x256xbf16>
    %c0_52 = arith.constant 0 : index
    %c0_53 = arith.constant 0 : index
    %c0_54 = arith.constant 0 : index
    %68 = vector.load %arg16[%c0_52, %c0_53, %c0_54] : memref<1x256x128xbf16, #tpu.memory_space<vmem>>, vector<1x256x128xbf16>
    %69 = vector.shape_cast %68 : vector<1x256x128xbf16> to vector<256x128xbf16>
    %cst_55 = arith.constant dense<0.000000e+00> : vector<8x128xf32>
    %70 = tpu.matmul %67, %69, %cst_55 {dimension_numbers = #tpu.dot_dimension_numbers<[1], [0], [0], [1], [0, 0, 1, 1], [], []>} : vector<8x256xbf16>, vector<256x128xbf16>, vector<8x128xf32> -> vector<8x128xf32>
    %c0_56 = arith.constant 0 : index
    %c0_57 = arith.constant 0 : index
    %c0_58 = arith.constant 0 : index
    %71 = vector.load %arg17[%c0_56, %c0_57, %c0_58] : memref<1x1x128xf32, #tpu.memory_space<vmem>>, vector<1x1x128xf32>
    %72 = vector.shape_cast %71 : vector<1x1x128xf32> to vector<1x128xf32>
    %73 = vector.broadcast %72 : vector<1x128xf32> to vector<8x128xf32>
    %74 = arith.addf %70, %73 : vector<8x128xf32>
    %c0_59 = arith.constant 0 : index
    %c0_60 = arith.constant 0 : index
    %c0_61 = arith.constant 0 : index
    %75 = vector.load %arg18[%c0_59, %c0_60, %c0_61] : memref<1x8x128xf32, #tpu.memory_space<vmem>>, vector<1x8x128xf32>
    %76 = vector.shape_cast %75 : vector<1x8x128xf32> to vector<8x128xf32>
    %77 = vector.shape_cast %74 : vector<8x128xf32> to vector<1x8x128xf32>
    tpu.vector_store %arg18[%c0_59, %c0_60, %c0_61], %77 {strides = array<i32>} : memref<1x8x128xf32, #tpu.memory_space<vmem>>, vector<1x8x128xf32>,
    return
  }
  func.func @transform_0(%arg0: i32) -> (i32, i32) {
    %c0_i32 = arith.constant 0 : i32
    %c0_i32_0 = arith.constant 0 : i32
    %c0_i32_1 = arith.constant 0 : i32
    return %c0_i32, %c0_i32_0 : i32, i32
  }
  func.func @transform_1(%arg0: i32) -> (i32, i32) {
    %c0_i32 = arith.constant 0 : i32
    %c0_i32_0 = arith.constant 0 : i32
    %c0_i32_1 = arith.constant 0 : i32
    return %c0_i32, %c0_i32_0 : i32, i32
  }
  func.func @transform_2(%arg0: i32) -> (i32, i32, i32) {
    %c0_i32 = arith.constant 0 : i32
    %c0_i32_0 = arith.constant 0 : i32
    %c0_i32_1 = arith.constant 0 : i32
    return %arg0, %c0_i32, %c0_i32_0 : i32, i32, i32
  }
  func.func @transform_3(%arg0: i32) -> (i32, i32, i32) {
    %c0_i32 = arith.constant 0 : i32
    %c0_i32_0 = arith.constant 0 : i32
    %c0_i32_1 = arith.constant 0 : i32
    return %arg0, %c0_i32, %c0_i32_0 : i32, i32, i32
  }
  func.func @transform_4(%arg0: i32) -> (i32, i32, i32) {
    %c0_i32 = arith.constant 0 : i32
    %c0_i32_0 = arith.constant 0 : i32
    %c0_i32_1 = arith.constant 0 : i32
    return %arg0, %c0_i32, %c0_i32_0 : i32, i32, i32
  }
  func.func @transform_5(%arg0: i32) -> (i32, i32, i32) {
    %c0_i32 = arith.constant 0 : i32
    %c0_i32_0 = arith.constant 0 : i32
    %c0_i32_1 = arith.constant 0 : i32
    return %arg0, %c0_i32, %c0_i32_0 : i32, i32, i32
  }
  func.func @transform_6(%arg0: i32) -> (i32, i32, i32) {
    %c0_i32 = arith.constant 0 : i32
    %c0_i32_0 = arith.constant 0 : i32
    %c0_i32_1 = arith.constant 0 : i32
    return %arg0, %c0_i32, %c0_i32_0 : i32, i32, i32
  }
  func.func @transform_7(%arg0: i32) -> (i32, i32, i32) {
    %c0_i32 = arith.constant 0 : i32
    %c0_i32_0 = arith.constant 0 : i32
    %c0_i32_1 = arith.constant 0 : i32
    return %arg0, %c0_i32, %c0_i32_0 : i32, i32, i32
  }
  func.func @transform_8(%arg0: i32) -> (i32, i32, i32) {
    %c0_i32 = arith.constant 0 : i32
    %c0_i32_0 = arith.constant 0 : i32
    %c0_i32_1 = arith.constant 0 : i32
    return %arg0, %c0_i32, %c0_i32_0 : i32, i32, i32
  }
  func.func @transform_9(%arg0: i32) -> (i32, i32, i32) {
    %c0_i32 = arith.constant 0 : i32
    %c0_i32_0 = arith.constant 0 : i32
    %c0_i32_1 = arith.constant 0 : i32
    return %arg0, %c0_i32, %c0_i32_0 : i32, i32, i32
  }
  func.func @transform_10(%arg0: i32) -> (i32, i32, i32) {
    %c0_i32 = arith.constant 0 : i32
    %c0_i32_0 = arith.constant 0 : i32
    %c0_i32_1 = arith.constant 0 : i32
    return %arg0, %c0_i32, %c0_i32_0 : i32, i32, i32
  }
  func.func @transform_11(%arg0: i32) -> (i32, i32, i32) {
    %c0_i32 = arith.constant 0 : i32
    %c0_i32_0 = arith.constant 0 : i32
    %c0_i32_1 = arith.constant 0 : i32
    return %arg0, %c0_i32, %c0_i32_0 : i32, i32, i32
  }
  func.func @transform_12(%arg0: i32) -> (i32, i32, i32) {
    %c0_i32 = arith.constant 0 : i32
    %c0_i32_0 = arith.constant 0 : i32
    %c0_i32_1 = arith.constant 0 : i32
    return %arg0, %c0_i32, %c0_i32_0 : i32, i32, i32
  }
  func.func @transform_13(%arg0: i32) -> (i32, i32, i32) {
    %c0_i32 = arith.constant 0 : i32
    %c0_i32_0 = arith.constant 0 : i32
    %c0_i32_1 = arith.constant 0 : i32
    return %arg0, %c0_i32, %c0_i32_0 : i32, i32, i32
  }
  func.func @transform_14(%arg0: i32) -> (i32, i32, i32) {
    %c0_i32 = arith.constant 0 : i32
    %c0_i32_0 = arith.constant 0 : i32
    %c0_i32_1 = arith.constant 0 : i32
    return %arg0, %c0_i32, %c0_i32_0 : i32, i32, i32
  }
  func.func @transform_15(%arg0: i32) -> (i32, i32, i32) {
    %c0_i32 = arith.constant 0 : i32
    %c0_i32_0 = arith.constant 0 : i32
    %c0_i32_1 = arith.constant 0 : i32
    return %arg0, %c0_i32, %c0_i32_0 : i32, i32, i32
  }
  func.func @transform_16(%arg0: i32) -> (i32, i32, i32) {
    %c0_i32 = arith.constant 0 : i32
    %c0_i32_0 = arith.constant 0 : i32
    %c0_i32_1 = arith.constant 0 : i32
    return %arg0, %c0_i32, %c0_i32_0 : i32, i32, i32
  }
  func.func @transform_17(%arg0: i32) -> (i32, i32, i32) {
    %c0_i32 = arith.constant 0 : i32
    %c0_i32_0 = arith.constant 0 : i32
    %c0_i32_1 = arith.constant 0 : i32
    return %arg0, %c0_i32, %c0_i32_0 : i32, i32, i32
  }
}

</mosaic_0001>

<llo_original>
// kernel: forward.1
$region0: #{forward.1}
  #allocation0 [shape = 'u32[]', space=smem, size = 0x4, offset = 0x4, fixed_abs, tag = 'smem constant byte address 0x4 - core index']
  #allocation1 [shape = 'u32[144,128]{1,0:T(1,128)}', space=vmem, size = 0x12000, scoped, tag = 'internal scratch']
  %s0 = inlined_call_operand.vmem [shape: f32[8,48], index: 0, kind: input, shape index: {}]
  %s1 = inlined_call_operand.vmem [shape: f32[8,16], index: 1, kind: input, shape index: {}]
  %s2 = inlined_call_operand.hbm [shape: bf16[2,48,1280], index: 2, kind: input, shape index: {}]
  %s3 = inlined_call_operand.hbm [shape: f32[2,1,1280], index: 3, kind: input, shape index: {}]
  %s4 = inlined_call_operand.hbm [shape: s8[2,1280,1024], index: 4, kind: input, shape index: {}]
  %s5 = inlined_call_operand.hbm [shape: f32[2,1,1024], index: 5, kind: input, shape index: {}]
  %s6 = inlined_call_operand.hbm [shape: f32[2,1,1024], index: 6, kind: input, shape index: {}]
  %s7 = inlined_call_operand.hbm [shape: bf16[2,16,128], index: 7, kind: input, shape index: {}]
  %s8 = inlined_call_operand.hbm [shape: f32[2,1,128], index: 8, kind: input, shape index: {}]
  %s9 = inlined_call_operand.hbm [shape: bf16[2,128,256], index: 9, kind: input, shape index: {}]
  %s10 = inlined_call_operand.hbm [shape: f32[2,1,256], index: 10, kind: input, shape index: {}]
  %s11 = inlined_call_operand.hbm [shape: s8[2,1024,256], index: 11, kind: input, shape index: {}]
  %s12 = inlined_call_operand.hbm [shape: f32[2,1,256], index: 12, kind: input, shape index: {}]
  %s13 = inlined_call_operand.hbm [shape: bf16[2,256,256], index: 13, kind: input, shape index: {}]
  %s14 = inlined_call_operand.hbm [shape: f32[2,1,256], index: 14, kind: input, shape index: {}]
  %s15 = inlined_call_operand.hbm [shape: bf16[2,256,128], index: 15, kind: input, shape index: {}]
  %s16 = inlined_call_operand.hbm [shape: f32[2,1,128], index: 16, kind: input, shape index: {}]
  %s17 = inlined_call_operand.vmem [shape: f32[2,8,128], index: 17, kind: output, shape index: {}]
  %s18 = sld [smem:[#allocation0]]
  $region161: #{forward.1} parent=0
    _
  %s20 = ssub.s32 1, %s18
  %s21 = scalar_select 0, %s20, %s18
  $region1: #{forward.1} parent=0
    #allocation2 [shape = 'u8[245760]{0}', space=vmem, size = 0x3c000, scoped, tag = 'input window, operand 2']
    #allocation3 [shape = 's32[2]{0}', space=sflag, size = 0x8, scoped, tag = 'scoped memory for forward.1']
    #allocation4 [shape = 'u8[10240]{0}', space=vmem, size = 0x2800, scoped, tag = 'input window, operand 3']
    #allocation5 [shape = 's32[2]{0}', space=sflag, size = 0x8, scoped, tag = 'scoped memory for forward.1']
    #allocation6 [shape = 'u8[2621440]{0}', space=vmem, size = 0x280000, scoped, tag = 'input window, operand 4']
    #allocation7 [shape = 'u8[8192]{0}', space=vmem, size = 0x2000, scoped, tag = 'input window, operand 5']
    #allocation8 [shape = 's32[2]{0}', space=sflag, size = 0x8, scoped, tag = 'scoped memory for forward.1']
    #allocation9 [shape = 'u8[8192]{0}', space=vmem, size = 0x2000, scoped, tag = 'input window, operand 6']
    #allocation10 [shape = 'u8[8192]{0}', space=vmem, size = 0x2000, scoped, tag = 'input window, operand 7']
    #allocation11 [shape = 's32[2]{0}', space=sflag, size = 0x8, scoped, tag = 'scoped memory for forward.1']
    #allocation12 [shape = 'u8[1024]{0}', space=vmem, size = 0x400, scoped, tag = 'input window, operand 8']
    #allocation13 [shape = 'u8[131072]{0}', space=vmem, size = 0x20000, scoped, tag = 'input window, operand 9']
    #allocation14 [shape = 's32[2]{0}', space=sflag, size = 0x8, scoped, tag = 'scoped memory for forward.1']
    #allocation15 [shape = 'u8[2048]{0}', space=vmem, size = 0x800, scoped, tag = 'input window, operand 10']
    #allocation16 [shape = 'u8[524288]{0}', space=vmem, size = 0x80000, scoped, tag = 'input window, operand 11']
    #allocation17 [shape = 's32[2]{0}', space=sflag, size = 0x8, scoped, tag = 'scoped memory for forward.1']
    #allocation18 [shape = 'u8[2048]{0}', space=vmem, size = 0x800, scoped, tag = 'input window, operand 12']
    #allocation19 [shape = 'u8[262144]{0}', space=vmem, size = 0x40000, scoped, tag = 'input window, operand 13']
    #allocation20 [shape = 's32[2]{0}', space=sflag, size = 0x8, scoped, tag = 'scoped memory for forward.1']
    #allocation21 [shape = 'u8[2048]{0}', space=vmem, size = 0x800, scoped, tag = 'input window, operand 14']
    #allocation22 [shape = 'u8[131072]{0}', space=vmem, size = 0x20000, scoped, tag = 'input window, operand 15']
    #allocation23 [shape = 's32[2]{0}', space=sflag, size = 0x8, scoped, tag = 'scoped memory for forward.1']
    #allocation24 [shape = 'u8[1024]{0}', space=vmem, size = 0x400, scoped, tag = 'input window, operand 16']
    %22 = vsyncpa [#allocation3], 0
    %s23 = scalar_lea.sflag [#allocation3], 1
    %24 = vsyncpa %s23, 0
    %25 = vsyncpa [#allocation5], 0
    %s26 = scalar_lea.sflag [#allocation5], 1
    %27 = vsyncpa %s26, 0
    %28 = vsyncpa [#allocation8], 0
    %s29 = scalar_lea.sflag [#allocation8], 1
    %30 = vsyncpa %s29, 0
    %31 = vsyncpa [#allocation11], 0
    %s32 = scalar_lea.sflag [#allocation11], 1
    %33 = vsyncpa %s32, 0
    %34 = vsyncpa [#allocation14], 0
    %s35 = scalar_lea.sflag [#allocation14], 1
    %36 = vsyncpa %s35, 0
    %37 = vsyncpa [#allocation17], 0
    %s38 = scalar_lea.sflag [#allocation17], 1
    %39 = vsyncpa %s38, 0
    %40 = vsyncpa [#allocation20], 0
    %s41 = scalar_lea.sflag [#allocation20], 1
    %42 = vsyncpa %s41, 0
    %43 = vsyncpa [#allocation23], 0
    %s44 = scalar_lea.sflag [#allocation23], 1
    %45 = vsyncpa %s44, 0
    loop: start=0, step=1, limit=4
    $region2: #{forward.1} parent=1 // loop_pre_header
      _
    $region3: #{forward.1} parent=1 // loop_header
      %s47 = sphi 0, %s51
      %p48 = scmp.ge.s32.totalorder %s47, 4
      %s55 = sphi 0, %s55
      %s57 = sphi 0, %s55
      %s58 = sphi 0, %s57
      %s72 = sphi 0, %s58
      %s76 = sphi 0, %s76
      %s78 = sphi 0, %s76
      %s79 = sphi 0, %s78
      %s93 = sphi 0, %s79
      %s99 = sphi 0, %s101
      %s102 = sphi 0, %s99
      %s103 = sphi 0, %s102
      %s119 = sphi 0, %s103
      %s125 = sphi 0, %s127
      %s128 = sphi 0, %s125
      %s129 = sphi 0, %s128
      %s145 = sphi 0, %s129
      %s151 = sphi 0, %s153
      %s154 = sphi 0, %s151
      %s155 = sphi 0, %s154
      %s171 = sphi 0, %s155
      %s177 = sphi 0, %s179
      %s180 = sphi 0, %s177
      %s181 = sphi 0, %s180
      %s197 = sphi 0, %s181
      %s203 = sphi 0, %s205
      %s206 = sphi 0, %s203
      %s207 = sphi 0, %s206
      %s223 = sphi 0, %s207
      %s229 = sphi 0, %s231
      %s232 = sphi 0, %s229
      %s233 = sphi 0, %s232
      %s249 = sphi 0, %s233
      %s255 = sphi 0, %s257
      %s258 = sphi 0, %s255
      %s259 = sphi 0, %s258
      %s275 = sphi 0, %s259
      %s281 = sphi 0, %s283
      %s284 = sphi 0, %s281
      %s285 = sphi 0, %s284
      %s301 = sphi 0, %s285
      %s307 = sphi 0, %s309
      %s310 = sphi 0, %s307
      %s311 = sphi 0, %s310
      %s327 = sphi 0, %s311
      %s333 = sphi 0, %s335
      %s336 = sphi 0, %s333
      %s337 = sphi 0, %s336
      %s353 = sphi 0, %s337
      %s359 = sphi 0, %s361
      %s362 = sphi 0, %s359
      %s363 = sphi 0, %s362
      %s379 = sphi 0, %s363
      %s385 = sphi 0, %s387
      %s388 = sphi 0, %s385
      %s389 = sphi 0, %s388
      %s405 = sphi 0, %s389
      %s411 = sphi 0, %s413
      %s414 = sphi 0, %s411
      %s415 = sphi 0, %s414
      %s431 = sphi 0, %s415
      %s437 = sphi 0, %s439
      %s440 = sphi 0, %s437
      %s441 = sphi 0, %s440
      %s457 = sphi 0, %s441
      %s463 = sphi 0, %s465
      %s466 = sphi 0, %s463
      %s467 = sphi 0, %s466
      %s483 = sphi 0, %s467
      %s489 = sphi 0, %s491
      %s492 = sphi 0, %s489
      %s493 = sphi 0, %s492
      %s509 = sphi 0, %s493
    $region4: #{forward.1} parent=1 // loop_header_branch
      %50 = sbr.rel (%p48) target = $region8
    $region5: #{forward.1} parent=1 // loop_body
      %s52 = ssub.s32 %s47, 1
      %s53 = ssub.s32 %s47, 2
      %s54 = sadd.s32 %s47, 1
      %s56 = sadd.s32 %s55, 1
      %p59 = scmp.eq.s32.totalorder %s47, 1
      %p60 = scmp.ne.s32.totalorder %s55, %s57
      %p61 = scmp.eq.s32.totalorder %s47, 0
      %p62 = por %p60, %p61
      %p63 = scmp.ne.s32.totalorder %s55, %s57
      %p64 = scmp.eq.s32.totalorder %s52, 1
      %p65 = por %p63, %p64
      %p66 = scmp.ne.s32.totalorder %s57, %s58
      %p67 = scmp.eq.s32.totalorder %s52, 0
      %p68 = por %p66, %p67
      %p69 = scmp.ne.s32.totalorder %s57, %s58
      %p70 = scmp.eq.s32.totalorder %s53, 1
      %p71 = por %p69, %p70
      %p73 = scmp.ne.s32.totalorder %s58, %s72
      %p74 = scmp.eq.s32.totalorder %s53, 0
      %p75 = por %p73, %p74
      %s77 = sadd.s32 %s76, 1
      %p80 = scmp.eq.s32.totalorder %s47, 1
      %p81 = scmp.ne.s32.totalorder %s76, %s78
      %p82 = scmp.eq.s32.totalorder %s47, 0
      %p83 = por %p81, %p82
      %p84 = scmp.ne.s32.totalorder %s76, %s78
      %p85 = scmp.eq.s32.totalorder %s52, 1
      %p86 = por %p84, %p85
      %p87 = scmp.ne.s32.totalorder %s78, %s79
      %p88 = scmp.eq.s32.totalorder %s52, 0
      %p89 = por %p87, %p88
      %p90 = scmp.ne.s32.totalorder %s78, %s79
      %p91 = scmp.eq.s32.totalorder %s53, 1
      %p92 = por %p90, %p91
      %p94 = scmp.ne.s32.totalorder %s79, %s93
      %p95 = scmp.eq.s32.totalorder %s53, 0
      %p96 = por %p94, %p95
      %s97 = ssub.s32 %s47, %s54
      %p98 = scmp.eq.s32.totalorder %s97, 0
      %s100 = sadd.s32 %s99, 1
      %s101 = scalar_select %p98, %s99, %s100
      %p104 = pneg %p98
      %p105 = scmp.eq.s32.totalorder %s47, 1
      %p106 = por %p104, %p105
      %p107 = scmp.ne.s32.totalorder %s99, %s102
      %p108 = scmp.eq.s32.totalorder %s47, 0
      %p109 = por %p107, %p108
      %p110 = scmp.ne.s32.totalorder %s99, %s102
      %p111 = scmp.eq.s32.totalorder %s52, 1
      %p112 = por %p110, %p111
      %p113 = scmp.ne.s32.totalorder %s102, %s103
      %p114 = scmp.eq.s32.totalorder %s52, 0
      %p115 = por %p113, %p114
      %p116 = scmp.ne.s32.totalorder %s102, %s103
      %p117 = scmp.eq.s32.totalorder %s53, 1
      %p118 = por %p116, %p117
      %p120 = scmp.ne.s32.totalorder %s103, %s119
      %p121 = scmp.eq.s32.totalorder %s53, 0
      %p122 = por %p120, %p121
      %s123 = ssub.s32 %s47, %s54
      %p124 = scmp.eq.s32.totalorder %s123, 0
      %s126 = sadd.s32 %s125, 1
      %s127 = scalar_select %p124, %s125, %s126
      %p130 = pneg %p124
      %p131 = scmp.eq.s32.totalorder %s47, 1
      %p132 = por %p130, %p131
      %p133 = scmp.ne.s32.totalorder %s125, %s128
      %p134 = scmp.eq.s32.totalorder %s47, 0
      %p135 = por %p133, %p134
      %p136 = scmp.ne.s32.totalorder %s125, %s128
      %p137 = scmp.eq.s32.totalorder %s52, 1
      %p138 = por %p136, %p137
      %p139 = scmp.ne.s32.totalorder %s128, %s129
      %p140 = scmp.eq.s32.totalorder %s52, 0
      %p141 = por %p139, %p140
      %p142 = scmp.ne.s32.totalorder %s128, %s129
      %p143 = scmp.eq.s32.totalorder %s53, 1
      %p144 = por %p142, %p143
      %p146 = scmp.ne.s32.totalorder %s129, %s145
      %p147 = scmp.eq.s32.totalorder %s53, 0
      %p148 = por %p146, %p147
      %s149 = ssub.s32 %s47, %s54
      %p150 = scmp.eq.s32.totalorder %s149, 0
      %s152 = sadd.s32 %s151, 1
      %s153 = scalar_select %p150, %s151, %s152
      %p156 = pneg %p150
      %p157 = scmp.eq.s32.totalorder %s47, 1
      %p158 = por %p156, %p157
      %p159 = scmp.ne.s32.totalorder %s151, %s154
      %p160 = scmp.eq.s32.totalorder %s47, 0
      %p161 = por %p159, %p160
      %p162 = scmp.ne.s32.totalorder %s151, %s154
      %p163 = scmp.eq.s32.totalorder %s52, 1
      %p164 = por %p162, %p163
      %p165 = scmp.ne.s32.totalorder %s154, %s155
      %p166 = scmp.eq.s32.totalorder %s52, 0
      %p167 = por %p165, %p166
      %p168 = scmp.ne.s32.totalorder %s154, %s155
      %p169 = scmp.eq.s32.totalorder %s53, 1
      %p170 = por %p168, %p169
      %p172 = scmp.ne.s32.totalorder %s155, %s171
      %p173 = scmp.eq.s32.totalorder %s53, 0
      %p174 = por %p172, %p173
      %s175 = ssub.s32 %s47, %s54
      %p176 = scmp.eq.s32.totalorder %s175, 0
      %s178 = sadd.s32 %s177, 1
      %s179 = scalar_select %p176, %s177, %s178
      %p182 = pneg %p176
      %p183 = scmp.eq.s32.totalorder %s47, 1
      %p184 = por %p182, %p183
      %p185 = scmp.ne.s32.totalorder %s177, %s180
      %p186 = scmp.eq.s32.totalorder %s47, 0
      %p187 = por %p185, %p186
      %p188 = scmp.ne.s32.totalorder %s177, %s180
      %p189 = scmp.eq.s32.totalorder %s52, 1
      %p190 = por %p188, %p189
      %p191 = scmp.ne.s32.totalorder %s180, %s181
      %p192 = scmp.eq.s32.totalorder %s52, 0
      %p193 = por %p191, %p192
      %p194 = scmp.ne.s32.totalorder %s180, %s181
      %p195 = scmp.eq.s32.totalorder %s53, 1
      %p196 = por %p194, %p195
      %p198 = scmp.ne.s32.totalorder %s181, %s197
      %p199 = scmp.eq.s32.totalorder %s53, 0
      %p200 = por %p198, %p199
      %s201 = ssub.s32 %s47, %s54
      %p202 = scmp.eq.s32.totalorder %s201, 0
      %s204 = sadd.s32 %s203, 1
      %s205 = scalar_select %p202, %s203, %s204
      %p208 = pneg %p202
      %p209 = scmp.eq.s32.totalorder %s47, 1
      %p210 = por %p208, %p209
      %p211 = scmp.ne.s32.totalorder %s203, %s206
      %p212 = scmp.eq.s32.totalorder %s47, 0
      %p213 = por %p211, %p212
      %p214 = scmp.ne.s32.totalorder %s203, %s206
      %p215 = scmp.eq.s32.totalorder %s52, 1
      %p216 = por %p214, %p215
      %p217 = scmp.ne.s32.totalorder %s206, %s207
      %p218 = scmp.eq.s32.totalorder %s52, 0
      %p219 = por %p217, %p218
      %p220 = scmp.ne.s32.totalorder %s206, %s207
      %p221 = scmp.eq.s32.totalorder %s53, 1
      %p222 = por %p220, %p221
      %p224 = scmp.ne.s32.totalorder %s207, %s223
      %p225 = scmp.eq.s32.totalorder %s53, 0
      %p226 = por %p224, %p225
      %s227 = ssub.s32 %s47, %s54
      %p228 = scmp.eq.s32.totalorder %s227, 0
      %s230 = sadd.s32 %s229, 1
      %s231 = scalar_select %p228, %s229, %s230
      %p234 = pneg %p228
      %p235 = scmp.eq.s32.totalorder %s47, 1
      %p236 = por %p234, %p235
      %p237 = scmp.ne.s32.totalorder %s229, %s232
      %p238 = scmp.eq.s32.totalorder %s47, 0
      %p239 = por %p237, %p238
      %p240 = scmp.ne.s32.totalorder %s229, %s232
      %p241 = scmp.eq.s32.totalorder %s52, 1
      %p242 = por %p240, %p241
      %p243 = scmp.ne.s32.totalorder %s232, %s233
      %p244 = scmp.eq.s32.totalorder %s52, 0
      %p245 = por %p243, %p244
      %p246 = scmp.ne.s32.totalorder %s232, %s233
      %p247 = scmp.eq.s32.totalorder %s53, 1
      %p248 = por %p246, %p247
      %p250 = scmp.ne.s32.totalorder %s233, %s249
      %p251 = scmp.eq.s32.totalorder %s53, 0
      %p252 = por %p250, %p251
      %s253 = ssub.s32 %s47, %s54
      %p254 = scmp.eq.s32.totalorder %s253, 0
      %s256 = sadd.s32 %s255, 1
      %s257 = scalar_select %p254, %s255, %s256
      %p260 = pneg %p254
      %p261 = scmp.eq.s32.totalorder %s47, 1
      %p262 = por %p260, %p261
      %p263 = scmp.ne.s32.totalorder %s255, %s258
      %p264 = scmp.eq.s32.totalorder %s47, 0
      %p265 = por %p263, %p264
      %p266 = scmp.ne.s32.totalorder %s255, %s258
      %p267 = scmp.eq.s32.totalorder %s52, 1
      %p268 = por %p266, %p267
      %p269 = scmp.ne.s32.totalorder %s258, %s259
      %p270 = scmp.eq.s32.totalorder %s52, 0
      %p271 = por %p269, %p270
      %p272 = scmp.ne.s32.totalorder %s258, %s259
      %p273 = scmp.eq.s32.totalorder %s53, 1
      %p274 = por %p272, %p273
      %p276 = scmp.ne.s32.totalorder %s259, %s275
      %p277 = scmp.eq.s32.totalorder %s53, 0
      %p278 = por %p276, %p277
      %s279 = ssub.s32 %s47, %s54
      %p280 = scmp.eq.s32.totalorder %s279, 0
      %s282 = sadd.s32 %s281, 1
      %s283 = scalar_select %p280, %s281, %s282
      %p286 = pneg %p280
      %p287 = scmp.eq.s32.totalorder %s47, 1
      %p288 = por %p286, %p287
      %p289 = scmp.ne.s32.totalorder %s281, %s284
      %p290 = scmp.eq.s32.totalorder %s47, 0
      %p291 = por %p289, %p290
      %p292 = scmp.ne.s32.totalorder %s281, %s284
      %p293 = scmp.eq.s32.totalorder %s52, 1
      %p294 = por %p292, %p293
      %p295 = scmp.ne.s32.totalorder %s284, %s285
      %p296 = scmp.eq.s32.totalorder %s52, 0
      %p297 = por %p295, %p296
      %p298 = scmp.ne.s32.totalorder %s284, %s285
      %p299 = scmp.eq.s32.totalorder %s53, 1
      %p300 = por %p298, %p299
      %p302 = scmp.ne.s32.totalorder %s285, %s301
      %p303 = scmp.eq.s32.totalorder %s53, 0
      %p304 = por %p302, %p303
      %s305 = ssub.s32 %s47, %s54
      %p306 = scmp.eq.s32.totalorder %s305, 0
      %s308 = sadd.s32 %s307, 1
      %s309 = scalar_select %p306, %s307, %s308
      %p312 = pneg %p306
      %p313 = scmp.eq.s32.totalorder %s47, 1
      %p314 = por %p312, %p313
      %p315 = scmp.ne.s32.totalorder %s307, %s310
      %p316 = scmp.eq.s32.totalorder %s47, 0
      %p317 = por %p315, %p316
      %p318 = scmp.ne.s32.totalorder %s307, %s310
      %p319 = scmp.eq.s32.totalorder %s52, 1
      %p320 = por %p318, %p319
      %p321 = scmp.ne.s32.totalorder %s310, %s311
      %p322 = scmp.eq.s32.totalorder %s52, 0
      %p323 = por %p321, %p322
      %p324 = scmp.ne.s32.totalorder %s310, %s311
      %p325 = scmp.eq.s32.totalorder %s53, 1
      %p326 = por %p324, %p325
      %p328 = scmp.ne.s32.totalorder %s311, %s327
      %p329 = scmp.eq.s32.totalorder %s53, 0
      %p330 = por %p328, %p329
      %s331 = ssub.s32 %s47, %s54
      %p332 = scmp.eq.s32.totalorder %s331, 0
      %s334 = sadd.s32 %s333, 1
      %s335 = scalar_select %p332, %s333, %s334
      %p338 = pneg %p332
      %p339 = scmp.eq.s32.totalorder %s47, 1
      %p340 = por %p338, %p339
      %p341 = scmp.ne.s32.totalorder %s333, %s336
      %p342 = scmp.eq.s32.totalorder %s47, 0
      %p343 = por %p341, %p342
      %p344 = scmp.ne.s32.totalorder %s333, %s336
      %p345 = scmp.eq.s32.totalorder %s52, 1
      %p346 = por %p344, %p345
      %p347 = scmp.ne.s32.totalorder %s336, %s337
      %p348 = scmp.eq.s32.totalorder %s52, 0
      %p349 = por %p347, %p348
      %p350 = scmp.ne.s32.totalorder %s336, %s337
      %p351 = scmp.eq.s32.totalorder %s53, 1
      %p352 = por %p350, %p351
      %p354 = scmp.ne.s32.totalorder %s337, %s353
      %p355 = scmp.eq.s32.totalorder %s53, 0
      %p356 = por %p354, %p355
      %s357 = ssub.s32 %s47, %s54
      %p358 = scmp.eq.s32.totalorder %s357, 0
      %s360 = sadd.s32 %s359, 1
      %s361 = scalar_select %p358, %s359, %s360
      %p364 = pneg %p358
      %p365 = scmp.eq.s32.totalorder %s47, 1
      %p366 = por %p364, %p365
      %p367 = scmp.ne.s32.totalorder %s359, %s362
      %p368 = scmp.eq.s32.totalorder %s47, 0
      %p369 = por %p367, %p368
      %p370 = scmp.ne.s32.totalorder %s359, %s362
      %p371 = scmp.eq.s32.totalorder %s52, 1
      %p372 = por %p370, %p371
      %p373 = scmp.ne.s32.totalorder %s362, %s363
      %p374 = scmp.eq.s32.totalorder %s52, 0
      %p375 = por %p373, %p374
      %p376 = scmp.ne.s32.totalorder %s362, %s363
      %p377 = scmp.eq.s32.totalorder %s53, 1
      %p378 = por %p376, %p377
      %p380 = scmp.ne.s32.totalorder %s363, %s379
      %p381 = scmp.eq.s32.totalorder %s53, 0
      %p382 = por %p380, %p381
      %s383 = ssub.s32 %s47, %s54
      %p384 = scmp.eq.s32.totalorder %s383, 0
      %s386 = sadd.s32 %s385, 1
      %s387 = scalar_select %p384, %s385, %s386
      %p390 = pneg %p384
      %p391 = scmp.eq.s32.totalorder %s47, 1
      %p392 = por %p390, %p391
      %p393 = scmp.ne.s32.totalorder %s385, %s388
      %p394 = scmp.eq.s32.totalorder %s47, 0
      %p395 = por %p393, %p394
      %p396 = scmp.ne.s32.totalorder %s385, %s388
      %p397 = scmp.eq.s32.totalorder %s52, 1
      %p398 = por %p396, %p397
      %p399 = scmp.ne.s32.totalorder %s388, %s389
      %p400 = scmp.eq.s32.totalorder %s52, 0
      %p401 = por %p399, %p400
      %p402 = scmp.ne.s32.totalorder %s388, %s389
      %p403 = scmp.eq.s32.totalorder %s53, 1
      %p404 = por %p402, %p403
      %p406 = scmp.ne.s32.totalorder %s389, %s405
      %p407 = scmp.eq.s32.totalorder %s53, 0
      %p408 = por %p406, %p407
      %s409 = ssub.s32 %s47, %s54
      %p410 = scmp.eq.s32.totalorder %s409, 0
      %s412 = sadd.s32 %s411, 1
      %s413 = scalar_select %p410, %s411, %s412
      %p416 = pneg %p410
      %p417 = scmp.eq.s32.totalorder %s47, 1
      %p418 = por %p416, %p417
      %p419 = scmp.ne.s32.totalorder %s411, %s414
      %p420 = scmp.eq.s32.totalorder %s47, 0
      %p421 = por %p419, %p420
      %p422 = scmp.ne.s32.totalorder %s411, %s414
      %p423 = scmp.eq.s32.totalorder %s52, 1
      %p424 = por %p422, %p423
      %p425 = scmp.ne.s32.totalorder %s414, %s415
      %p426 = scmp.eq.s32.totalorder %s52, 0
      %p427 = por %p425, %p426
      %p428 = scmp.ne.s32.totalorder %s414, %s415
      %p429 = scmp.eq.s32.totalorder %s53, 1
      %p430 = por %p428, %p429
      %p432 = scmp.ne.s32.totalorder %s415, %s431
      %p433 = scmp.eq.s32.totalorder %s53, 0
      %p434 = por %p432, %p433
      %s435 = ssub.s32 %s47, %s54
      %p436 = scmp.eq.s32.totalorder %s435, 0
      %s438 = sadd.s32 %s437, 1
      %s439 = scalar_select %p436, %s437, %s438
      %p442 = pneg %p436
      %p443 = scmp.eq.s32.totalorder %s47, 1
      %p444 = por %p442, %p443
      %p445 = scmp.ne.s32.totalorder %s437, %s440
      %p446 = scmp.eq.s32.totalorder %s47, 0
      %p447 = por %p445, %p446
      %p448 = scmp.ne.s32.totalorder %s437, %s440
      %p449 = scmp.eq.s32.totalorder %s52, 1
      %p450 = por %p448, %p449
      %p451 = scmp.ne.s32.totalorder %s440, %s441
      %p452 = scmp.eq.s32.totalorder %s52, 0
      %p453 = por %p451, %p452
      %p454 = scmp.ne.s32.totalorder %s440, %s441
      %p455 = scmp.eq.s32.totalorder %s53, 1
      %p456 = por %p454, %p455
      %p458 = scmp.ne.s32.totalorder %s441, %s457
      %p459 = scmp.eq.s32.totalorder %s53, 0
      %p460 = por %p458, %p459
      %s461 = ssub.s32 %s47, %s54
      %p462 = scmp.eq.s32.totalorder %s461, 0
      %s464 = sadd.s32 %s463, 1
      %s465 = scalar_select %p462, %s463, %s464
      %p468 = pneg %p462
      %p469 = scmp.eq.s32.totalorder %s47, 1
      %p470 = por %p468, %p469
      %p471 = scmp.ne.s32.totalorder %s463, %s466
      %p472 = scmp.eq.s32.totalorder %s47, 0
      %p473 = por %p471, %p472
      %p474 = scmp.ne.s32.totalorder %s463, %s466
      %p475 = scmp.eq.s32.totalorder %s52, 1
      %p476 = por %p474, %p475
      %p477 = scmp.ne.s32.totalorder %s466, %s467
      %p478 = scmp.eq.s32.totalorder %s52, 0
      %p479 = por %p477, %p478
      %p480 = scmp.ne.s32.totalorder %s466, %s467
      %p481 = scmp.eq.s32.totalorder %s53, 1
      %p482 = por %p480, %p481
      %p484 = scmp.ne.s32.totalorder %s467, %s483
      %p485 = scmp.eq.s32.totalorder %s53, 0
      %p486 = por %p484, %p485
      %s487 = ssub.s32 %s47, %s54
      %p488 = scmp.eq.s32.totalorder %s487, 0
      %s490 = sadd.s32 %s489, 1
      %s491 = scalar_select %p488, %s489, %s490
      %p494 = pneg %p488
      %p495 = scmp.eq.s32.totalorder %s47, 1
      %p496 = por %p494, %p495
      %p497 = scmp.ne.s32.totalorder %s489, %s492
      %p498 = scmp.eq.s32.totalorder %s47, 0
      %p499 = por %p497, %p498
      %p500 = scmp.ne.s32.totalorder %s489, %s492
      %p501 = scmp.eq.s32.totalorder %s52, 1
      %p502 = por %p500, %p501
      %p503 = scmp.ne.s32.totalorder %s492, %s493
      %p504 = scmp.eq.s32.totalorder %s52, 0
      %p505 = por %p503, %p504
      %p506 = scmp.ne.s32.totalorder %s492, %s493
      %p507 = scmp.eq.s32.totalorder %s53, 1
      %p508 = por %p506, %p507
      %p510 = scmp.ne.s32.totalorder %s493, %s509
      %p511 = scmp.eq.s32.totalorder %s53, 0
      %p512 = por %p510, %p511
      %p513 = scmp.le.s32.totalorder 1, %s47
      %p514 = scmp.lt.s32.totalorder %s47, 3
      %p515 = pnand %p513, %p514
      %p516 = pneg %p515
      // Predicated region
      $region9: #{forward.1} parent=5 // pred_check
        _
      $region10: #{forward.1} parent=5 // pred_check_branch
        %518 = sbr.rel (%p515) target = $region12
      $region11: #{forward.1} parent=5 // pred_region
        %s519 = ssub.s32 %s47, 1
        // Predicated region
        $region13: #{forward.1} parent=11 // pred_check
          %p520 = pneg %p68
        $region14: #{forward.1} parent=11 // pred_check_branch
          %522 = sbr.rel (%p520) target = $region16
        $region15: #{forward.1} parent=11 // pred_region
          _
        $region16: #{forward.1} parent=11 // pred_fallthru
          _
        // Predicated region
        $region17: #{forward.1} parent=11 // pred_check
          %p523 = pneg %p89
        $region18: #{forward.1} parent=11 // pred_check_branch
          %525 = sbr.rel (%p523) target = $region20
        $region19: #{forward.1} parent=11 // pred_region
          _
        $region20: #{forward.1} parent=11 // pred_fallthru
          _
      $region12: #{forward.1} parent=5 // pred_fallthru
        _
      %p526 = scmp.lt.s32.totalorder %s47, 2
      // Predicated region
      $region21: #{forward.1} parent=5 // pred_check
        %p527 = pneg %p526
      $region22: #{forward.1} parent=5 // pred_check_branch
        %529 = sbr.rel (%p527) target = $region24
      $region23: #{forward.1} parent=5 // pred_region
        // Predicated region
        $region25: #{forward.1} parent=23 // pred_check
          %p530 = pneg %p109
        $region26: #{forward.1} parent=23 // pred_check_branch
          %532 = sbr.rel (%p530) target = $region28
        $region27: #{forward.1} parent=23 // pred_region
          %s533 = sand.u32 %s99, 1
          %s534 = scalar_lea.sflag [#allocation3], %s533
          %s535 = sand.u32 %s99, 1
          %s536 = smul.addr %s535, 240
          %s537 = scalar_lea.vmem [#allocation2], %s536
          %s539 = ssub.s32 3840, 3840
          %540 = vsyncadd %s534, %s539
          %s541 = smul.addr %s47, 60
          %s542 = smul.addr %s541, 64
          %s543 = scalar_lea.hbm %s2, %s542
          %s544 = sshll.u32 %s537, 4
          %s545 = int_to_ptr.vmem [resolvable:$true] %s544
          %550 = dma.hbm_to_vmem [thread:$0]  %s543, 3840, %s545, %s534, 640, 640, 40
        $region28: #{forward.1} parent=23 // pred_fallthru
          _
        // Predicated region
        $region29: #{forward.1} parent=23 // pred_check
          %p551 = pneg %p135
        $region30: #{forward.1} parent=23 // pred_check_branch
          %553 = sbr.rel (%p551) target = $region32
        $region31: #{forward.1} parent=23 // pred_region
          %s554 = sand.u32 %s47, 1
          %s555 = scalar_lea.sflag [#allocation5], %s554
          %s556 = sand.u32 %s125, 1
          %s557 = smul.addr %s556, 10
          %s558 = scalar_lea.vmem [#allocation4], %s557
          %s560 = ssub.s32 160, 160
          %561 = vsyncadd %s555, %s560
          %s562 = smul.addr %s47, 10
          %s563 = smul.addr %s562, 16
          %s564 = scalar_lea.hbm %s3, %s563
          %s566 = sshll.u32 %s558, 4
          %s567 = int_to_ptr.vmem [resolvable:$true] %s566
          %569 = dma.hbm_to_vmem [thread:$0]  %s564, 160, %s567, %s555
        $region32: #{forward.1} parent=23 // pred_fallthru
          _
        // Predicated region
        $region33: #{forward.1} parent=23 // pred_check
          %p570 = pneg %p161
        $region34: #{forward.1} parent=23 // pred_check_branch
          %572 = sbr.rel (%p570) target = $region36
        $region35: #{forward.1} parent=23 // pred_region
          %s573 = sand.u32 %s47, 1
          %s574 = scalar_lea.sflag [#allocation5], %s573
          %s575 = sand.u32 %s151, 1
          %s576 = smul.addr %s575, 2560
          %s577 = scalar_lea.vmem [#allocation6], %s576
          %s579 = ssub.s32 40960, 40960
          %580 = vsyncadd %s574, %s579
          %s581 = smul.addr %s47, 320
          %s582 = smul.addr %s581, 128
          %s583 = scalar_lea.hbm %s4, %s582
          %s584 = sshll.u32 %s577, 4
          %s585 = int_to_ptr.vmem [resolvable:$true] %s584
          %590 = dma.hbm_to_vmem [thread:$0]  %s583, 40960, %s585, %s574, 1024, 1024, 64
        $region36: #{forward.1} parent=23 // pred_fallthru
          _
        // Predicated region
        $region37: #{forward.1} parent=23 // pred_check
          %p591 = pneg %p187
        $region38: #{forward.1} parent=23 // pred_check_branch
          %593 = sbr.rel (%p591) target = $region40
        $region39: #{forward.1} parent=23 // pred_region
          %s594 = sand.u32 %s47, 1
          %s595 = scalar_lea.sflag [#allocation8], %s594
          %s596 = sand.u32 %s177, 1
          %s597 = smul.addr %s596, 8
          %s598 = scalar_lea.vmem [#allocation7], %s597
          %s600 = ssub.s32 128, 128
          %601 = vsyncadd %s595, %s600
          %s602 = smul.addr %s47, 8
          %s603 = smul.addr %s602, 16
          %s604 = scalar_lea.hbm %s5, %s603
          %s606 = sshll.u32 %s598, 4
          %s607 = int_to_ptr.vmem [resolvable:$true] %s606
          %609 = dma.hbm_to_vmem [thread:$0]  %s604, 128, %s607, %s595
        $region40: #{forward.1} parent=23 // pred_fallthru
          _
        // Predicated region
        $region41: #{forward.1} parent=23 // pred_check
          %p610 = pneg %p213
        $region42: #{forward.1} parent=23 // pred_check_branch
          %612 = sbr.rel (%p610) target = $region44
        $region43: #{forward.1} parent=23 // pred_region
          %s613 = sand.u32 %s47, 1
          %s614 = scalar_lea.sflag [#allocation8], %s613
          %s615 = sand.u32 %s203, 1
          %s616 = smul.addr %s615, 8
          %s617 = scalar_lea.vmem [#allocation9], %s616
          %s619 = ssub.s32 128, 128
          %620 = vsyncadd %s614, %s619
          %s621 = smul.addr %s47, 8
          %s622 = smul.addr %s621, 16
          %s623 = scalar_lea.hbm %s6, %s622
          %s625 = sshll.u32 %s617, 4
          %s626 = int_to_ptr.vmem [resolvable:$true] %s625
          %628 = dma.hbm_to_vmem [thread:$0]  %s623, 128, %s626, %s614
        $region44: #{forward.1} parent=23 // pred_fallthru
          _
        // Predicated region
        $region45: #{forward.1} parent=23 // pred_check
          %p629 = pneg %p239
        $region46: #{forward.1} parent=23 // pred_check_branch
          %631 = sbr.rel (%p629) target = $region48
        $region47: #{forward.1} parent=23 // pred_region
          %s632 = sand.u32 %s47, 1
          %s633 = scalar_lea.sflag [#allocation11], %s632
          %s634 = sand.u32 %s229, 1
          %s635 = smul.addr %s634, 8
          %s636 = scalar_lea.vmem [#allocation10], %s635
          %s638 = ssub.s32 128, 128
          %639 = vsyncadd %s633, %s638
          %s640 = smul.addr %s47, 2
          %s641 = smul.addr %s640, 64
          %s642 = scalar_lea.hbm %s7, %s641
          %s643 = sshll.u32 %s636, 4
          %s644 = int_to_ptr.vmem [resolvable:$true] %s643
          %649 = dma.hbm_to_vmem [thread:$0]  %s642, 128, %s644, %s633, 64, 64, 4
        $region48: #{forward.1} parent=23 // pred_fallthru
          _
        // Predicated region
        $region49: #{forward.1} parent=23 // pred_check
          %p650 = pneg %p265
        $region50: #{forward.1} parent=23 // pred_check_branch
          %652 = sbr.rel (%p650) target = $region52
        $region51: #{forward.1} parent=23 // pred_region
          %s653 = sand.u32 %s47, 1
          %s654 = scalar_lea.sflag [#allocation11], %s653
          %s655 = sand.u32 %s255, 1
          %s656 = scalar_lea.vmem [#allocation12], %s655
          %s658 = ssub.s32 16, 16
          %659 = vsyncadd %s654, %s658
          %s660 = smul.addr %s47, 16
          %s661 = scalar_lea.hbm %s8, %s660
          %s663 = sshll.u32 %s656, 4
          %s664 = int_to_ptr.vmem [resolvable:$true] %s663
          %666 = dma.hbm_to_vmem [thread:$0]  %s661, 16, %s664, %s654
        $region52: #{forward.1} parent=23 // pred_fallthru
          _
        // Predicated region
        $region53: #{forward.1} parent=23 // pred_check
          %p667 = pneg %p291
        $region54: #{forward.1} parent=23 // pred_check_branch
          %669 = sbr.rel (%p667) target = $region56
        $region55: #{forward.1} parent=23 // pred_region
          %s670 = sand.u32 %s47, 1
          %s671 = scalar_lea.sflag [#allocation14], %s670
          %s672 = sand.u32 %s281, 1
          %s673 = smul.addr %s672, 128
          %s674 = scalar_lea.vmem [#allocation13], %s673
          %s676 = ssub.s32 2048, 2048
          %677 = vsyncadd %s671, %s676
          %s678 = smul.addr %s47, 32
          %s679 = smul.addr %s678, 64
          %s680 = scalar_lea.hbm %s9, %s679
          %s681 = sshll.u32 %s674, 4
          %s682 = int_to_ptr.vmem [resolvable:$true] %s681
          %687 = dma.hbm_to_vmem [thread:$0]  %s680, 2048, %s682, %s671, 128, 128, 8
        $region56: #{forward.1} parent=23 // pred_fallthru
          _
        // Predicated region
        $region57: #{forward.1} parent=23 // pred_check
          %p688 = pneg %p317
        $region58: #{forward.1} parent=23 // pred_check_branch
          %690 = sbr.rel (%p688) target = $region60
        $region59: #{forward.1} parent=23 // pred_region
          %s691 = sand.u32 %s47, 1
          %s692 = scalar_lea.sflag [#allocation14], %s691
          %s693 = sand.u32 %s307, 1
          %s694 = smul.addr %s693, 2
          %s695 = scalar_lea.vmem [#allocation15], %s694
          %s697 = ssub.s32 32, 32
          %698 = vsyncadd %s692, %s697
          %s699 = smul.addr %s47, 2
          %s700 = smul.addr %s699, 16
          %s701 = scalar_lea.hbm %s10, %s700
          %s703 = sshll.u32 %s695, 4
          %s704 = int_to_ptr.vmem [resolvable:$true] %s703
          %706 = dma.hbm_to_vmem [thread:$0]  %s701, 32, %s704, %s692
        $region60: #{forward.1} parent=23 // pred_fallthru
          _
        // Predicated region
        $region61: #{forward.1} parent=23 // pred_check
          %p707 = pneg %p343
        $region62: #{forward.1} parent=23 // pred_check_branch
          %709 = sbr.rel (%p707) target = $region64
        $region63: #{forward.1} parent=23 // pred_region
          %s710 = sand.u32 %s47, 1
          %s711 = scalar_lea.sflag [#allocation17], %s710
          %s712 = sand.u32 %s333, 1
          %s713 = smul.addr %s712, 512
          %s714 = scalar_lea.vmem [#allocation16], %s713
          %s716 = ssub.s32 8192, 8192
          %717 = vsyncadd %s711, %s716
          %s718 = smul.addr %s47, 64
          %s719 = smul.addr %s718, 128
          %s720 = scalar_lea.hbm %s11, %s719
          %s721 = sshll.u32 %s714, 4
          %s722 = int_to_ptr.vmem [resolvable:$true] %s721
          %727 = dma.hbm_to_vmem [thread:$0]  %s720, 8192, %s722, %s711, 256, 256, 16
        $region64: #{forward.1} parent=23 // pred_fallthru
          _
        // Predicated region
        $region65: #{forward.1} parent=23 // pred_check
          %p728 = pneg %p369
        $region66: #{forward.1} parent=23 // pred_check_branch
          %730 = sbr.rel (%p728) target = $region68
        $region67: #{forward.1} parent=23 // pred_region
          %s731 = sand.u32 %s47, 1
          %s732 = scalar_lea.sflag [#allocation17], %s731
          %s733 = sand.u32 %s359, 1
          %s734 = smul.addr %s733, 2
          %s735 = scalar_lea.vmem [#allocation18], %s734
          %s737 = ssub.s32 32, 32
          %738 = vsyncadd %s732, %s737
          %s739 = smul.addr %s47, 2
          %s740 = smul.addr %s739, 16
          %s741 = scalar_lea.hbm %s12, %s740
          %s743 = sshll.u32 %s735, 4
          %s744 = int_to_ptr.vmem [resolvable:$true] %s743
          %746 = dma.hbm_to_vmem [thread:$0]  %s741, 32, %s744, %s732
        $region68: #{forward.1} parent=23 // pred_fallthru
          _
        // Predicated region
        $region69: #{forward.1} parent=23 // pred_check
          %p747 = pneg %p395
        $region70: #{forward.1} parent=23 // pred_check_branch
          %749 = sbr.rel (%p747) target = $region72
        $region71: #{forward.1} parent=23 // pred_region
          %s750 = sand.u32 %s47, 1
          %s751 = scalar_lea.sflag [#allocation20], %s750
          %s752 = sand.u32 %s385, 1
          %s753 = smul.addr %s752, 256
          %s754 = scalar_lea.vmem [#allocation19], %s753
          %s756 = ssub.s32 4096, 4096
          %757 = vsyncadd %s751, %s756
          %s758 = smul.addr %s47, 64
          %s759 = smul.addr %s758, 64
          %s760 = scalar_lea.hbm %s13, %s759
          %s761 = sshll.u32 %s754, 4
          %s762 = int_to_ptr.vmem [resolvable:$true] %s761
          %767 = dma.hbm_to_vmem [thread:$0]  %s760, 4096, %s762, %s751, 128, 128, 8
        $region72: #{forward.1} parent=23 // pred_fallthru
          _
        // Predicated region
        $region73: #{forward.1} parent=23 // pred_check
          %p768 = pneg %p421
        $region74: #{forward.1} parent=23 // pred_check_branch
          %770 = sbr.rel (%p768) target = $region76
        $region75: #{forward.1} parent=23 // pred_region
          %s771 = sand.u32 %s47, 1
          %s772 = scalar_lea.sflag [#allocation20], %s771
          %s773 = sand.u32 %s411, 1
          %s774 = smul.addr %s773, 2
          %s775 = scalar_lea.vmem [#allocation21], %s774
          %s777 = ssub.s32 32, 32
          %778 = vsyncadd %s772, %s777
          %s779 = smul.addr %s47, 2
          %s780 = smul.addr %s779, 16
          %s781 = scalar_lea.hbm %s14, %s780
          %s783 = sshll.u32 %s775, 4
          %s784 = int_to_ptr.vmem [resolvable:$true] %s783
          %786 = dma.hbm_to_vmem [thread:$0]  %s781, 32, %s784, %s772
        $region76: #{forward.1} parent=23 // pred_fallthru
          _
        // Predicated region
        $region77: #{forward.1} parent=23 // pred_check
          %p787 = pneg %p447
        $region78: #{forward.1} parent=23 // pred_check_branch
          %789 = sbr.rel (%p787) target = $region80
        $region79: #{forward.1} parent=23 // pred_region
          %s790 = sand.u32 %s47, 1
          %s791 = scalar_lea.sflag [#allocation23], %s790
          %s792 = sand.u32 %s437, 1
          %s793 = smul.addr %s792, 128
          %s794 = scalar_lea.vmem [#allocation22], %s793
          %s796 = ssub.s32 2048, 2048
          %797 = vsyncadd %s791, %s796
          %s798 = smul.addr %s47, 32
          %s799 = smul.addr %s798, 64
          %s800 = scalar_lea.hbm %s15, %s799
          %s801 = sshll.u32 %s794, 4
          %s802 = int_to_ptr.vmem [resolvable:$true] %s801
          %807 = dma.hbm_to_vmem [thread:$0]  %s800, 2048, %s802, %s791, 64, 64, 4
        $region80: #{forward.1} parent=23 // pred_fallthru
          _
        // Predicated region
        $region81: #{forward.1} parent=23 // pred_check
          %p808 = pneg %p473
        $region82: #{forward.1} parent=23 // pred_check_branch
          %810 = sbr.rel (%p808) target = $region84
        $region83: #{forward.1} parent=23 // pred_region
          %s811 = sand.u32 %s47, 1
          %s812 = scalar_lea.sflag [#allocation23], %s811
          %s813 = sand.u32 %s463, 1
          %s814 = scalar_lea.vmem [#allocation24], %s813
          %s816 = ssub.s32 16, 16
          %817 = vsyncadd %s812, %s816
          %s818 = smul.addr %s47, 16
          %s819 = scalar_lea.hbm %s16, %s818
          %s821 = sshll.u32 %s814, 4
          %s822 = int_to_ptr.vmem [resolvable:$true] %s821
          %824 = dma.hbm_to_vmem [thread:$0]  %s819, 16, %s822, %s812
        $region84: #{forward.1} parent=23 // pred_fallthru
          _
      $region24: #{forward.1} parent=5 // pred_fallthru
        _
      %p825 = scmp.le.s32.totalorder 1, %s47
      %p826 = scmp.lt.s32.totalorder %s47, 3
      %p827 = pnand %p825, %p826
      %p828 = pneg %p827
      // Predicated region
      $region85: #{forward.1} parent=5 // pred_check
        _
      $region86: #{forward.1} parent=5 // pred_check_branch
        %830 = sbr.rel (%p827) target = $region88
      $region87: #{forward.1} parent=5 // pred_region
        %s831 = ssub.s32 %s47, 1
        %s832 = sand.u32 %s102, 1
        %s833 = scalar_lea.sflag [#allocation3], %s832
        %s834 = sand.u32 %s102, 1
        %s835 = smul.addr %s834, 240
        %s836 = scalar_lea.vmem [#allocation2], %s835
        // Predicated region
        $region89: #{forward.1} parent=87 // pred_check
          %p837 = pneg %p115
        $region90: #{forward.1} parent=87 // pred_check_branch
          %839 = sbr.rel (%p837) target = $region92
        $region91: #{forward.1} parent=87 // pred_region
          %840 = dma.done %s833, 3840
        $region92: #{forward.1} parent=87 // pred_fallthru
          _
        %s841 = sand.u32 %s52, 1
        %s842 = scalar_lea.sflag [#allocation5], %s841
        %s843 = sand.u32 %s128, 1
        %s844 = smul.addr %s843, 10
        %s845 = scalar_lea.vmem [#allocation4], %s844
        // Predicated region
        $region93: #{forward.1} parent=87 // pred_check
          %p846 = pneg %p141
        $region94: #{forward.1} parent=87 // pred_check_branch
          %848 = sbr.rel (%p846) target = $region96
        $region95: #{forward.1} parent=87 // pred_region
          %849 = dma.done %s842, 160
        $region96: #{forward.1} parent=87 // pred_fallthru
          _
        %s850 = sand.u32 %s52, 1
        %s851 = scalar_lea.sflag [#allocation5], %s850
        %s852 = sand.u32 %s154, 1
        %s853 = smul.addr %s852, 2560
        %s854 = scalar_lea.vmem [#allocation6], %s853
        // Predicated region
        $region97: #{forward.1} parent=87 // pred_check
          %p855 = pneg %p167
        $region98: #{forward.1} parent=87 // pred_check_branch
          %857 = sbr.rel (%p855) target = $region100
        $region99: #{forward.1} parent=87 // pred_region
          %858 = dma.done %s851, 40960
        $region100: #{forward.1} parent=87 // pred_fallthru
          _
        %s859 = sand.u32 %s52, 1
        %s860 = scalar_lea.sflag [#allocation8], %s859
        %s861 = sand.u32 %s180, 1
        %s862 = smul.addr %s861, 8
        %s863 = scalar_lea.vmem [#allocation7], %s862
        // Predicated region
        $region101: #{forward.1} parent=87 // pred_check
          %p864 = pneg %p193
        $region102: #{forward.1} parent=87 // pred_check_branch
          %866 = sbr.rel (%p864) target = $region104
        $region103: #{forward.1} parent=87 // pred_region
          %867 = dma.done %s860, 128
        $region104: #{forward.1} parent=87 // pred_fallthru
          _
        %s868 = sand.u32 %s52, 1
        %s869 = scalar_lea.sflag [#allocation8], %s868
        %s870 = sand.u32 %s206, 1
        %s871 = smul.addr %s870, 8
        %s872 = scalar_lea.vmem [#allocation9], %s871
        // Predicated region
        $region105: #{forward.1} parent=87 // pred_check
          %p873 = pneg %p219
        $region106: #{forward.1} parent=87 // pred_check_branch
          %875 = sbr.rel (%p873) target = $region108
        $region107: #{forward.1} parent=87 // pred_region
          %876 = dma.done %s869, 128
        $region108: #{forward.1} parent=87 // pred_fallthru
          _
        %s877 = sand.u32 %s52, 1
        %s878 = scalar_lea.sflag [#allocation11], %s877
        %s879 = sand.u32 %s232, 1
        %s880 = smul.addr %s879, 8
        %s881 = scalar_lea.vmem [#allocation10], %s880
        // Predicated region
        $region109: #{forward.1} parent=87 // pred_check
          %p882 = pneg %p245
        $region110: #{forward.1} parent=87 // pred_check_branch
          %884 = sbr.rel (%p882) target = $region112
        $region111: #{forward.1} parent=87 // pred_region
          %885 = dma.done %s878, 128
        $region112: #{forward.1} parent=87 // pred_fallthru
          _
        %s886 = sand.u32 %s52, 1
        %s887 = scalar_lea.sflag [#allocation11], %s886
        %s888 = sand.u32 %s258, 1
        %s889 = scalar_lea.vmem [#allocation12], %s888
        // Predicated region
        $region113: #{forward.1} parent=87 // pred_check
          %p890 = pneg %p271
        $region114: #{forward.1} parent=87 // pred_check_branch
          %892 = sbr.rel (%p890) target = $region116
        $region115: #{forward.1} parent=87 // pred_region
          %893 = dma.done %s887, 16
        $region116: #{forward.1} parent=87 // pred_fallthru
          _
        %s894 = sand.u32 %s52, 1
        %s895 = scalar_lea.sflag [#allocation14], %s894
        %s896 = sand.u32 %s284, 1
        %s897 = smul.addr %s896, 128
        %s898 = scalar_lea.vmem [#allocation13], %s897
        // Predicated region
        $region117: #{forward.1} parent=87 // pred_check
          %p899 = pneg %p297
        $region118: #{forward.1} parent=87 // pred_check_branch
          %901 = sbr.rel (%p899) target = $region120
        $region119: #{forward.1} parent=87 // pred_region
          %902 = dma.done %s895, 2048
        $region120: #{forward.1} parent=87 // pred_fallthru
          _
        %s903 = sand.u32 %s52, 1
        %s904 = scalar_lea.sflag [#allocation14], %s903
        %s905 = sand.u32 %s310, 1
        %s906 = smul.addr %s905, 2
        %s907 = scalar_lea.vmem [#allocation15], %s906
        // Predicated region
        $region121: #{forward.1} parent=87 // pred_check
          %p908 = pneg %p323
        $region122: #{forward.1} parent=87 // pred_check_branch
          %910 = sbr.rel (%p908) target = $region124
        $region123: #{forward.1} parent=87 // pred_region
          %911 = dma.done %s904, 32
        $region124: #{forward.1} parent=87 // pred_fallthru
          _
        %s912 = sand.u32 %s52, 1
        %s913 = scalar_lea.sflag [#allocation17], %s912
        %s914 = sand.u32 %s336, 1
        %s915 = smul.addr %s914, 512
        %s916 = scalar_lea.vmem [#allocation16], %s915
        // Predicated region
        $region125: #{forward.1} parent=87 // pred_check
          %p917 = pneg %p349
        $region126: #{forward.1} parent=87 // pred_check_branch
          %919 = sbr.rel (%p917) target = $region128
        $region127: #{forward.1} parent=87 // pred_region
          %920 = dma.done %s913, 8192
        $region128: #{forward.1} parent=87 // pred_fallthru
          _
        %s921 = sand.u32 %s52, 1
        %s922 = scalar_lea.sflag [#allocation17], %s921
        %s923 = sand.u32 %s362, 1
        %s924 = smul.addr %s923, 2
        %s925 = scalar_lea.vmem [#allocation18], %s924
        // Predicated region
        $region129: #{forward.1} parent=87 // pred_check
          %p926 = pneg %p375
        $region130: #{forward.1} parent=87 // pred_check_branch
          %928 = sbr.rel (%p926) target = $region132
        $region131: #{forward.1} parent=87 // pred_region
          %929 = dma.done %s922, 32
        $region132: #{forward.1} parent=87 // pred_fallthru
          _
        %s930 = sand.u32 %s52, 1
        %s931 = scalar_lea.sflag [#allocation20], %s930
        %s932 = sand.u32 %s388, 1
        %s933 = smul.addr %s932, 256
        %s934 = scalar_lea.vmem [#allocation19], %s933
        // Predicated region
        $region133: #{forward.1} parent=87 // pred_check
          %p935 = pneg %p401
        $region134: #{forward.1} parent=87 // pred_check_branch
          %937 = sbr.rel (%p935) target = $region136
        $region135: #{forward.1} parent=87 // pred_region
          %938 = dma.done %s931, 4096
        $region136: #{forward.1} parent=87 // pred_fallthru
          _
        %s939 = sand.u32 %s52, 1
        %s940 = scalar_lea.sflag [#allocation20], %s939
        %s941 = sand.u32 %s414, 1
        %s942 = smul.addr %s941, 2
        %s943 = scalar_lea.vmem [#allocation21], %s942
        // Predicated region
        $region137: #{forward.1} parent=87 // pred_check
          %p944 = pneg %p427
        $region138: #{forward.1} parent=87 // pred_check_branch
          %946 = sbr.rel (%p944) target = $region140
        $region139: #{forward.1} parent=87 // pred_region
          %947 = dma.done %s940, 32
        $region140: #{forward.1} parent=87 // pred_fallthru
          _
        %s948 = sand.u32 %s52, 1
        %s949 = scalar_lea.sflag [#allocation23], %s948
        %s950 = sand.u32 %s440, 1
        %s951 = smul.addr %s950, 128
        %s952 = scalar_lea.vmem [#allocation22], %s951
        // Predicated region
        $region141: #{forward.1} parent=87 // pred_check
          %p953 = pneg %p453
        $region142: #{forward.1} parent=87 // pred_check_branch
          %955 = sbr.rel (%p953) target = $region144
        $region143: #{forward.1} parent=87 // pred_region
          %956 = dma.done %s949, 2048
        $region144: #{forward.1} parent=87 // pred_fallthru
          _
        %s957 = sand.u32 %s52, 1
        %s958 = scalar_lea.sflag [#allocation23], %s957
        %s959 = sand.u32 %s466, 1
        %s960 = scalar_lea.vmem [#allocation24], %s959
        // Predicated region
        $region145: #{forward.1} parent=87 // pred_check
          %p961 = pneg %p479
        $region146: #{forward.1} parent=87 // pred_check_branch
          %963 = sbr.rel (%p961) target = $region148
        $region147: #{forward.1} parent=87 // pred_region
          %964 = dma.done %s958, 16
        $region148: #{forward.1} parent=87 // pred_fallthru
          _
        %p965 = pneg %p68
        %p966 = pneg %p65
        %p967 = pneg %p89
        %p968 = pneg %p86
        %s969 = sand.u32 %s102, 1
        %s970 = scalar_lea.sflag [#allocation3], %s969
        %s971 = sand.u32 %s102, 1
        %s972 = smul.addr %s971, 240
        %s973 = scalar_lea.vmem [#allocation2], %s972
        %p974 = pneg %p115
        %p975 = pneg %p112
        %s976 = sand.u32 %s52, 1
        %s977 = scalar_lea.sflag [#allocation5], %s976
        %s978 = sand.u32 %s128, 1
        %s979 = smul.addr %s978, 10
        %s980 = scalar_lea.vmem [#allocation4], %s979
        %p981 = pneg %p141
        %p982 = pneg %p138
        %s983 = sand.u32 %s52, 1
        %s984 = scalar_lea.sflag [#allocation5], %s983
        %s985 = sand.u32 %s154, 1
        %s986 = smul.addr %s985, 2560
        %s987 = scalar_lea.vmem [#allocation6], %s986
        %p988 = pneg %p167
        %p989 = pneg %p164
        %s990 = sand.u32 %s52, 1
        %s991 = scalar_lea.sflag [#allocation8], %s990
        %s992 = sand.u32 %s180, 1
        %s993 = smul.addr %s992, 8
        %s994 = scalar_lea.vmem [#allocation7], %s993
        %p995 = pneg %p193
        %p996 = pneg %p190
        %s997 = sand.u32 %s52, 1
        %s998 = scalar_lea.sflag [#allocation8], %s997
        %s999 = sand.u32 %s206, 1
        %s1000 = smul.addr %s999, 8
        %s1001 = scalar_lea.vmem [#allocation9], %s1000
        %p1002 = pneg %p219
        %p1003 = pneg %p216
        %s1004 = sand.u32 %s52, 1
        %s1005 = scalar_lea.sflag [#allocation11], %s1004
        %s1006 = sand.u32 %s232, 1
        %s1007 = smul.addr %s1006, 8
        %s1008 = scalar_lea.vmem [#allocation10], %s1007
        %p1009 = pneg %p245
        %p1010 = pneg %p242
        %s1011 = sand.u32 %s52, 1
        %s1012 = scalar_lea.sflag [#allocation11], %s1011
        %s1013 = sand.u32 %s258, 1
        %s1014 = scalar_lea.vmem [#allocation12], %s1013
        %p1015 = pneg %p271
        %p1016 = pneg %p268
        %s1017 = sand.u32 %s52, 1
        %s1018 = scalar_lea.sflag [#allocation14], %s1017
        %s1019 = sand.u32 %s284, 1
        %s1020 = smul.addr %s1019, 128
        %s1021 = scalar_lea.vmem [#allocation13], %s1020
        %p1022 = pneg %p297
        %p1023 = pneg %p294
        %s1024 = sand.u32 %s52, 1
        %s1025 = scalar_lea.sflag [#allocation14], %s1024
        %s1026 = sand.u32 %s310, 1
        %s1027 = smul.addr %s1026, 2
        %s1028 = scalar_lea.vmem [#allocation15], %s1027
        %p1029 = pneg %p323
        %p1030 = pneg %p320
        %s1031 = sand.u32 %s52, 1
        %s1032 = scalar_lea.sflag [#allocation17], %s1031
        %s1033 = sand.u32 %s336, 1
        %s1034 = smul.addr %s1033, 512
        %s1035 = scalar_lea.vmem [#allocation16], %s1034
        %p1036 = pneg %p349
        %p1037 = pneg %p346
        %s1038 = sand.u32 %s52, 1
        %s1039 = scalar_lea.sflag [#allocation17], %s1038
        %s1040 = sand.u32 %s362, 1
        %s1041 = smul.addr %s1040, 2
        %s1042 = scalar_lea.vmem [#allocation18], %s1041
        %p1043 = pneg %p375
        %p1044 = pneg %p372
        %s1045 = sand.u32 %s52, 1
        %s1046 = scalar_lea.sflag [#allocation20], %s1045
        %s1047 = sand.u32 %s388, 1
        %s1048 = smul.addr %s1047, 256
        %s1049 = scalar_lea.vmem [#allocation19], %s1048
        %p1050 = pneg %p401
        %p1051 = pneg %p398
        %s1052 = sand.u32 %s52, 1
        %s1053 = scalar_lea.sflag [#allocation20], %s1052
        %s1054 = sand.u32 %s414, 1
        %s1055 = smul.addr %s1054, 2
        %s1056 = scalar_lea.vmem [#allocation21], %s1055
        %p1057 = pneg %p427
        %p1058 = pneg %p424
        %s1059 = sand.u32 %s52, 1
        %s1060 = scalar_lea.sflag [#allocation23], %s1059
        %s1061 = sand.u32 %s440, 1
        %s1062 = smul.addr %s1061, 128
        %s1063 = scalar_lea.vmem [#allocation22], %s1062
        %p1064 = pneg %p453
        %p1065 = pneg %p450
        %s1066 = sand.u32 %s52, 1
        %s1067 = scalar_lea.sflag [#allocation23], %s1066
        %s1068 = sand.u32 %s466, 1
        %s1069 = scalar_lea.vmem [#allocation24], %s1068
        %p1070 = pneg %p479
        %p1071 = pneg %p476
        %p1072 = pneg %p505
        %p1073 = pneg %p502
        %p1074 = scmp.lt.s32.totalorder %s52, 1
        %s1075 = scalar_select %p1074, %s52, 1
        %s1076 = smul.addr %s1075, 8
        %s1077 = scalar_lea.vmem %s17, %s1076
        %p1078 = scmp.lt.s32.totalorder %s52, 1
        %s1079 = scalar_select %p1078, %s52, 1
        %s1080 = smul.addr %s1079, 8
        %s1081 = scalar_lea.vmem %s17, %s1080
        %v1083 = vld [vmem:[%s0] sm:$0xff]
        %v1084 = vpack.c.bf16 %v1083, %v1083
        %v1085 = vld [vmem:[%s836] sm:$0xff]
        %v1086 = vld [vmem:[%s836 + $0x8] sm:$0xff]
        %v1087 = vld [vmem:[%s836 + $0x10] sm:$0xff]
        %v1088 = vld [vmem:[%s836 + $0x18] sm:$0xff]
        %v1089 = vld [vmem:[%s836 + $0x20] sm:$0xff]
        %v1090 = vld [vmem:[%s836 + $0x28] sm:$0xff]
        %v1091 = vld [vmem:[%s836 + $0x30] sm:$0xff]
        %v1092 = vld [vmem:[%s836 + $0x38] sm:$0xff]
        %v1093 = vld [vmem:[%s836 + $0x40] sm:$0xff]
        %v1094 = vld [vmem:[%s836 + $0x48] sm:$0xff]
        %v1095 = vld [vmem:[%s836 + $0x50] sm:$0xff]
        %v1096 = vld [vmem:[%s836 + $0x58] sm:$0xff]
        %v1097 = vld [vmem:[%s836 + $0x60] sm:$0xff]
        %v1098 = vld [vmem:[%s836 + $0x68] sm:$0xff]
        %v1099 = vld [vmem:[%s836 + $0x70] sm:$0xff]
        %v1100 = vld [vmem:[%s836 + $0x78] sm:$0xff]
        %v1101 = vld [vmem:[%s836 + $0x80] sm:$0xff]
        %v1102 = vld [vmem:[%s836 + $0x88] sm:$0xff]
        %v1103 = vld [vmem:[%s836 + $0x90] sm:$0xff]
        %v1104 = vld [vmem:[%s836 + $0x98] sm:$0xff]
        %v1105 = vld [vmem:[%s836 + $0xa0] sm:$0xff]
        %v1106 = vld [vmem:[%s836 + $0xa8] sm:$0xff]
        %v1107 = vld [vmem:[%s836 + $0xb0] sm:$0xff]
        %v1108 = vld [vmem:[%s836 + $0xb8] sm:$0xff]
        %v1109 = vld [vmem:[%s836 + $0xc0] sm:$0xff]
        %v1110 = vld [vmem:[%s836 + $0xc8] sm:$0xff]
        %v1111 = vld [vmem:[%s836 + $0xd0] sm:$0xff]
        %v1112 = vld [vmem:[%s836 + $0xd8] sm:$0xff]
        %v1113 = vld [vmem:[%s836 + $0xe0] sm:$0xff]
        %v1114 = vld [vmem:[%s836 + $0xe8] sm:$0xff]
        %v1115 = vld [vmem:[%s845] sm:$0xff]
        %v1116 = vld [vmem:[%s845 + $0x8] sm:$0x3]
        %v1119 = vlaneseq
        %v1120 = vshrl.u32 %v1119, 7
        %v1121 = vsub.s32 0, %v1120
        %v1122 = vrot.slane %v1115, %v1121
        %v1123 = vlaneseq
        %v1124 = vshrl.u32 %v1123, 7
        %v1125 = vsub.s32 1, %v1124
        %v1126 = vrot.slane %v1115, %v1125
        %v1127 = vlaneseq
        %v1128 = vshrl.u32 %v1127, 7
        %v1129 = vsub.s32 2, %v1128
        %v1130 = vrot.slane %v1115, %v1129
        %v1131 = vlaneseq
        %v1132 = vshrl.u32 %v1131, 7
        %v1133 = vsub.s32 3, %v1132
        %v1134 = vrot.slane %v1115, %v1133
        %v1135 = vlaneseq
        %v1136 = vshrl.u32 %v1135, 7
        %v1137 = vsub.s32 4, %v1136
        %v1138 = vrot.slane %v1115, %v1137
        %v1139 = vlaneseq
        %v1140 = vshrl.u32 %v1139, 7
        %v1141 = vsub.s32 5, %v1140
        %v1142 = vrot.slane %v1115, %v1141
        %v1143 = vlaneseq
        %v1144 = vshrl.u32 %v1143, 7
        %v1145 = vsub.s32 6, %v1144
        %v1146 = vrot.slane %v1115, %v1145
        %v1147 = vlaneseq
        %v1148 = vshrl.u32 %v1147, 7
        %v1149 = vsub.s32 7, %v1148
        %v1150 = vrot.slane %v1115, %v1149
        %v1151 = vlaneseq
        %v1152 = vshrl.u32 %v1151, 7
        %v1153 = vsub.s32 0, %v1152
        %v1154 = vrot.slane %v1116, %v1153
        %v1155 = vlaneseq
        %v1156 = vshrl.u32 %v1155, 7
        %v1157 = vsub.s32 1, %v1156
        %v1158 = vrot.slane %v1116, %v1157
        %v1199 = vunpack.c.l.b16 %v1085
        %v1200 = vunpack.c.h.b16 %v1085
        %v1201 = vunpack.c.l.b16 %v1086
        %v1202 = vunpack.c.h.b16 %v1086
        %v1203 = vunpack.c.l.b16 %v1087
        %v1204 = vunpack.c.h.b16 %v1087
        %v1205 = vunpack.c.l.b16 %v1088
        %v1206 = vunpack.c.h.b16 %v1088
        %v1207 = vunpack.c.l.b16 %v1089
        %v1208 = vunpack.c.h.b16 %v1089
        %v1209 = vunpack.c.l.b16 %v1090
        %v1210 = vunpack.c.h.b16 %v1090
        %v1211 = vunpack.c.l.b16 %v1091
        %v1212 = vunpack.c.h.b16 %v1091
        %v1213 = vunpack.c.l.b16 %v1092
        %v1214 = vunpack.c.h.b16 %v1092
        %v1215 = vunpack.c.l.b16 %v1093
        %v1216 = vunpack.c.h.b16 %v1093
        %v1217 = vunpack.c.l.b16 %v1094
        %v1218 = vunpack.c.h.b16 %v1094
        %v1219 = vunpack.c.l.b16 %v1095
        %v1220 = vunpack.c.h.b16 %v1095
        %v1221 = vunpack.c.l.b16 %v1096
        %v1222 = vunpack.c.h.b16 %v1096
        %v1223 = vunpack.c.l.b16 %v1097
        %v1224 = vunpack.c.h.b16 %v1097
        %v1225 = vunpack.c.l.b16 %v1098
        %v1226 = vunpack.c.h.b16 %v1098
        %v1227 = vunpack.c.l.b16 %v1099
        %v1228 = vunpack.c.h.b16 %v1099
        %v1229 = vunpack.c.l.b16 %v1100
        %v1230 = vunpack.c.h.b16 %v1100
        %v1231 = vunpack.c.l.b16 %v1101
        %v1232 = vunpack.c.h.b16 %v1101
        %v1233 = vunpack.c.l.b16 %v1102
        %v1234 = vunpack.c.h.b16 %v1102
        %v1235 = vunpack.c.l.b16 %v1103
        %v1236 = vunpack.c.h.b16 %v1103
        %v1237 = vunpack.c.l.b16 %v1104
        %v1238 = vunpack.c.h.b16 %v1104
        %v1239 = vunpack.c.l.b16 %v1105
        %v1240 = vunpack.c.h.b16 %v1105
        %v1241 = vunpack.c.l.b16 %v1106
        %v1242 = vunpack.c.h.b16 %v1106
        %v1243 = vunpack.c.l.b16 %v1107
        %v1244 = vunpack.c.h.b16 %v1107
        %v1245 = vunpack.c.l.b16 %v1108
        %v1246 = vunpack.c.h.b16 %v1108
        %v1247 = vunpack.c.l.b16 %v1109
        %v1248 = vunpack.c.h.b16 %v1109
        %v1249 = vunpack.c.l.b16 %v1110
        %v1250 = vunpack.c.h.b16 %v1110
        %v1251 = vunpack.c.l.b16 %v1111
        %v1252 = vunpack.c.h.b16 %v1111
        %v1253 = vunpack.c.l.b16 %v1112
        %v1254 = vunpack.c.h.b16 %v1112
        %v1255 = vunpack.c.l.b16 %v1113
        %v1256 = vunpack.c.h.b16 %v1113
        %v1257 = vunpack.c.l.b16 %v1114
        %v1258 = vunpack.c.h.b16 %v1114
        %v1259 = vpack.c.b16 %v1209, %v1199
        %v1260 = vpack.c.b16 %v1210, %v1200
        %v1261 = vpack.c.b16 %v1211, %v1201
        %v1262 = vpack.c.b16 %v1212, %v1202
        %v1263 = vpack.c.b16 %v1213, %v1203
        %v1264 = vpack.c.b16 %v1214, %v1204
        %v1265 = vpack.c.b16 %v1215, %v1205
        %v1266 = vpack.c.b16 %v1216, %v1206
        %v1267 = vpack.c.b16 %v1217, %v1207
        %v1268 = vpack.c.b16 %v1218, %v1208
        %v1269 = vpack.c.b16 %v1229, %v1219
        %v1270 = vpack.c.b16 %v1230, %v1220
        %v1271 = vpack.c.b16 %v1231, %v1221
        %v1272 = vpack.c.b16 %v1232, %v1222
        %v1273 = vpack.c.b16 %v1233, %v1223
        %v1274 = vpack.c.b16 %v1234, %v1224
        %v1275 = vpack.c.b16 %v1235, %v1225
        %v1276 = vpack.c.b16 %v1236, %v1226
        %v1277 = vpack.c.b16 %v1237, %v1227
        %v1278 = vpack.c.b16 %v1238, %v1228
        %v1279 = vpack.c.b16 %v1249, %v1239
        %v1280 = vpack.c.b16 %v1250, %v1240
        %v1281 = vpack.c.b16 %v1251, %v1241
        %v1282 = vpack.c.b16 %v1252, %v1242
        %v1283 = vpack.c.b16 %v1253, %v1243
        %v1284 = vpack.c.b16 %v1254, %v1244
        %v1285 = vpack.c.b16 %v1255, %v1245
        %v1286 = vpack.c.b16 %v1256, %v1246
        %v1287 = vpack.c.b16 %v1257, %v1247
        %v1288 = vpack.c.b16 %v1258, %v1248
        %vm1319 = vcmask 392192
        %v1321 = vsel %vm1319, %v1084, 0
        %1323 = vmatprep.subr.bf16.mxu0 0
        %1324 = vmatpush1.bf16.msra.mxu0 0
        %1325 = vmatprep.subr.bf16.mxu0 0
        %1326 = vmatpush1.bf16.msra.mxu0 0
        %1327 = vmatprep.subr.bf16.mxu0 0
        %1328 = vmatpush1.bf16.msra.mxu0 0
        %1329 = vmatprep.subr.bf16.mxu0 0
        %1330 = vmatpush1.bf16.msra.mxu0 0
        %1331 = vmatprep.subr.bf16.mxu0 0
        %1332 = vmatpush1.bf16.msra.mxu0 0
        %1333 = vmatprep.subr.bf16.mxu0 %v1280
        %1334 = vmatpush1.bf16.msra.mxu0 %v1279
        %1335 = vmatprep.subr.bf16.mxu0 %v1270
        %1336 = vmatpush1.bf16.msra.mxu0 %v1269
        %1337 = vmatprep.subr.bf16.mxu0 %v1260
        %1338 = vmatpush1.bf16.msra.mxu0 %v1259
        %1339 = vmatprep.subr.bf16.mxu0 0
        %1340 = vmatpush2.bf16.msra.mxu0 0
        %1341 = vmatprep.subr.bf16.mxu0 0
        %1342 = vmatpush2.bf16.msra.mxu0 0
        %1343 = vmatprep.subr.bf16.mxu0 0
        %1344 = vmatpush2.bf16.msra.mxu0 0
        %1345 = vmatprep.subr.bf16.mxu0 0
        %1346 = vmatpush2.bf16.msra.mxu0 0
        %1347 = vmatprep.subr.bf16.mxu0 0
        %1348 = vmatpush2.bf16.msra.mxu0 0
        %1349 = vmatprep.subr.bf16.mxu0 0
        %1350 = vmatpush2.bf16.msra.mxu0 0
        %1351 = vmatprep.subr.bf16.mxu0 0
        %1352 = vmatpush2.bf16.msra.mxu0 0
        %1353 = vmatprep.subr.bf16.mxu0 0
        %1354 = vmatpush2.bf16.msra.mxu0 0
        %1355 = vmatprep.mubr.bf16.mxu0 0
        %1356 = vmatmul.mubr.bf16.gmra.mxu0 %v1321
        %v1357 = vpop.f32.mrf.mxu0
        %v1358 = vadd.f32 %v1122, %v1357
        %v1359 = vpop.f32.mrf.mxu0
        %v1360 = vadd.f32 %v1126, %v1359
        %v1361 = vpop.f32.mrf.mxu0
        %v1362 = vpop.f32.mrf.mxu0
        %1363 = vdwg.mxu0
        %1364 = vmatprep.subr.bf16.mxu0 0
        %1365 = vmatpush1.bf16.msra.mxu0 0
        %1366 = vmatprep.subr.bf16.mxu0 0
        %1367 = vmatpush1.bf16.msra.mxu0 0
        %1368 = vmatprep.subr.bf16.mxu0 0
        %1369 = vmatpush1.bf16.msra.mxu0 0
        %1370 = vmatprep.subr.bf16.mxu0 0
        %1371 = vmatpush1.bf16.msra.mxu0 0
        %1372 = vmatprep.subr.bf16.mxu0 0
        %1373 = vmatpush1.bf16.msra.mxu0 0
        %1374 = vmatprep.subr.bf16.mxu0 %v1282
        %1375 = vmatpush1.bf16.msra.mxu0 %v1281
        %1376 = vmatprep.subr.bf16.mxu0 %v1272
        %1377 = vmatpush1.bf16.msra.mxu0 %v1271
        %1378 = vmatprep.subr.bf16.mxu0 %v1262
        %1379 = vmatpush1.bf16.msra.mxu0 %v1261
        %1380 = vmatprep.subr.bf16.mxu0 0
        %1381 = vmatpush2.bf16.msra.mxu0 0
        %1382 = vmatprep.subr.bf16.mxu0 0
        %1383 = vmatpush2.bf16.msra.mxu0 0
        %1384 = vmatprep.subr.bf16.mxu0 0
        %1385 = vmatpush2.bf16.msra.mxu0 0
        %1386 = vmatprep.subr.bf16.mxu0 0
        %1387 = vmatpush2.bf16.msra.mxu0 0
        %1388 = vmatprep.subr.bf16.mxu0 0
        %1389 = vmatpush2.bf16.msra.mxu0 0
        %1390 = vmatprep.subr.bf16.mxu0 0
        %1391 = vmatpush2.bf16.msra.mxu0 0
        %1392 = vmatprep.subr.bf16.mxu0 0
        %1393 = vmatpush2.bf16.msra.mxu0 0
        %1394 = vmatprep.subr.bf16.mxu0 0
        %1395 = vmatpush2.bf16.msra.mxu0 0
        %1396 = vmatprep.mubr.bf16.mxu0 0
        %1397 = vmatmul.mubr.bf16.gmra.mxu0 %v1321
        %v1398 = vpop.f32.mrf.mxu0
        %v1399 = vadd.f32 %v1130, %v1398
        %v1400 = vpop.f32.mrf.mxu0
        %v1401 = vadd.f32 %v1134, %v1400
        %v1402 = vpop.f32.mrf.mxu0
        %v1403 = vpop.f32.mrf.mxu0
        %1404 = vdwg.mxu0
        %1405 = vmatprep.subr.bf16.mxu0 0
        %1406 = vmatpush1.bf16.msra.mxu0 0
        %1407 = vmatprep.subr.bf16.mxu0 0
        %1408 = vmatpush1.bf16.msra.mxu0 0
        %1409 = vmatprep.subr.bf16.mxu0 0
        %1410 = vmatpush1.bf16.msra.mxu0 0
        %1411 = vmatprep.subr.bf16.mxu0 0
        %1412 = vmatpush1.bf16.msra.mxu0 0
        %1413 = vmatprep.subr.bf16.mxu0 0
        %1414 = vmatpush1.bf16.msra.mxu0 0
        %1415 = vmatprep.subr.bf16.mxu0 %v1284
        %1416 = vmatpush1.bf16.msra.mxu0 %v1283
        %1417 = vmatprep.subr.bf16.mxu0 %v1274
        %1418 = vmatpush1.bf16.msra.mxu0 %v1273
        %1419 = vmatprep.subr.bf16.mxu0 %v1264
        %1420 = vmatpush1.bf16.msra.mxu0 %v1263
        %1421 = vmatprep.subr.bf16.mxu0 0
        %1422 = vmatpush2.bf16.msra.mxu0 0
        %1423 = vmatprep.subr.bf16.mxu0 0
        %1424 = vmatpush2.bf16.msra.mxu0 0
        %1425 = vmatprep.subr.bf16.mxu0 0
        %1426 = vmatpush2.bf16.msra.mxu0 0
        %1427 = vmatprep.subr.bf16.mxu0 0
        %1428 = vmatpush2.bf16.msra.mxu0 0
        %1429 = vmatprep.subr.bf16.mxu0 0
        %1430 = vmatpush2.bf16.msra.mxu0 0
        %1431 = vmatprep.subr.bf16.mxu0 0
        %1432 = vmatpush2.bf16.msra.mxu0 0
        %1433 = vmatprep.subr.bf16.mxu0 0
        %1434 = vmatpush2.bf16.msra.mxu0 0
        %1435 = vmatprep.subr.bf16.mxu0 0
        %1436 = vmatpush2.bf16.msra.mxu0 0
        %1437 = vmatprep.mubr.bf16.mxu0 0
        %1438 = vmatmul.mubr.bf16.gmra.mxu0 %v1321
        %v1439 = vpop.f32.mrf.mxu0
        %v1440 = vadd.f32 %v1138, %v1439
        %v1441 = vpop.f32.mrf.mxu0
        %v1442 = vadd.f32 %v1142, %v1441
        %v1443 = vpop.f32.mrf.mxu0
        %v1444 = vpop.f32.mrf.mxu0
        %1445 = vdwg.mxu0
        %1446 = vmatprep.subr.bf16.mxu0 0
        %1447 = vmatpush1.bf16.msra.mxu0 0
        %1448 = vmatprep.subr.bf16.mxu0 0
        %1449 = vmatpush1.bf16.msra.mxu0 0
        %1450 = vmatprep.subr.bf16.mxu0 0
        %1451 = vmatpush1.bf16.msra.mxu0 0
        %1452 = vmatprep.subr.bf16.mxu0 0
        %1453 = vmatpush1.bf16.msra.mxu0 0
        %1454 = vmatprep.subr.bf16.mxu0 0
        %1455 = vmatpush1.bf16.msra.mxu0 0
        %1456 = vmatprep.subr.bf16.mxu0 %v1286
        %1457 = vmatpush1.bf16.msra.mxu0 %v1285
        %1458 = vmatprep.subr.bf16.mxu0 %v1276
        %1459 = vmatpush1.bf16.msra.mxu0 %v1275
        %1460 = vmatprep.subr.bf16.mxu0 %v1266
        %1461 = vmatpush1.bf16.msra.mxu0 %v1265
        %1462 = vmatprep.subr.bf16.mxu0 0
        %1463 = vmatpush2.bf16.msra.mxu0 0
        %1464 = vmatprep.subr.bf16.mxu0 0
        %1465 = vmatpush2.bf16.msra.mxu0 0
        %1466 = vmatprep.subr.bf16.mxu0 0
        %1467 = vmatpush2.bf16.msra.mxu0 0
        %1468 = vmatprep.subr.bf16.mxu0 0
        %1469 = vmatpush2.bf16.msra.mxu0 0
        %1470 = vmatprep.subr.bf16.mxu0 0
        %1471 = vmatpush2.bf16.msra.mxu0 0
        %1472 = vmatprep.subr.bf16.mxu0 0
        %1473 = vmatpush2.bf16.msra.mxu0 0
        %1474 = vmatprep.subr.bf16.mxu0 0
        %1475 = vmatpush2.bf16.msra.mxu0 0
        %1476 = vmatprep.subr.bf16.mxu0 0
        %1477 = vmatpush2.bf16.msra.mxu0 0
        %1478 = vmatprep.mubr.bf16.mxu0 0
        %1479 = vmatmul.mubr.bf16.gmra.mxu0 %v1321
        %v1480 = vpop.f32.mrf.mxu0
        %v1481 = vadd.f32 %v1146, %v1480
        %v1482 = vpop.f32.mrf.mxu0
        %v1483 = vadd.f32 %v1150, %v1482
        %v1484 = vpop.f32.mrf.mxu0
        %v1485 = vpop.f32.mrf.mxu0
        %1486 = vdwg.mxu0
        %1487 = vmatprep.subr.bf16.mxu0 0
        %1488 = vmatpush1.bf16.msra.mxu0 0
        %1489 = vmatprep.subr.bf16.mxu0 0
        %1490 = vmatpush1.bf16.msra.mxu0 0
        %1491 = vmatprep.subr.bf16.mxu0 0
        %1492 = vmatpush1.bf16.msra.mxu0 0
        %1493 = vmatprep.subr.bf16.mxu0 0
        %1494 = vmatpush1.bf16.msra.mxu0 0
        %1495 = vmatprep.subr.bf16.mxu0 0
        %1496 = vmatpush1.bf16.msra.mxu0 0
        %1497 = vmatprep.subr.bf16.mxu0 %v1288
        %1498 = vmatpush1.bf16.msra.mxu0 %v1287
        %1499 = vmatprep.subr.bf16.mxu0 %v1278
        %1500 = vmatpush1.bf16.msra.mxu0 %v1277
        %1501 = vmatprep.subr.bf16.mxu0 %v1268
        %1502 = vmatpush1.bf16.msra.mxu0 %v1267
        %1503 = vmatprep.subr.bf16.mxu0 0
        %1504 = vmatpush2.bf16.msra.mxu0 0
        %1505 = vmatprep.subr.bf16.mxu0 0
        %1506 = vmatpush2.bf16.msra.mxu0 0
        %1507 = vmatprep.subr.bf16.mxu0 0
        %1508 = vmatpush2.bf16.msra.mxu0 0
        %1509 = vmatprep.subr.bf16.mxu0 0
        %1510 = vmatpush2.bf16.msra.mxu0 0
        %1511 = vmatprep.subr.bf16.mxu0 0
        %1512 = vmatpush2.bf16.msra.mxu0 0
        %1513 = vmatprep.subr.bf16.mxu0 0
        %1514 = vmatpush2.bf16.msra.mxu0 0
        %1515 = vmatprep.subr.bf16.mxu0 0
        %1516 = vmatpush2.bf16.msra.mxu0 0
        %1517 = vmatprep.subr.bf16.mxu0 0
        %1518 = vmatpush2.bf16.msra.mxu0 0
        %1519 = vmatprep.mubr.bf16.mxu0 0
        %1520 = vmatmul.mubr.bf16.gmra.mxu0 %v1321
        %v1521 = vpop.f32.mrf.mxu0
        %v1522 = vadd.f32 %v1154, %v1521
        %v1523 = vpop.f32.mrf.mxu0
        %v1524 = vadd.f32 %v1158, %v1523
        %v1525 = vpop.f32.mrf.mxu0
        %v1526 = vpop.f32.mrf.mxu0
        %1527 = vdwg.mxu0
        %v1528 = vmax.f32 %v1358, 0.0
        %v1529 = vmax.f32 %v1360, 0.0
        %v1530 = vmax.f32 %v1399, 0.0
        %v1531 = vmax.f32 %v1401, 0.0
        %v1532 = vmax.f32 %v1440, 0.0
        %v1533 = vmax.f32 %v1442, 0.0
        %v1534 = vmax.f32 %v1481, 0.0
        %v1535 = vmax.f32 %v1483, 0.0
        %v1536 = vmax.f32 %v1522, 0.0
        %v1537 = vmax.f32 %v1524, 0.0
        %v1538 = vld [vmem:[%s854] sm:$0xff]
        %v1539 = vld [vmem:[%s854 + $0x8] sm:$0xff]
        %v1540 = vld [vmem:[%s854 + $0x10] sm:$0xff]
        %v1541 = vld [vmem:[%s854 + $0x18] sm:$0xff]
        %v1542 = vld [vmem:[%s854 + $0x20] sm:$0xff]
        %v1543 = vld [vmem:[%s854 + $0x28] sm:$0xff]
        %v1544 = vld [vmem:[%s854 + $0x30] sm:$0xff]
        %v1545 = vld [vmem:[%s854 + $0x38] sm:$0xff]
        %v1546 = vld [vmem:[%s854 + $0x40] sm:$0xff]
        %v1547 = vld [vmem:[%s854 + $0x48] sm:$0xff]
        %v1548 = vld [vmem:[%s854 + $0x50] sm:$0xff]
        %v1549 = vld [vmem:[%s854 + $0x58] sm:$0xff]
        %v1550 = vld [vmem:[%s854 + $0x60] sm:$0xff]
        %v1551 = vld [vmem:[%s854 + $0x68] sm:$0xff]
        %v1552 = vld [vmem:[%s854 + $0x70] sm:$0xff]
        %v1553 = vld [vmem:[%s854 + $0x78] sm:$0xff]
        %v1554 = vld [vmem:[%s854 + $0x80] sm:$0xff]
        %v1555 = vld [vmem:[%s854 + $0x88] sm:$0xff]
        %v1556 = vld [vmem:[%s854 + $0x90] sm:$0xff]
        %v1557 = vld [vmem:[%s854 + $0x98] sm:$0xff]
        %v1558 = vld [vmem:[%s854 + $0xa0] sm:$0xff]
        %v1559 = vld [vmem:[%s854 + $0xa8] sm:$0xff]
        %v1560 = vld [vmem:[%s854 + $0xb0] sm:$0xff]
        %v1561 = vld [vmem:[%s854 + $0xb8] sm:$0xff]
        %v1562 = vld [vmem:[%s854 + $0xc0] sm:$0xff]
        %v1563 = vld [vmem:[%s854 + $0xc8] sm:$0xff]
        %v1564 = vld [vmem:[%s854 + $0xd0] sm:$0xff]
        %v1565 = vld [vmem:[%s854 + $0xd8] sm:$0xff]
        %v1566 = vld [vmem:[%s854 + $0xe0] sm:$0xff]
        %v1567 = vld [vmem:[%s854 + $0xe8] sm:$0xff]
        %v1568 = vld [vmem:[%s854 + $0xf0] sm:$0xff]
        %v1569 = vld [vmem:[%s854 + $0xf8] sm:$0xff]
        %v1570 = vld [vmem:[%s854 + $0x100] sm:$0xff]
        %v1571 = vld [vmem:[%s854 + $0x108] sm:$0xff]
        %v1572 = vld [vmem:[%s854 + $0x110] sm:$0xff]
        %v1573 = vld [vmem:[%s854 + $0x118] sm:$0xff]
        %v1574 = vld [vmem:[%s854 + $0x120] sm:$0xff]
        %v1575 = vld [vmem:[%s854 + $0x128] sm:$0xff]
        %v1576 = vld [vmem:[%s854 + $0x130] sm:$0xff]
        %v1577 = vld [vmem:[%s854 + $0x138] sm:$0xff]
        %v1578 = vld [vmem:[%s854 + $0x140] sm:$0xff]
        %v1579 = vld [vmem:[%s854 + $0x148] sm:$0xff]
        %v1580 = vld [vmem:[%s854 + $0x150] sm:$0xff]
        %v1581 = vld [vmem:[%s854 + $0x158] sm:$0xff]
        %v1582 = vld [vmem:[%s854 + $0x160] sm:$0xff]
        %v1583 = vld [vmem:[%s854 + $0x168] sm:$0xff]
        %v1584 = vld [vmem:[%s854 + $0x170] sm:$0xff]
        %v1585 = vld [vmem:[%s854 + $0x178] sm:$0xff]
        %v1586 = vld [vmem:[%s854 + $0x180] sm:$0xff]
        %v1587 = vld [vmem:[%s854 + $0x188] sm:$0xff]
        %v1588 = vld [vmem:[%s854 + $0x190] sm:$0xff]
        %v1589 = vld [vmem:[%s854 + $0x198] sm:$0xff]
        %v1590 = vld [vmem:[%s854 + $0x1a0] sm:$0xff]
        %v1591 = vld [vmem:[%s854 + $0x1a8] sm:$0xff]
        %v1592 = vld [vmem:[%s854 + $0x1b0] sm:$0xff]
        %v1593 = vld [vmem:[%s854 + $0x1b8] sm:$0xff]
        %v1594 = vld [vmem:[%s854 + $0x1c0] sm:$0xff]
        %v1595 = vld [vmem:[%s854 + $0x1c8] sm:$0xff]
        %v1596 = vld [vmem:[%s854 + $0x1d0] sm:$0xff]
        %v1597 = vld [vmem:[%s854 + $0x1d8] sm:$0xff]
        %v1598 = vld [vmem:[%s854 + $0x1e0] sm:$0xff]
        %v1599 = vld [vmem:[%s854 + $0x1e8] sm:$0xff]
        %v1600 = vld [vmem:[%s854 + $0x1f0] sm:$0xff]
        %v1601 = vld [vmem:[%s854 + $0x1f8] sm:$0xff]
        %v1602 = vld [vmem:[%s854 + $0x200] sm:$0xff]
        %v1603 = vld [vmem:[%s854 + $0x208] sm:$0xff]
        %v1604 = vld [vmem:[%s854 + $0x210] sm:$0xff]
        %v1605 = vld [vmem:[%s854 + $0x218] sm:$0xff]
        %v1606 = vld [vmem:[%s854 + $0x220] sm:$0xff]
        %v1607 = vld [vmem:[%s854 + $0x228] sm:$0xff]
        %v1608 = vld [vmem:[%s854 + $0x230] sm:$0xff]
        %v1609 = vld [vmem:[%s854 + $0x238] sm:$0xff]
        %v1610 = vld [vmem:[%s854 + $0x240] sm:$0xff]
        %v1611 = vld [vmem:[%s854 + $0x248] sm:$0xff]
        %v1612 = vld [vmem:[%s854 + $0x250] sm:$0xff]
        %v1613 = vld [vmem:[%s854 + $0x258] sm:$0xff]
        %v1614 = vld [vmem:[%s854 + $0x260] sm:$0xff]
        %v1615 = vld [vmem:[%s854 + $0x268] sm:$0xff]
        %v1616 = vld [vmem:[%s854 + $0x270] sm:$0xff]
        %v1617 = vld [vmem:[%s854 + $0x278] sm:$0xff]
        %v1618 = vld [vmem:[%s854 + $0x280] sm:$0xff]
        %v1619 = vld [vmem:[%s854 + $0x288] sm:$0xff]
        %v1620 = vld [vmem:[%s854 + $0x290] sm:$0xff]
        %v1621 = vld [vmem:[%s854 + $0x298] sm:$0xff]
        %v1622 = vld [vmem:[%s854 + $0x2a0] sm:$0xff]
        %v1623 = vld [vmem:[%s854 + $0x2a8] sm:$0xff]
        %v1624 = vld [vmem:[%s854 + $0x2b0] sm:$0xff]
        %v1625 = vld [vmem:[%s854 + $0x2b8] sm:$0xff]
        %v1626 = vld [vmem:[%s854 + $0x2c0] sm:$0xff]
        %v1627 = vld [vmem:[%s854 + $0x2c8] sm:$0xff]
        %v1628 = vld [vmem:[%s854 + $0x2d0] sm:$0xff]
        %v1629 = vld [vmem:[%s854 + $0x2d8] sm:$0xff]
        %v1630 = vld [vmem:[%s854 + $0x2e0] sm:$0xff]
        %v1631 = vld [vmem:[%s854 + $0x2e8] sm:$0xff]
        %v1632 = vld [vmem:[%s854 + $0x2f0] sm:$0xff]
        %v1633 = vld [vmem:[%s854 + $0x2f8] sm:$0xff]
        %v1634 = vld [vmem:[%s854 + $0x300] sm:$0xff]
        %v1635 = vld [vmem:[%s854 + $0x308] sm:$0xff]
        %v1636 = vld [vmem:[%s854 + $0x310] sm:$0xff]
        %v1637 = vld [vmem:[%s854 + $0x318] sm:$0xff]
        %v1638 = vld [vmem:[%s854 + $0x320] sm:$0xff]
        %v1639 = vld [vmem:[%s854 + $0x328] sm:$0xff]
        %v1640 = vld [vmem:[%s854 + $0x330] sm:$0xff]
        %v1641 = vld [vmem:[%s854 + $0x338] sm:$0xff]
        %v1642 = vld [vmem:[%s854 + $0x340] sm:$0xff]
        %v1643 = vld [vmem:[%s854 + $0x348] sm:$0xff]
        %v1644 = vld [vmem:[%s854 + $0x350] sm:$0xff]
        %v1645 = vld [vmem:[%s854 + $0x358] sm:$0xff]
        %v1646 = vld [vmem:[%s854 + $0x360] sm:$0xff]
        %v1647 = vld [vmem:[%s854 + $0x368] sm:$0xff]
        %v1648 = vld [vmem:[%s854 + $0x370] sm:$0xff]
        %v1649 = vld [vmem:[%s854 + $0x378] sm:$0xff]
        %v1650 = vld [vmem:[%s854 + $0x380] sm:$0xff]
        %v1651 = vld [vmem:[%s854 + $0x388] sm:$0xff]
        %v1652 = vld [vmem:[%s854 + $0x390] sm:$0xff]
        %v1653 = vld [vmem:[%s854 + $0x398] sm:$0xff]
        %v1654 = vld [vmem:[%s854 + $0x3a0] sm:$0xff]
        %v1655 = vld [vmem:[%s854 + $0x3a8] sm:$0xff]
        %v1656 = vld [vmem:[%s854 + $0x3b0] sm:$0xff]
        %v1657 = vld [vmem:[%s854 + $0x3b8] sm:$0xff]
        %v1658 = vld [vmem:[%s854 + $0x3c0] sm:$0xff]
        %v1659 = vld [vmem:[%s854 + $0x3c8] sm:$0xff]
        %v1660 = vld [vmem:[%s854 + $0x3d0] sm:$0xff]
        %v1661 = vld [vmem:[%s854 + $0x3d8] sm:$0xff]
        %v1662 = vld [vmem:[%s854 + $0x3e0] sm:$0xff]
        %v1663 = vld [vmem:[%s854 + $0x3e8] sm:$0xff]
        %v1664 = vld [vmem:[%s854 + $0x3f0] sm:$0xff]
        %v1665 = vld [vmem:[%s854 + $0x3f8] sm:$0xff]
        %v1666 = vld [vmem:[%s854 + $0x400] sm:$0xff]
        %v1667 = vld [vmem:[%s854 + $0x408] sm:$0xff]
        %v1668 = vld [vmem:[%s854 + $0x410] sm:$0xff]
        %v1669 = vld [vmem:[%s854 + $0x418] sm:$0xff]
        %v1670 = vld [vmem:[%s854 + $0x420] sm:$0xff]
        %v1671 = vld [vmem:[%s854 + $0x428] sm:$0xff]
        %v1672 = vld [vmem:[%s854 + $0x430] sm:$0xff]
        %v1673 = vld [vmem:[%s854 + $0x438] sm:$0xff]
        %v1674 = vld [vmem:[%s854 + $0x440] sm:$0xff]
        %v1675 = vld [vmem:[%s854 + $0x448] sm:$0xff]
        %v1676 = vld [vmem:[%s854 + $0x450] sm:$0xff]
        %v1677 = vld [vmem:[%s854 + $0x458] sm:$0xff]
        %v1678 = vld [vmem:[%s854 + $0x460] sm:$0xff]
        %v1679 = vld [vmem:[%s854 + $0x468] sm:$0xff]
        %v1680 = vld [vmem:[%s854 + $0x470] sm:$0xff]
        %v1681 = vld [vmem:[%s854 + $0x478] sm:$0xff]
        %v1682 = vld [vmem:[%s854 + $0x480] sm:$0xff]
        %v1683 = vld [vmem:[%s854 + $0x488] sm:$0xff]
        %v1684 = vld [vmem:[%s854 + $0x490] sm:$0xff]
        %v1685 = vld [vmem:[%s854 + $0x498] sm:$0xff]
        %v1686 = vld [vmem:[%s854 + $0x4a0] sm:$0xff]
        %v1687 = vld [vmem:[%s854 + $0x4a8] sm:$0xff]
        %v1688 = vld [vmem:[%s854 + $0x4b0] sm:$0xff]
        %v1689 = vld [vmem:[%s854 + $0x4b8] sm:$0xff]
        %v1690 = vld [vmem:[%s854 + $0x4c0] sm:$0xff]
        %v1691 = vld [vmem:[%s854 + $0x4c8] sm:$0xff]
        %v1692 = vld [vmem:[%s854 + $0x4d0] sm:$0xff]
        %v1693 = vld [vmem:[%s854 + $0x4d8] sm:$0xff]
        %v1694 = vld [vmem:[%s854 + $0x4e0] sm:$0xff]
        %v1695 = vld [vmem:[%s854 + $0x4e8] sm:$0xff]
        %v1696 = vld [vmem:[%s854 + $0x4f0] sm:$0xff]
        %v1697 = vld [vmem:[%s854 + $0x4f8] sm:$0xff]
        %v1698 = vld [vmem:[%s854 + $0x500] sm:$0xff]
        %v1699 = vld [vmem:[%s854 + $0x508] sm:$0xff]
        %v1700 = vld [vmem:[%s854 + $0x510] sm:$0xff]
        %v1701 = vld [vmem:[%s854 + $0x518] sm:$0xff]
        %v1702 = vld [vmem:[%s854 + $0x520] sm:$0xff]
        %v1703 = vld [vmem:[%s854 + $0x528] sm:$0xff]
        %v1704 = vld [vmem:[%s854 + $0x530] sm:$0xff]
        %v1705 = vld [vmem:[%s854 + $0x538] sm:$0xff]
        %v1706 = vld [vmem:[%s854 + $0x540] sm:$0xff]
        %v1707 = vld [vmem:[%s854 + $0x548] sm:$0xff]
        %v1708 = vld [vmem:[%s854 + $0x550] sm:$0xff]
        %v1709 = vld [vmem:[%s854 + $0x558] sm:$0xff]
        %v1710 = vld [vmem:[%s854 + $0x560] sm:$0xff]
        %v1711 = vld [vmem:[%s854 + $0x568] sm:$0xff]
        %v1712 = vld [vmem:[%s854 + $0x570] sm:$0xff]
        %v1713 = vld [vmem:[%s854 + $0x578] sm:$0xff]
        %v1714 = vld [vmem:[%s854 + $0x580] sm:$0xff]
        %v1715 = vld [vmem:[%s854 + $0x588] sm:$0xff]
        %v1716 = vld [vmem:[%s854 + $0x590] sm:$0xff]
        %v1717 = vld [vmem:[%s854 + $0x598] sm:$0xff]
        %v1718 = vld [vmem:[%s854 + $0x5a0] sm:$0xff]
        %v1719 = vld [vmem:[%s854 + $0x5a8] sm:$0xff]
        %v1720 = vld [vmem:[%s854 + $0x5b0] sm:$0xff]
        %v1721 = vld [vmem:[%s854 + $0x5b8] sm:$0xff]
        %v1722 = vld [vmem:[%s854 + $0x5c0] sm:$0xff]
        %v1723 = vld [vmem:[%s854 + $0x5c8] sm:$0xff]
        %v1724 = vld [vmem:[%s854 + $0x5d0] sm:$0xff]
        %v1725 = vld [vmem:[%s854 + $0x5d8] sm:$0xff]
        %v1726 = vld [vmem:[%s854 + $0x5e0] sm:$0xff]
        %v1727 = vld [vmem:[%s854 + $0x5e8] sm:$0xff]
        %v1728 = vld [vmem:[%s854 + $0x5f0] sm:$0xff]
        %v1729 = vld [vmem:[%s854 + $0x5f8] sm:$0xff]
        %v1730 = vld [vmem:[%s854 + $0x600] sm:$0xff]
        %v1731 = vld [vmem:[%s854 + $0x608] sm:$0xff]
        %v1732 = vld [vmem:[%s854 + $0x610] sm:$0xff]
        %v1733 = vld [vmem:[%s854 + $0x618] sm:$0xff]
        %v1734 = vld [vmem:[%s854 + $0x620] sm:$0xff]
        %v1735 = vld [vmem:[%s854 + $0x628] sm:$0xff]
        %v1736 = vld [vmem:[%s854 + $0x630] sm:$0xff]
        %v1737 = vld [vmem:[%s854 + $0x638] sm:$0xff]
        %v1738 = vld [vmem:[%s854 + $0x640] sm:$0xff]
        %v1739 = vld [vmem:[%s854 + $0x648] sm:$0xff]
        %v1740 = vld [vmem:[%s854 + $0x650] sm:$0xff]
        %v1741 = vld [vmem:[%s854 + $0x658] sm:$0xff]
        %v1742 = vld [vmem:[%s854 + $0x660] sm:$0xff]
        %v1743 = vld [vmem:[%s854 + $0x668] sm:$0xff]
        %v1744 = vld [vmem:[%s854 + $0x670] sm:$0xff]
        %v1745 = vld [vmem:[%s854 + $0x678] sm:$0xff]
        %v1746 = vld [vmem:[%s854 + $0x680] sm:$0xff]
        %v1747 = vld [vmem:[%s854 + $0x688] sm:$0xff]
        %v1748 = vld [vmem:[%s854 + $0x690] sm:$0xff]
        %v1749 = vld [vmem:[%s854 + $0x698] sm:$0xff]
        %v1750 = vld [vmem:[%s854 + $0x6a0] sm:$0xff]
        %v1751 = vld [vmem:[%s854 + $0x6a8] sm:$0xff]
        %v1752 = vld [vmem:[%s854 + $0x6b0] sm:$0xff]
        %v1753 = vld [vmem:[%s854 + $0x6b8] sm:$0xff]
        %v1754 = vld [vmem:[%s854 + $0x6c0] sm:$0xff]
        %v1755 = vld [vmem:[%s854 + $0x6c8] sm:$0xff]
        %v1756 = vld [vmem:[%s854 + $0x6d0] sm:$0xff]
        %v1757 = vld [vmem:[%s854 + $0x6d8] sm:$0xff]
        %v1758 = vld [vmem:[%s854 + $0x6e0] sm:$0xff]
        %v1759 = vld [vmem:[%s854 + $0x6e8] sm:$0xff]
        %v1760 = vld [vmem:[%s854 + $0x6f0] sm:$0xff]
        %v1761 = vld [vmem:[%s854 + $0x6f8] sm:$0xff]
        %v1762 = vld [vmem:[%s854 + $0x700] sm:$0xff]
        %v1763 = vld [vmem:[%s854 + $0x708] sm:$0xff]
        %v1764 = vld [vmem:[%s854 + $0x710] sm:$0xff]
        %v1765 = vld [vmem:[%s854 + $0x718] sm:$0xff]
        %v1766 = vld [vmem:[%s854 + $0x720] sm:$0xff]
        %v1767 = vld [vmem:[%s854 + $0x728] sm:$0xff]
        %v1768 = vld [vmem:[%s854 + $0x730] sm:$0xff]
        %v1769 = vld [vmem:[%s854 + $0x738] sm:$0xff]
        %v1770 = vld [vmem:[%s854 + $0x740] sm:$0xff]
        %v1771 = vld [vmem:[%s854 + $0x748] sm:$0xff]
        %v1772 = vld [vmem:[%s854 + $0x750] sm:$0xff]
        %v1773 = vld [vmem:[%s854 + $0x758] sm:$0xff]
        %v1774 = vld [vmem:[%s854 + $0x760] sm:$0xff]
        %v1775 = vld [vmem:[%s854 + $0x768] sm:$0xff]
        %v1776 = vld [vmem:[%s854 + $0x770] sm:$0xff]
        %v1777 = vld [vmem:[%s854 + $0x778] sm:$0xff]
        %v1778 = vld [vmem:[%s854 + $0x780] sm:$0xff]
        %v1779 = vld [vmem:[%s854 + $0x788] sm:$0xff]
        %v1780 = vld [vmem:[%s854 + $0x790] sm:$0xff]
        %v1781 = vld [vmem:[%s854 + $0x798] sm:$0xff]
        %v1782 = vld [vmem:[%s854 + $0x7a0] sm:$0xff]
        %v1783 = vld [vmem:[%s854 + $0x7a8] sm:$0xff]
        %v1784 = vld [vmem:[%s854 + $0x7b0] sm:$0xff]
        %v1785 = vld [vmem:[%s854 + $0x7b8] sm:$0xff]
        %v1786 = vld [vmem:[%s854 + $0x7c0] sm:$0xff]
        %v1787 = vld [vmem:[%s854 + $0x7c8] sm:$0xff]
        %v1788 = vld [vmem:[%s854 + $0x7d0] sm:$0xff]
        %v1789 = vld [vmem:[%s854 + $0x7d8] sm:$0xff]
        %v1790 = vld [vmem:[%s854 + $0x7e0] sm:$0xff]
        %v1791 = vld [vmem:[%s854 + $0x7e8] sm:$0xff]
        %v1792 = vld [vmem:[%s854 + $0x7f0] sm:$0xff]
        %v1793 = vld [vmem:[%s854 + $0x7f8] sm:$0xff]
        %v1794 = vld [vmem:[%s854 + $0x800] sm:$0xff]
        %v1795 = vld [vmem:[%s854 + $0x808] sm:$0xff]
        %v1796 = vld [vmem:[%s854 + $0x810] sm:$0xff]
        %v1797 = vld [vmem:[%s854 + $0x818] sm:$0xff]
        %v1798 = vld [vmem:[%s854 + $0x820] sm:$0xff]
        %v1799 = vld [vmem:[%s854 + $0x828] sm:$0xff]
        %v1800 = vld [vmem:[%s854 + $0x830] sm:$0xff]
        %v1801 = vld [vmem:[%s854 + $0x838] sm:$0xff]
        %v1802 = vld [vmem:[%s854 + $0x840] sm:$0xff]
        %v1803 = vld [vmem:[%s854 + $0x848] sm:$0xff]
        %v1804 = vld [vmem:[%s854 + $0x850] sm:$0xff]
        %v1805 = vld [vmem:[%s854 + $0x858] sm:$0xff]
        %v1806 = vld [vmem:[%s854 + $0x860] sm:$0xff]
        %v1807 = vld [vmem:[%s854 + $0x868] sm:$0xff]
        %v1808 = vld [vmem:[%s854 + $0x870] sm:$0xff]
        %v1809 = vld [vmem:[%s854 + $0x878] sm:$0xff]
        %v1810 = vld [vmem:[%s854 + $0x880] sm:$0xff]
        %v1811 = vld [vmem:[%s854 + $0x888] sm:$0xff]
        %v1812 = vld [vmem:[%s854 + $0x890] sm:$0xff]
        %v1813 = vld [vmem:[%s854 + $0x898] sm:$0xff]
        %v1814 = vld [vmem:[%s854 + $0x8a0] sm:$0xff]
        %v1815 = vld [vmem:[%s854 + $0x8a8] sm:$0xff]
        %v1816 = vld [vmem:[%s854 + $0x8b0] sm:$0xff]
        %v1817 = vld [vmem:[%s854 + $0x8b8] sm:$0xff]
        %v1818 = vld [vmem:[%s854 + $0x8c0] sm:$0xff]
        %v1819 = vld [vmem:[%s854 + $0x8c8] sm:$0xff]
        %v1820 = vld [vmem:[%s854 + $0x8d0] sm:$0xff]
        %v1821 = vld [vmem:[%s854 + $0x8d8] sm:$0xff]
        %v1822 = vld [vmem:[%s854 + $0x8e0] sm:$0xff]
        %v1823 = vld [vmem:[%s854 + $0x8e8] sm:$0xff]
        %v1824 = vld [vmem:[%s854 + $0x8f0] sm:$0xff]
        %v1825 = vld [vmem:[%s854 + $0x8f8] sm:$0xff]
        %v1826 = vld [vmem:[%s854 + $0x900] sm:$0xff]
        %v1827 = vld [vmem:[%s854 + $0x908] sm:$0xff]
        %v1828 = vld [vmem:[%s854 + $0x910] sm:$0xff]
        %v1829 = vld [vmem:[%s854 + $0x918] sm:$0xff]
        %v1830 = vld [vmem:[%s854 + $0x920] sm:$0xff]
        %v1831 = vld [vmem:[%s854 + $0x928] sm:$0xff]
        %v1832 = vld [vmem:[%s854 + $0x930] sm:$0xff]
        %v1833 = vld [vmem:[%s854 + $0x938] sm:$0xff]
        %v1834 = vld [vmem:[%s854 + $0x940] sm:$0xff]
        %v1835 = vld [vmem:[%s854 + $0x948] sm:$0xff]
        %v1836 = vld [vmem:[%s854 + $0x950] sm:$0xff]
        %v1837 = vld [vmem:[%s854 + $0x958] sm:$0xff]
        %v1838 = vld [vmem:[%s854 + $0x960] sm:$0xff]
        %v1839 = vld [vmem:[%s854 + $0x968] sm:$0xff]
        %v1840 = vld [vmem:[%s854 + $0x970] sm:$0xff]
        %v1841 = vld [vmem:[%s854 + $0x978] sm:$0xff]
        %v1842 = vld [vmem:[%s854 + $0x980] sm:$0xff]
        %v1843 = vld [vmem:[%s854 + $0x988] sm:$0xff]
        %v1844 = vld [vmem:[%s854 + $0x990] sm:$0xff]
        %v1845 = vld [vmem:[%s854 + $0x998] sm:$0xff]
        %v1846 = vld [vmem:[%s854 + $0x9a0] sm:$0xff]
        %v1847 = vld [vmem:[%s854 + $0x9a8] sm:$0xff]
        %v1848 = vld [vmem:[%s854 + $0x9b0] sm:$0xff]
        %v1849 = vld [vmem:[%s854 + $0x9b8] sm:$0xff]
        %v1850 = vld [vmem:[%s854 + $0x9c0] sm:$0xff]
        %v1851 = vld [vmem:[%s854 + $0x9c8] sm:$0xff]
        %v1852 = vld [vmem:[%s854 + $0x9d0] sm:$0xff]
        %v1853 = vld [vmem:[%s854 + $0x9d8] sm:$0xff]
        %v1854 = vld [vmem:[%s854 + $0x9e0] sm:$0xff]
        %v1855 = vld [vmem:[%s854 + $0x9e8] sm:$0xff]
        %v1856 = vld [vmem:[%s854 + $0x9f0] sm:$0xff]
        %v1857 = vld [vmem:[%s854 + $0x9f8] sm:$0xff]
        %v1858 = vunpack.c.l.s8.bf16 %v1538
        %v1859 = vunpack.c.l.s8.bf16 %v1539
        %v1860 = vunpack.c.l.s8.bf16 %v1540
        %v1861 = vunpack.c.l.s8.bf16 %v1541
        %v1862 = vunpack.c.l.s8.bf16 %v1542
        %v1863 = vunpack.c.l.s8.bf16 %v1543
        %v1864 = vunpack.c.l.s8.bf16 %v1544
        %v1865 = vunpack.c.l.s8.bf16 %v1545
        %v1866 = vunpack.c.h.s8.bf16 %v1538
        %v1867 = vunpack.c.h.s8.bf16 %v1539
        %v1868 = vunpack.c.h.s8.bf16 %v1540
        %v1869 = vunpack.c.h.s8.bf16 %v1541
        %v1870 = vunpack.c.h.s8.bf16 %v1542
        %v1871 = vunpack.c.h.s8.bf16 %v1543
        %v1872 = vunpack.c.h.s8.bf16 %v1544
        %v1873 = vunpack.c.h.s8.bf16 %v1545
        %v1874 = vunpack.c.l.s8.bf16 %v1546
        %v1875 = vunpack.c.l.s8.bf16 %v1547
        %v1876 = vunpack.c.l.s8.bf16 %v1548
        %v1877 = vunpack.c.l.s8.bf16 %v1549
        %v1878 = vunpack.c.l.s8.bf16 %v1550
        %v1879 = vunpack.c.l.s8.bf16 %v1551
        %v1880 = vunpack.c.l.s8.bf16 %v1552
        %v1881 = vunpack.c.l.s8.bf16 %v1553
        %v1882 = vunpack.c.h.s8.bf16 %v1546
        %v1883 = vunpack.c.h.s8.bf16 %v1547
        %v1884 = vunpack.c.h.s8.bf16 %v1548
        %v1885 = vunpack.c.h.s8.bf16 %v1549
        %v1886 = vunpack.c.h.s8.bf16 %v1550
        %v1887 = vunpack.c.h.s8.bf16 %v1551
        %v1888 = vunpack.c.h.s8.bf16 %v1552
        %v1889 = vunpack.c.h.s8.bf16 %v1553
        %v1890 = vunpack.c.l.s8.bf16 %v1554
        %v1891 = vunpack.c.l.s8.bf16 %v1555
        %v1892 = vunpack.c.l.s8.bf16 %v1556
        %v1893 = vunpack.c.l.s8.bf16 %v1557
        %v1894 = vunpack.c.l.s8.bf16 %v1558
        %v1895 = vunpack.c.l.s8.bf16 %v1559
        %v1896 = vunpack.c.l.s8.bf16 %v1560
        %v1897 = vunpack.c.l.s8.bf16 %v1561
        %v1898 = vunpack.c.h.s8.bf16 %v1554
        %v1899 = vunpack.c.h.s8.bf16 %v1555
        %v1900 = vunpack.c.h.s8.bf16 %v1556
        %v1901 = vunpack.c.h.s8.bf16 %v1557
        %v1902 = vunpack.c.h.s8.bf16 %v1558
        %v1903 = vunpack.c.h.s8.bf16 %v1559
        %v1904 = vunpack.c.h.s8.bf16 %v1560
        %v1905 = vunpack.c.h.s8.bf16 %v1561
        %v1906 = vunpack.c.l.s8.bf16 %v1562
        %v1907 = vunpack.c.l.s8.bf16 %v1563
        %v1908 = vunpack.c.l.s8.bf16 %v1564
        %v1909 = vunpack.c.l.s8.bf16 %v1565
        %v1910 = vunpack.c.l.s8.bf16 %v1566
        %v1911 = vunpack.c.l.s8.bf16 %v1567
        %v1912 = vunpack.c.l.s8.bf16 %v1568
        %v1913 = vunpack.c.l.s8.bf16 %v1569
        %v1914 = vunpack.c.h.s8.bf16 %v1562
        %v1915 = vunpack.c.h.s8.bf16 %v1563
        %v1916 = vunpack.c.h.s8.bf16 %v1564
        %v1917 = vunpack.c.h.s8.bf16 %v1565
        %v1918 = vunpack.c.h.s8.bf16 %v1566
        %v1919 = vunpack.c.h.s8.bf16 %v1567
        %v1920 = vunpack.c.h.s8.bf16 %v1568
        %v1921 = vunpack.c.h.s8.bf16 %v1569
        %v1922 = vunpack.c.l.s8.bf16 %v1570
        %v1923 = vunpack.c.l.s8.bf16 %v1571
        %v1924 = vunpack.c.l.s8.bf16 %v1572
        %v1925 = vunpack.c.l.s8.bf16 %v1573
        %v1926 = vunpack.c.l.s8.bf16 %v1574
        %v1927 = vunpack.c.l.s8.bf16 %v1575
        %v1928 = vunpack.c.l.s8.bf16 %v1576
        %v1929 = vunpack.c.l.s8.bf16 %v1577
        %v1930 = vunpack.c.h.s8.bf16 %v1570
        %v1931 = vunpack.c.h.s8.bf16 %v1571
        %v1932 = vunpack.c.h.s8.bf16 %v1572
        %v1933 = vunpack.c.h.s8.bf16 %v1573
        %v1934 = vunpack.c.h.s8.bf16 %v1574
        %v1935 = vunpack.c.h.s8.bf16 %v1575
        %v1936 = vunpack.c.h.s8.bf16 %v1576
        %v1937 = vunpack.c.h.s8.bf16 %v1577
        %v1938 = vunpack.c.l.s8.bf16 %v1578
        %v1939 = vunpack.c.l.s8.bf16 %v1579
        %v1940 = vunpack.c.l.s8.bf16 %v1580
        %v1941 = vunpack.c.l.s8.bf16 %v1581
        %v1942 = vunpack.c.l.s8.bf16 %v1582
        %v1943 = vunpack.c.l.s8.bf16 %v1583
        %v1944 = vunpack.c.l.s8.bf16 %v1584
        %v1945 = vunpack.c.l.s8.bf16 %v1585
        %v1946 = vunpack.c.h.s8.bf16 %v1578
        %v1947 = vunpack.c.h.s8.bf16 %v1579
        %v1948 = vunpack.c.h.s8.bf16 %v1580
        %v1949 = vunpack.c.h.s8.bf16 %v1581
        %v1950 = vunpack.c.h.s8.bf16 %v1582
        %v1951 = vunpack.c.h.s8.bf16 %v1583
        %v1952 = vunpack.c.h.s8.bf16 %v1584
        %v1953 = vunpack.c.h.s8.bf16 %v1585
        %v1954 = vunpack.c.l.s8.bf16 %v1586
        %v1955 = vunpack.c.l.s8.bf16 %v1587
        %v1956 = vunpack.c.l.s8.bf16 %v1588
        %v1957 = vunpack.c.l.s8.bf16 %v1589
        %v1958 = vunpack.c.l.s8.bf16 %v1590
        %v1959 = vunpack.c.l.s8.bf16 %v1591
        %v1960 = vunpack.c.l.s8.bf16 %v1592
        %v1961 = vunpack.c.l.s8.bf16 %v1593
        %v1962 = vunpack.c.h.s8.bf16 %v1586
        %v1963 = vunpack.c.h.s8.bf16 %v1587
        %v1964 = vunpack.c.h.s8.bf16 %v1588
        %v1965 = vunpack.c.h.s8.bf16 %v1589
        %v1966 = vunpack.c.h.s8.bf16 %v1590
        %v1967 = vunpack.c.h.s8.bf16 %v1591
        %v1968 = vunpack.c.h.s8.bf16 %v1592
        %v1969 = vunpack.c.h.s8.bf16 %v1593
        %v1970 = vunpack.c.l.s8.bf16 %v1594
        %v1971 = vunpack.c.l.s8.bf16 %v1595
        %v1972 = vunpack.c.l.s8.bf16 %v1596
        %v1973 = vunpack.c.l.s8.bf16 %v1597
        %v1974 = vunpack.c.l.s8.bf16 %v1598
        %v1975 = vunpack.c.l.s8.bf16 %v1599
        %v1976 = vunpack.c.l.s8.bf16 %v1600
        %v1977 = vunpack.c.l.s8.bf16 %v1601
        %v1978 = vunpack.c.h.s8.bf16 %v1594
        %v1979 = vunpack.c.h.s8.bf16 %v1595
        %v1980 = vunpack.c.h.s8.bf16 %v1596
        %v1981 = vunpack.c.h.s8.bf16 %v1597
        %v1982 = vunpack.c.h.s8.bf16 %v1598
        %v1983 = vunpack.c.h.s8.bf16 %v1599
        %v1984 = vunpack.c.h.s8.bf16 %v1600
        %v1985 = vunpack.c.h.s8.bf16 %v1601
        %v1986 = vunpack.c.l.s8.bf16 %v1602
        %v1987 = vunpack.c.l.s8.bf16 %v1603
        %v1988 = vunpack.c.l.s8.bf16 %v1604
        %v1989 = vunpack.c.l.s8.bf16 %v1605
        %v1990 = vunpack.c.l.s8.bf16 %v1606
        %v1991 = vunpack.c.l.s8.bf16 %v1607
        %v1992 = vunpack.c.l.s8.bf16 %v1608
        %v1993 = vunpack.c.l.s8.bf16 %v1609
        %v1994 = vunpack.c.h.s8.bf16 %v1602
        %v1995 = vunpack.c.h.s8.bf16 %v1603
        %v1996 = vunpack.c.h.s8.bf16 %v1604
        %v1997 = vunpack.c.h.s8.bf16 %v1605
        %v1998 = vunpack.c.h.s8.bf16 %v1606
        %v1999 = vunpack.c.h.s8.bf16 %v1607
        %v2000 = vunpack.c.h.s8.bf16 %v1608
        %v2001 = vunpack.c.h.s8.bf16 %v1609
        %v2002 = vunpack.c.l.s8.bf16 %v1610
        %v2003 = vunpack.c.l.s8.bf16 %v1611
        %v2004 = vunpack.c.l.s8.bf16 %v1612
        %v2005 = vunpack.c.l.s8.bf16 %v1613
        %v2006 = vunpack.c.l.s8.bf16 %v1614
        %v2007 = vunpack.c.l.s8.bf16 %v1615
        %v2008 = vunpack.c.l.s8.bf16 %v1616
        %v2009 = vunpack.c.l.s8.bf16 %v1617
        %v2010 = vunpack.c.h.s8.bf16 %v1610
        %v2011 = vunpack.c.h.s8.bf16 %v1611
        %v2012 = vunpack.c.h.s8.bf16 %v1612
        %v2013 = vunpack.c.h.s8.bf16 %v1613
        %v2014 = vunpack.c.h.s8.bf16 %v1614
        %v2015 = vunpack.c.h.s8.bf16 %v1615
        %v2016 = vunpack.c.h.s8.bf16 %v1616
        %v2017 = vunpack.c.h.s8.bf16 %v1617
        %v2018 = vunpack.c.l.s8.bf16 %v1618
        %v2019 = vunpack.c.l.s8.bf16 %v1619
        %v2020 = vunpack.c.l.s8.bf16 %v1620
        %v2021 = vunpack.c.l.s8.bf16 %v1621
        %v2022 = vunpack.c.l.s8.bf16 %v1622
        %v2023 = vunpack.c.l.s8.bf16 %v1623
        %v2024 = vunpack.c.l.s8.bf16 %v1624
        %v2025 = vunpack.c.l.s8.bf16 %v1625
        %v2026 = vunpack.c.h.s8.bf16 %v1618
        %v2027 = vunpack.c.h.s8.bf16 %v1619
        %v2028 = vunpack.c.h.s8.bf16 %v1620
        %v2029 = vunpack.c.h.s8.bf16 %v1621
        %v2030 = vunpack.c.h.s8.bf16 %v1622
        %v2031 = vunpack.c.h.s8.bf16 %v1623
        %v2032 = vunpack.c.h.s8.bf16 %v1624
        %v2033 = vunpack.c.h.s8.bf16 %v1625
        %v2034 = vunpack.c.l.s8.bf16 %v1626
        %v2035 = vunpack.c.l.s8.bf16 %v1627
        %v2036 = vunpack.c.l.s8.bf16 %v1628
        %v2037 = vunpack.c.l.s8.bf16 %v1629
        %v2038 = vunpack.c.l.s8.bf16 %v1630
        %v2039 = vunpack.c.l.s8.bf16 %v1631
        %v2040 = vunpack.c.l.s8.bf16 %v1632
        %v2041 = vunpack.c.l.s8.bf16 %v1633
        %v2042 = vunpack.c.h.s8.bf16 %v1626
        %v2043 = vunpack.c.h.s8.bf16 %v1627
        %v2044 = vunpack.c.h.s8.bf16 %v1628
        %v2045 = vunpack.c.h.s8.bf16 %v1629
        %v2046 = vunpack.c.h.s8.bf16 %v1630
        %v2047 = vunpack.c.h.s8.bf16 %v1631
        %v2048 = vunpack.c.h.s8.bf16 %v1632
        %v2049 = vunpack.c.h.s8.bf16 %v1633
        %v2050 = vunpack.c.l.s8.bf16 %v1634
        %v2051 = vunpack.c.l.s8.bf16 %v1635
        %v2052 = vunpack.c.l.s8.bf16 %v1636
        %v2053 = vunpack.c.l.s8.bf16 %v1637
        %v2054 = vunpack.c.l.s8.bf16 %v1638
        %v2055 = vunpack.c.l.s8.bf16 %v1639
        %v2056 = vunpack.c.l.s8.bf16 %v1640
        %v2057 = vunpack.c.l.s8.bf16 %v1641
        %v2058 = vunpack.c.h.s8.bf16 %v1634
        %v2059 = vunpack.c.h.s8.bf16 %v1635
        %v2060 = vunpack.c.h.s8.bf16 %v1636
        %v2061 = vunpack.c.h.s8.bf16 %v1637
        %v2062 = vunpack.c.h.s8.bf16 %v1638
        %v2063 = vunpack.c.h.s8.bf16 %v1639
        %v2064 = vunpack.c.h.s8.bf16 %v1640
        %v2065 = vunpack.c.h.s8.bf16 %v1641
        %v2066 = vunpack.c.l.s8.bf16 %v1642
        %v2067 = vunpack.c.l.s8.bf16 %v1643
        %v2068 = vunpack.c.l.s8.bf16 %v1644
        %v2069 = vunpack.c.l.s8.bf16 %v1645
        %v2070 = vunpack.c.l.s8.bf16 %v1646
        %v2071 = vunpack.c.l.s8.bf16 %v1647
        %v2072 = vunpack.c.l.s8.bf16 %v1648
        %v2073 = vunpack.c.l.s8.bf16 %v1649
        %v2074 = vunpack.c.h.s8.bf16 %v1642
        %v2075 = vunpack.c.h.s8.bf16 %v1643
        %v2076 = vunpack.c.h.s8.bf16 %v1644
        %v2077 = vunpack.c.h.s8.bf16 %v1645
        %v2078 = vunpack.c.h.s8.bf16 %v1646
        %v2079 = vunpack.c.h.s8.bf16 %v1647
        %v2080 = vunpack.c.h.s8.bf16 %v1648
        %v2081 = vunpack.c.h.s8.bf16 %v1649
        %v2082 = vunpack.c.l.s8.bf16 %v1650
        %v2083 = vunpack.c.l.s8.bf16 %v1651
        %v2084 = vunpack.c.l.s8.bf16 %v1652
        %v2085 = vunpack.c.l.s8.bf16 %v1653
        %v2086 = vunpack.c.l.s8.bf16 %v1654
        %v2087 = vunpack.c.l.s8.bf16 %v1655
        %v2088 = vunpack.c.l.s8.bf16 %v1656
        %v2089 = vunpack.c.l.s8.bf16 %v1657
        %v2090 = vunpack.c.h.s8.bf16 %v1650
        %v2091 = vunpack.c.h.s8.bf16 %v1651
        %v2092 = vunpack.c.h.s8.bf16 %v1652
        %v2093 = vunpack.c.h.s8.bf16 %v1653
        %v2094 = vunpack.c.h.s8.bf16 %v1654
        %v2095 = vunpack.c.h.s8.bf16 %v1655
        %v2096 = vunpack.c.h.s8.bf16 %v1656
        %v2097 = vunpack.c.h.s8.bf16 %v1657
        %v2098 = vunpack.c.l.s8.bf16 %v1658
        %v2099 = vunpack.c.l.s8.bf16 %v1659
        %v2100 = vunpack.c.l.s8.bf16 %v1660
        %v2101 = vunpack.c.l.s8.bf16 %v1661
        %v2102 = vunpack.c.l.s8.bf16 %v1662
        %v2103 = vunpack.c.l.s8.bf16 %v1663
        %v2104 = vunpack.c.l.s8.bf16 %v1664
        %v2105 = vunpack.c.l.s8.bf16 %v1665
        %v2106 = vunpack.c.h.s8.bf16 %v1658
        %v2107 = vunpack.c.h.s8.bf16 %v1659
        %v2108 = vunpack.c.h.s8.bf16 %v1660
        %v2109 = vunpack.c.h.s8.bf16 %v1661
        %v2110 = vunpack.c.h.s8.bf16 %v1662
        %v2111 = vunpack.c.h.s8.bf16 %v1663
        %v2112 = vunpack.c.h.s8.bf16 %v1664
        %v2113 = vunpack.c.h.s8.bf16 %v1665
        %v2114 = vunpack.c.l.s8.bf16 %v1666
        %v2115 = vunpack.c.l.s8.bf16 %v1667
        %v2116 = vunpack.c.l.s8.bf16 %v1668
        %v2117 = vunpack.c.l.s8.bf16 %v1669
        %v2118 = vunpack.c.l.s8.bf16 %v1670
        %v2119 = vunpack.c.l.s8.bf16 %v1671
        %v2120 = vunpack.c.l.s8.bf16 %v1672
        %v2121 = vunpack.c.l.s8.bf16 %v1673
        %v2122 = vunpack.c.h.s8.bf16 %v1666
        %v2123 = vunpack.c.h.s8.bf16 %v1667
        %v2124 = vunpack.c.h.s8.bf16 %v1668
        %v2125 = vunpack.c.h.s8.bf16 %v1669
        %v2126 = vunpack.c.h.s8.bf16 %v1670
        %v2127 = vunpack.c.h.s8.bf16 %v1671
        %v2128 = vunpack.c.h.s8.bf16 %v1672
        %v2129 = vunpack.c.h.s8.bf16 %v1673
        %v2130 = vunpack.c.l.s8.bf16 %v1674
        %v2131 = vunpack.c.l.s8.bf16 %v1675
        %v2132 = vunpack.c.l.s8.bf16 %v1676
        %v2133 = vunpack.c.l.s8.bf16 %v1677
        %v2134 = vunpack.c.l.s8.bf16 %v1678
        %v2135 = vunpack.c.l.s8.bf16 %v1679
        %v2136 = vunpack.c.l.s8.bf16 %v1680
        %v2137 = vunpack.c.l.s8.bf16 %v1681
        %v2138 = vunpack.c.h.s8.bf16 %v1674
        %v2139 = vunpack.c.h.s8.bf16 %v1675
        %v2140 = vunpack.c.h.s8.bf16 %v1676
        %v2141 = vunpack.c.h.s8.bf16 %v1677
        %v2142 = vunpack.c.h.s8.bf16 %v1678
        %v2143 = vunpack.c.h.s8.bf16 %v1679
        %v2144 = vunpack.c.h.s8.bf16 %v1680
        %v2145 = vunpack.c.h.s8.bf16 %v1681
        %v2146 = vunpack.c.l.s8.bf16 %v1682
        %v2147 = vunpack.c.l.s8.bf16 %v1683
        %v2148 = vunpack.c.l.s8.bf16 %v1684
        %v2149 = vunpack.c.l.s8.bf16 %v1685
        %v2150 = vunpack.c.l.s8.bf16 %v1686
        %v2151 = vunpack.c.l.s8.bf16 %v1687
        %v2152 = vunpack.c.l.s8.bf16 %v1688
        %v2153 = vunpack.c.l.s8.bf16 %v1689
        %v2154 = vunpack.c.h.s8.bf16 %v1682
        %v2155 = vunpack.c.h.s8.bf16 %v1683
        %v2156 = vunpack.c.h.s8.bf16 %v1684
        %v2157 = vunpack.c.h.s8.bf16 %v1685
        %v2158 = vunpack.c.h.s8.bf16 %v1686
        %v2159 = vunpack.c.h.s8.bf16 %v1687
        %v2160 = vunpack.c.h.s8.bf16 %v1688
        %v2161 = vunpack.c.h.s8.bf16 %v1689
        %v2162 = vunpack.c.l.s8.bf16 %v1690
        %v2163 = vunpack.c.l.s8.bf16 %v1691
        %v2164 = vunpack.c.l.s8.bf16 %v1692
        %v2165 = vunpack.c.l.s8.bf16 %v1693
        %v2166 = vunpack.c.l.s8.bf16 %v1694
        %v2167 = vunpack.c.l.s8.bf16 %v1695
        %v2168 = vunpack.c.l.s8.bf16 %v1696
        %v2169 = vunpack.c.l.s8.bf16 %v1697
        %v2170 = vunpack.c.h.s8.bf16 %v1690
        %v2171 = vunpack.c.h.s8.bf16 %v1691
        %v2172 = vunpack.c.h.s8.bf16 %v1692
        %v2173 = vunpack.c.h.s8.bf16 %v1693
        %v2174 = vunpack.c.h.s8.bf16 %v1694
        %v2175 = vunpack.c.h.s8.bf16 %v1695
        %v2176 = vunpack.c.h.s8.bf16 %v1696
        %v2177 = vunpack.c.h.s8.bf16 %v1697
        %v2178 = vunpack.c.l.s8.bf16 %v1698
        %v2179 = vunpack.c.l.s8.bf16 %v1699
        %v2180 = vunpack.c.l.s8.bf16 %v1700
        %v2181 = vunpack.c.l.s8.bf16 %v1701
        %v2182 = vunpack.c.l.s8.bf16 %v1702
        %v2183 = vunpack.c.l.s8.bf16 %v1703
        %v2184 = vunpack.c.l.s8.bf16 %v1704
        %v2185 = vunpack.c.l.s8.bf16 %v1705
        %v2186 = vunpack.c.h.s8.bf16 %v1698
        %v2187 = vunpack.c.h.s8.bf16 %v1699
        %v2188 = vunpack.c.h.s8.bf16 %v1700
        %v2189 = vunpack.c.h.s8.bf16 %v1701
        %v2190 = vunpack.c.h.s8.bf16 %v1702
        %v2191 = vunpack.c.h.s8.bf16 %v1703
        %v2192 = vunpack.c.h.s8.bf16 %v1704
        %v2193 = vunpack.c.h.s8.bf16 %v1705
        %v2194 = vunpack.c.l.s8.bf16 %v1706
        %v2195 = vunpack.c.l.s8.bf16 %v1707
        %v2196 = vunpack.c.l.s8.bf16 %v1708
        %v2197 = vunpack.c.l.s8.bf16 %v1709
        %v2198 = vunpack.c.l.s8.bf16 %v1710
        %v2199 = vunpack.c.l.s8.bf16 %v1711
        %v2200 = vunpack.c.l.s8.bf16 %v1712
        %v2201 = vunpack.c.l.s8.bf16 %v1713
        %v2202 = vunpack.c.h.s8.bf16 %v1706
        %v2203 = vunpack.c.h.s8.bf16 %v1707
        %v2204 = vunpack.c.h.s8.bf16 %v1708
        %v2205 = vunpack.c.h.s8.bf16 %v1709
        %v2206 = vunpack.c.h.s8.bf16 %v1710
        %v2207 = vunpack.c.h.s8.bf16 %v1711
        %v2208 = vunpack.c.h.s8.bf16 %v1712
        %v2209 = vunpack.c.h.s8.bf16 %v1713
        %v2210 = vunpack.c.l.s8.bf16 %v1714
        %v2211 = vunpack.c.l.s8.bf16 %v1715
        %v2212 = vunpack.c.l.s8.bf16 %v1716
        %v2213 = vunpack.c.l.s8.bf16 %v1717
        %v2214 = vunpack.c.l.s8.bf16 %v1718
        %v2215 = vunpack.c.l.s8.bf16 %v1719
        %v2216 = vunpack.c.l.s8.bf16 %v1720
        %v2217 = vunpack.c.l.s8.bf16 %v1721
        %v2218 = vunpack.c.h.s8.bf16 %v1714
        %v2219 = vunpack.c.h.s8.bf16 %v1715
        %v2220 = vunpack.c.h.s8.bf16 %v1716
        %v2221 = vunpack.c.h.s8.bf16 %v1717
        %v2222 = vunpack.c.h.s8.bf16 %v1718
        %v2223 = vunpack.c.h.s8.bf16 %v1719
        %v2224 = vunpack.c.h.s8.bf16 %v1720
        %v2225 = vunpack.c.h.s8.bf16 %v1721
        %v2226 = vunpack.c.l.s8.bf16 %v1722
        %v2227 = vunpack.c.l.s8.bf16 %v1723
        %v2228 = vunpack.c.l.s8.bf16 %v1724
        %v2229 = vunpack.c.l.s8.bf16 %v1725
        %v2230 = vunpack.c.l.s8.bf16 %v1726
        %v2231 = vunpack.c.l.s8.bf16 %v1727
        %v2232 = vunpack.c.l.s8.bf16 %v1728
        %v2233 = vunpack.c.l.s8.bf16 %v1729
        %v2234 = vunpack.c.h.s8.bf16 %v1722
        %v2235 = vunpack.c.h.s8.bf16 %v1723
        %v2236 = vunpack.c.h.s8.bf16 %v1724
        %v2237 = vunpack.c.h.s8.bf16 %v1725
        %v2238 = vunpack.c.h.s8.bf16 %v1726
        %v2239 = vunpack.c.h.s8.bf16 %v1727
        %v2240 = vunpack.c.h.s8.bf16 %v1728
        %v2241 = vunpack.c.h.s8.bf16 %v1729
        %v2242 = vunpack.c.l.s8.bf16 %v1730
        %v2243 = vunpack.c.l.s8.bf16 %v1731
        %v2244 = vunpack.c.l.s8.bf16 %v1732
        %v2245 = vunpack.c.l.s8.bf16 %v1733
        %v2246 = vunpack.c.l.s8.bf16 %v1734
        %v2247 = vunpack.c.l.s8.bf16 %v1735
        %v2248 = vunpack.c.l.s8.bf16 %v1736
        %v2249 = vunpack.c.l.s8.bf16 %v1737
        %v2250 = vunpack.c.h.s8.bf16 %v1730
        %v2251 = vunpack.c.h.s8.bf16 %v1731
        %v2252 = vunpack.c.h.s8.bf16 %v1732
        %v2253 = vunpack.c.h.s8.bf16 %v1733
        %v2254 = vunpack.c.h.s8.bf16 %v1734
        %v2255 = vunpack.c.h.s8.bf16 %v1735
        %v2256 = vunpack.c.h.s8.bf16 %v1736
        %v2257 = vunpack.c.h.s8.bf16 %v1737
        %v2258 = vunpack.c.l.s8.bf16 %v1738
        %v2259 = vunpack.c.l.s8.bf16 %v1739
        %v2260 = vunpack.c.l.s8.bf16 %v1740
        %v2261 = vunpack.c.l.s8.bf16 %v1741
        %v2262 = vunpack.c.l.s8.bf16 %v1742
        %v2263 = vunpack.c.l.s8.bf16 %v1743
        %v2264 = vunpack.c.l.s8.bf16 %v1744
        %v2265 = vunpack.c.l.s8.bf16 %v1745
        %v2266 = vunpack.c.h.s8.bf16 %v1738
        %v2267 = vunpack.c.h.s8.bf16 %v1739
        %v2268 = vunpack.c.h.s8.bf16 %v1740
        %v2269 = vunpack.c.h.s8.bf16 %v1741
        %v2270 = vunpack.c.h.s8.bf16 %v1742
        %v2271 = vunpack.c.h.s8.bf16 %v1743
        %v2272 = vunpack.c.h.s8.bf16 %v1744
        %v2273 = vunpack.c.h.s8.bf16 %v1745
        %v2274 = vunpack.c.l.s8.bf16 %v1746
        %v2275 = vunpack.c.l.s8.bf16 %v1747
        %v2276 = vunpack.c.l.s8.bf16 %v1748
        %v2277 = vunpack.c.l.s8.bf16 %v1749
        %v2278 = vunpack.c.l.s8.bf16 %v1750
        %v2279 = vunpack.c.l.s8.bf16 %v1751
        %v2280 = vunpack.c.l.s8.bf16 %v1752
        %v2281 = vunpack.c.l.s8.bf16 %v1753
        %v2282 = vunpack.c.h.s8.bf16 %v1746
        %v2283 = vunpack.c.h.s8.bf16 %v1747
        %v2284 = vunpack.c.h.s8.bf16 %v1748
        %v2285 = vunpack.c.h.s8.bf16 %v1749
        %v2286 = vunpack.c.h.s8.bf16 %v1750
        %v2287 = vunpack.c.h.s8.bf16 %v1751
        %v2288 = vunpack.c.h.s8.bf16 %v1752
        %v2289 = vunpack.c.h.s8.bf16 %v1753
        %v2290 = vunpack.c.l.s8.bf16 %v1754
        %v2291 = vunpack.c.l.s8.bf16 %v1755
        %v2292 = vunpack.c.l.s8.bf16 %v1756
        %v2293 = vunpack.c.l.s8.bf16 %v1757
        %v2294 = vunpack.c.l.s8.bf16 %v1758
        %v2295 = vunpack.c.l.s8.bf16 %v1759
        %v2296 = vunpack.c.l.s8.bf16 %v1760
        %v2297 = vunpack.c.l.s8.bf16 %v1761
        %v2298 = vunpack.c.h.s8.bf16 %v1754
        %v2299 = vunpack.c.h.s8.bf16 %v1755
        %v2300 = vunpack.c.h.s8.bf16 %v1756
        %v2301 = vunpack.c.h.s8.bf16 %v1757
        %v2302 = vunpack.c.h.s8.bf16 %v1758
        %v2303 = vunpack.c.h.s8.bf16 %v1759
        %v2304 = vunpack.c.h.s8.bf16 %v1760
        %v2305 = vunpack.c.h.s8.bf16 %v1761
        %v2306 = vunpack.c.l.s8.bf16 %v1762
        %v2307 = vunpack.c.l.s8.bf16 %v1763
        %v2308 = vunpack.c.l.s8.bf16 %v1764
        %v2309 = vunpack.c.l.s8.bf16 %v1765
        %v2310 = vunpack.c.l.s8.bf16 %v1766
        %v2311 = vunpack.c.l.s8.bf16 %v1767
        %v2312 = vunpack.c.l.s8.bf16 %v1768
        %v2313 = vunpack.c.l.s8.bf16 %v1769
        %v2314 = vunpack.c.h.s8.bf16 %v1762
        %v2315 = vunpack.c.h.s8.bf16 %v1763
        %v2316 = vunpack.c.h.s8.bf16 %v1764
        %v2317 = vunpack.c.h.s8.bf16 %v1765
        %v2318 = vunpack.c.h.s8.bf16 %v1766
        %v2319 = vunpack.c.h.s8.bf16 %v1767
        %v2320 = vunpack.c.h.s8.bf16 %v1768
        %v2321 = vunpack.c.h.s8.bf16 %v1769
        %v2322 = vunpack.c.l.s8.bf16 %v1770
        %v2323 = vunpack.c.l.s8.bf16 %v1771
        %v2324 = vunpack.c.l.s8.bf16 %v1772
        %v2325 = vunpack.c.l.s8.bf16 %v1773
        %v2326 = vunpack.c.l.s8.bf16 %v1774
        %v2327 = vunpack.c.l.s8.bf16 %v1775
        %v2328 = vunpack.c.l.s8.bf16 %v1776
        %v2329 = vunpack.c.l.s8.bf16 %v1777
        %v2330 = vunpack.c.h.s8.bf16 %v1770
        %v2331 = vunpack.c.h.s8.bf16 %v1771
        %v2332 = vunpack.c.h.s8.bf16 %v1772
        %v2333 = vunpack.c.h.s8.bf16 %v1773
        %v2334 = vunpack.c.h.s8.bf16 %v1774
        %v2335 = vunpack.c.h.s8.bf16 %v1775
        %v2336 = vunpack.c.h.s8.bf16 %v1776
        %v2337 = vunpack.c.h.s8.bf16 %v1777
        %v2338 = vunpack.c.l.s8.bf16 %v1778
        %v2339 = vunpack.c.l.s8.bf16 %v1779
        %v2340 = vunpack.c.l.s8.bf16 %v1780
        %v2341 = vunpack.c.l.s8.bf16 %v1781
        %v2342 = vunpack.c.l.s8.bf16 %v1782
        %v2343 = vunpack.c.l.s8.bf16 %v1783
        %v2344 = vunpack.c.l.s8.bf16 %v1784
        %v2345 = vunpack.c.l.s8.bf16 %v1785
        %v2346 = vunpack.c.h.s8.bf16 %v1778
        %v2347 = vunpack.c.h.s8.bf16 %v1779
        %v2348 = vunpack.c.h.s8.bf16 %v1780
        %v2349 = vunpack.c.h.s8.bf16 %v1781
        %v2350 = vunpack.c.h.s8.bf16 %v1782
        %v2351 = vunpack.c.h.s8.bf16 %v1783
        %v2352 = vunpack.c.h.s8.bf16 %v1784
        %v2353 = vunpack.c.h.s8.bf16 %v1785
        %v2354 = vunpack.c.l.s8.bf16 %v1786
        %v2355 = vunpack.c.l.s8.bf16 %v1787
        %v2356 = vunpack.c.l.s8.bf16 %v1788
        %v2357 = vunpack.c.l.s8.bf16 %v1789
        %v2358 = vunpack.c.l.s8.bf16 %v1790
        %v2359 = vunpack.c.l.s8.bf16 %v1791
        %v2360 = vunpack.c.l.s8.bf16 %v1792
        %v2361 = vunpack.c.l.s8.bf16 %v1793
        %v2362 = vunpack.c.h.s8.bf16 %v1786
        %v2363 = vunpack.c.h.s8.bf16 %v1787
        %v2364 = vunpack.c.h.s8.bf16 %v1788
        %v2365 = vunpack.c.h.s8.bf16 %v1789
        %v2366 = vunpack.c.h.s8.bf16 %v1790
        %v2367 = vunpack.c.h.s8.bf16 %v1791
        %v2368 = vunpack.c.h.s8.bf16 %v1792
        %v2369 = vunpack.c.h.s8.bf16 %v1793
        %v2370 = vunpack.c.l.s8.bf16 %v1794
        %v2371 = vunpack.c.l.s8.bf16 %v1795
        %v2372 = vunpack.c.l.s8.bf16 %v1796
        %v2373 = vunpack.c.l.s8.bf16 %v1797
        %v2374 = vunpack.c.l.s8.bf16 %v1798
        %v2375 = vunpack.c.l.s8.bf16 %v1799
        %v2376 = vunpack.c.l.s8.bf16 %v1800
        %v2377 = vunpack.c.l.s8.bf16 %v1801
        %v2378 = vunpack.c.h.s8.bf16 %v1794
        %v2379 = vunpack.c.h.s8.bf16 %v1795
        %v2380 = vunpack.c.h.s8.bf16 %v1796
        %v2381 = vunpack.c.h.s8.bf16 %v1797
        %v2382 = vunpack.c.h.s8.bf16 %v1798
        %v2383 = vunpack.c.h.s8.bf16 %v1799
        %v2384 = vunpack.c.h.s8.bf16 %v1800
        %v2385 = vunpack.c.h.s8.bf16 %v1801
        %v2386 = vunpack.c.l.s8.bf16 %v1802
        %v2387 = vunpack.c.l.s8.bf16 %v1803
        %v2388 = vunpack.c.l.s8.bf16 %v1804
        %v2389 = vunpack.c.l.s8.bf16 %v1805
        %v2390 = vunpack.c.l.s8.bf16 %v1806
        %v2391 = vunpack.c.l.s8.bf16 %v1807
        %v2392 = vunpack.c.l.s8.bf16 %v1808
        %v2393 = vunpack.c.l.s8.bf16 %v1809
        %v2394 = vunpack.c.h.s8.bf16 %v1802
        %v2395 = vunpack.c.h.s8.bf16 %v1803
        %v2396 = vunpack.c.h.s8.bf16 %v1804
        %v2397 = vunpack.c.h.s8.bf16 %v1805
        %v2398 = vunpack.c.h.s8.bf16 %v1806
        %v2399 = vunpack.c.h.s8.bf16 %v1807
        %v2400 = vunpack.c.h.s8.bf16 %v1808
        %v2401 = vunpack.c.h.s8.bf16 %v1809
        %v2402 = vunpack.c.l.s8.bf16 %v1810
        %v2403 = vunpack.c.l.s8.bf16 %v1811
        %v2404 = vunpack.c.l.s8.bf16 %v1812
        %v2405 = vunpack.c.l.s8.bf16 %v1813
        %v2406 = vunpack.c.l.s8.bf16 %v1814
        %v2407 = vunpack.c.l.s8.bf16 %v1815
        %v2408 = vunpack.c.l.s8.bf16 %v1816
        %v2409 = vunpack.c.l.s8.bf16 %v1817
        %v2410 = vunpack.c.h.s8.bf16 %v1810
        %v2411 = vunpack.c.h.s8.bf16 %v1811
        %v2412 = vunpack.c.h.s8.bf16 %v1812
        %v2413 = vunpack.c.h.s8.bf16 %v1813
        %v2414 = vunpack.c.h.s8.bf16 %v1814
        %v2415 = vunpack.c.h.s8.bf16 %v1815
        %v2416 = vunpack.c.h.s8.bf16 %v1816
        %v2417 = vunpack.c.h.s8.bf16 %v1817
        %v2418 = vunpack.c.l.s8.bf16 %v1818
        %v2419 = vunpack.c.l.s8.bf16 %v1819
        %v2420 = vunpack.c.l.s8.bf16 %v1820
        %v2421 = vunpack.c.l.s8.bf16 %v1821
        %v2422 = vunpack.c.l.s8.bf16 %v1822
        %v2423 = vunpack.c.l.s8.bf16 %v1823
        %v2424 = vunpack.c.l.s8.bf16 %v1824
        %v2425 = vunpack.c.l.s8.bf16 %v1825
        %v2426 = vunpack.c.h.s8.bf16 %v1818
        %v2427 = vunpack.c.h.s8.bf16 %v1819
        %v2428 = vunpack.c.h.s8.bf16 %v1820
        %v2429 = vunpack.c.h.s8.bf16 %v1821
        %v2430 = vunpack.c.h.s8.bf16 %v1822
        %v2431 = vunpack.c.h.s8.bf16 %v1823
        %v2432 = vunpack.c.h.s8.bf16 %v1824
        %v2433 = vunpack.c.h.s8.bf16 %v1825
        %v2434 = vunpack.c.l.s8.bf16 %v1826
        %v2435 = vunpack.c.l.s8.bf16 %v1827
        %v2436 = vunpack.c.l.s8.bf16 %v1828
        %v2437 = vunpack.c.l.s8.bf16 %v1829
        %v2438 = vunpack.c.l.s8.bf16 %v1830
        %v2439 = vunpack.c.l.s8.bf16 %v1831
        %v2440 = vunpack.c.l.s8.bf16 %v1832
        %v2441 = vunpack.c.l.s8.bf16 %v1833
        %v2442 = vunpack.c.h.s8.bf16 %v1826
        %v2443 = vunpack.c.h.s8.bf16 %v1827
        %v2444 = vunpack.c.h.s8.bf16 %v1828
        %v2445 = vunpack.c.h.s8.bf16 %v1829
        %v2446 = vunpack.c.h.s8.bf16 %v1830
        %v2447 = vunpack.c.h.s8.bf16 %v1831
        %v2448 = vunpack.c.h.s8.bf16 %v1832
        %v2449 = vunpack.c.h.s8.bf16 %v1833
        %v2450 = vunpack.c.l.s8.bf16 %v1834
        %v2451 = vunpack.c.l.s8.bf16 %v1835
        %v2452 = vunpack.c.l.s8.bf16 %v1836
        %v2453 = vunpack.c.l.s8.bf16 %v1837
        %v2454 = vunpack.c.l.s8.bf16 %v1838
        %v2455 = vunpack.c.l.s8.bf16 %v1839
        %v2456 = vunpack.c.l.s8.bf16 %v1840
        %v2457 = vunpack.c.l.s8.bf16 %v1841
        %v2458 = vunpack.c.h.s8.bf16 %v1834
        %v2459 = vunpack.c.h.s8.bf16 %v1835
        %v2460 = vunpack.c.h.s8.bf16 %v1836
        %v2461 = vunpack.c.h.s8.bf16 %v1837
        %v2462 = vunpack.c.h.s8.bf16 %v1838
        %v2463 = vunpack.c.h.s8.bf16 %v1839
        %v2464 = vunpack.c.h.s8.bf16 %v1840
        %v2465 = vunpack.c.h.s8.bf16 %v1841
        %v2466 = vunpack.c.l.s8.bf16 %v1842
        %v2467 = vunpack.c.l.s8.bf16 %v1843
        %v2468 = vunpack.c.l.s8.bf16 %v1844
        %v2469 = vunpack.c.l.s8.bf16 %v1845
        %v2470 = vunpack.c.l.s8.bf16 %v1846
        %v2471 = vunpack.c.l.s8.bf16 %v1847
        %v2472 = vunpack.c.l.s8.bf16 %v1848
        %v2473 = vunpack.c.l.s8.bf16 %v1849
        %v2474 = vunpack.c.h.s8.bf16 %v1842
        %v2475 = vunpack.c.h.s8.bf16 %v1843
        %v2476 = vunpack.c.h.s8.bf16 %v1844
        %v2477 = vunpack.c.h.s8.bf16 %v1845
        %v2478 = vunpack.c.h.s8.bf16 %v1846
        %v2479 = vunpack.c.h.s8.bf16 %v1847
        %v2480 = vunpack.c.h.s8.bf16 %v1848
        %v2481 = vunpack.c.h.s8.bf16 %v1849
        %v2482 = vunpack.c.l.s8.bf16 %v1850
        %v2483 = vunpack.c.l.s8.bf16 %v1851
        %v2484 = vunpack.c.l.s8.bf16 %v1852
        %v2485 = vunpack.c.l.s8.bf16 %v1853
        %v2486 = vunpack.c.l.s8.bf16 %v1854
        %v2487 = vunpack.c.l.s8.bf16 %v1855
        %v2488 = vunpack.c.l.s8.bf16 %v1856
        %v2489 = vunpack.c.l.s8.bf16 %v1857
        %v2490 = vunpack.c.h.s8.bf16 %v1850
        %v2491 = vunpack.c.h.s8.bf16 %v1851
        %v2492 = vunpack.c.h.s8.bf16 %v1852
        %v2493 = vunpack.c.h.s8.bf16 %v1853
        %v2494 = vunpack.c.h.s8.bf16 %v1854
        %v2495 = vunpack.c.h.s8.bf16 %v1855
        %v2496 = vunpack.c.h.s8.bf16 %v1856
        %v2497 = vunpack.c.h.s8.bf16 %v1857
        %v2498 = vpack.c.bf16 %v1528, %v1528
        %v2499 = vpack.c.bf16 %v1529, %v1529
        %v2500 = vpack.c.bf16 %v1530, %v1530
        %v2501 = vpack.c.bf16 %v1531, %v1531
        %v2502 = vpack.c.bf16 %v1532, %v1532
        %v2503 = vpack.c.bf16 %v1533, %v1533
        %v2504 = vpack.c.bf16 %v1534, %v1534
        %v2505 = vpack.c.bf16 %v1535, %v1535
        %v2506 = vpack.c.bf16 %v1536, %v1536
        %v2507 = vpack.c.bf16 %v1537, %v1537
        %2508 = vmatprep.subr.bf16.mxu0 %v1915
        %2509 = vmatpush1.bf16.msra.mxu0 %v1914
        %2510 = vmatprep.subr.bf16.mxu0 %v1907
        %2511 = vmatpush1.bf16.msra.mxu0 %v1906
        %2512 = vmatprep.subr.bf16.mxu0 %v1899
        %2513 = vmatpush1.bf16.msra.mxu0 %v1898
        %2514 = vmatprep.subr.bf16.mxu0 %v1891
        %2515 = vmatpush1.bf16.msra.mxu0 %v1890
        %2516 = vmatprep.subr.bf16.mxu0 %v1883
        %2517 = vmatpush1.bf16.msra.mxu0 %v1882
        %2518 = vmatprep.subr.bf16.mxu0 %v1875
        %2519 = vmatpush1.bf16.msra.mxu0 %v1874
        %2520 = vmatprep.subr.bf16.mxu0 %v1867
        %2521 = vmatpush1.bf16.msra.mxu0 %v1866
        %2522 = vmatprep.subr.bf16.mxu0 %v1859
        %2523 = vmatpush1.bf16.msra.mxu0 %v1858
        %2524 = vmatprep.subr.bf16.mxu0 %v1979
        %2525 = vmatpush2.bf16.msra.mxu0 %v1978
        %2526 = vmatprep.subr.bf16.mxu0 %v1971
        %2527 = vmatpush2.bf16.msra.mxu0 %v1970
        %2528 = vmatprep.subr.bf16.mxu0 %v1963
        %2529 = vmatpush2.bf16.msra.mxu0 %v1962
        %2530 = vmatprep.subr.bf16.mxu0 %v1955
        %2531 = vmatpush2.bf16.msra.mxu0 %v1954
        %2532 = vmatprep.subr.bf16.mxu0 %v1947
        %2533 = vmatpush2.bf16.msra.mxu0 %v1946
        %2534 = vmatprep.subr.bf16.mxu0 %v1939
        %2535 = vmatpush2.bf16.msra.mxu0 %v1938
        %2536 = vmatprep.subr.bf16.mxu0 %v1931
        %2537 = vmatpush2.bf16.msra.mxu0 %v1930
        %2538 = vmatprep.subr.bf16.mxu0 %v1923
        %2539 = vmatpush2.bf16.msra.mxu0 %v1922
        %2540 = vmatprep.mubr.bf16.mxu0 %v2499
        %2541 = vmatmul.mubr.bf16.gmra.mxu0 %v2498
        %v2542 = vpop.f32.mrf.mxu0
        %v2543 = vadd.f32 0.0, %v2542
        %v2544 = vpop.f32.mrf.mxu0
        %v2545 = vadd.f32 0.0, %v2544
        %v2546 = vpop.f32.mrf.mxu0
        %v2547 = vpop.f32.mrf.mxu0
        %2548 = vdwg.mxu0
        %2549 = vmatprep.subr.bf16.mxu0 %v2043
        %2550 = vmatpush1.bf16.msra.mxu0 %v2042
        %2551 = vmatprep.subr.bf16.mxu0 %v2035
        %2552 = vmatpush1.bf16.msra.mxu0 %v2034
        %2553 = vmatprep.subr.bf16.mxu0 %v2027
        %2554 = vmatpush1.bf16.msra.mxu0 %v2026
        %2555 = vmatprep.subr.bf16.mxu0 %v2019
        %2556 = vmatpush1.bf16.msra.mxu0 %v2018
        %2557 = vmatprep.subr.bf16.mxu0 %v2011
        %2558 = vmatpush1.bf16.msra.mxu0 %v2010
        %2559 = vmatprep.subr.bf16.mxu0 %v2003
        %2560 = vmatpush1.bf16.msra.mxu0 %v2002
        %2561 = vmatprep.subr.bf16.mxu0 %v1995
        %2562 = vmatpush1.bf16.msra.mxu0 %v1994
        %2563 = vmatprep.subr.bf16.mxu0 %v1987
        %2564 = vmatpush1.bf16.msra.mxu0 %v1986
        %2565 = vmatprep.subr.bf16.mxu0 %v2107
        %2566 = vmatpush2.bf16.msra.mxu0 %v2106
        %2567 = vmatprep.subr.bf16.mxu0 %v2099
        %2568 = vmatpush2.bf16.msra.mxu0 %v2098
        %2569 = vmatprep.subr.bf16.mxu0 %v2091
        %2570 = vmatpush2.bf16.msra.mxu0 %v2090
        %2571 = vmatprep.subr.bf16.mxu0 %v2083
        %2572 = vmatpush2.bf16.msra.mxu0 %v2082
        %2573 = vmatprep.subr.bf16.mxu0 %v2075
        %2574 = vmatpush2.bf16.msra.mxu0 %v2074
        %2575 = vmatprep.subr.bf16.mxu0 %v2067
        %2576 = vmatpush2.bf16.msra.mxu0 %v2066
        %2577 = vmatprep.subr.bf16.mxu0 %v2059
        %2578 = vmatpush2.bf16.msra.mxu0 %v2058
        %2579 = vmatprep.subr.bf16.mxu0 %v2051
        %2580 = vmatpush2.bf16.msra.mxu0 %v2050
        %2581 = vmatprep.mubr.bf16.mxu0 %v2501
        %2582 = vmatmul.mubr.bf16.gmra.mxu0 %v2500
        %v2583 = vpop.f32.mrf.mxu0
        %v2584 = vadd.f32 %v2543, %v2583
        %v2585 = vpop.f32.mrf.mxu0
        %v2586 = vadd.f32 %v2545, %v2585
        %v2587 = vpop.f32.mrf.mxu0
        %v2588 = vpop.f32.mrf.mxu0
        %2589 = vdwg.mxu0
        %2590 = vmatprep.subr.bf16.mxu0 %v2171
        %2591 = vmatpush1.bf16.msra.mxu0 %v2170
        %2592 = vmatprep.subr.bf16.mxu0 %v2163
        %2593 = vmatpush1.bf16.msra.mxu0 %v2162
        %2594 = vmatprep.subr.bf16.mxu0 %v2155
        %2595 = vmatpush1.bf16.msra.mxu0 %v2154
        %2596 = vmatprep.subr.bf16.mxu0 %v2147
        %2597 = vmatpush1.bf16.msra.mxu0 %v2146
        %2598 = vmatprep.subr.bf16.mxu0 %v2139
        %2599 = vmatpush1.bf16.msra.mxu0 %v2138
        %2600 = vmatprep.subr.bf16.mxu0 %v2131
        %2601 = vmatpush1.bf16.msra.mxu0 %v2130
        %2602 = vmatprep.subr.bf16.mxu0 %v2123
        %2603 = vmatpush1.bf16.msra.mxu0 %v2122
        %2604 = vmatprep.subr.bf16.mxu0 %v2115
        %2605 = vmatpush1.bf16.msra.mxu0 %v2114
        %2606 = vmatprep.subr.bf16.mxu0 %v2235
        %2607 = vmatpush2.bf16.msra.mxu0 %v2234
        %2608 = vmatprep.subr.bf16.mxu0 %v2227
        %2609 = vmatpush2.bf16.msra.mxu0 %v2226
        %2610 = vmatprep.subr.bf16.mxu0 %v2219
        %2611 = vmatpush2.bf16.msra.mxu0 %v2218
        %2612 = vmatprep.subr.bf16.mxu0 %v2211
        %2613 = vmatpush2.bf16.msra.mxu0 %v2210
        %2614 = vmatprep.subr.bf16.mxu0 %v2203
        %2615 = vmatpush2.bf16.msra.mxu0 %v2202
        %2616 = vmatprep.subr.bf16.mxu0 %v2195
        %2617 = vmatpush2.bf16.msra.mxu0 %v2194
        %2618 = vmatprep.subr.bf16.mxu0 %v2187
        %2619 = vmatpush2.bf16.msra.mxu0 %v2186
        %2620 = vmatprep.subr.bf16.mxu0 %v2179
        %2621 = vmatpush2.bf16.msra.mxu0 %v2178
        %2622 = vmatprep.mubr.bf16.mxu0 %v2503
        %2623 = vmatmul.mubr.bf16.gmra.mxu0 %v2502
        %v2624 = vpop.f32.mrf.mxu0
        %v2625 = vadd.f32 %v2584, %v2624
        %v2626 = vpop.f32.mrf.mxu0
        %v2627 = vadd.f32 %v2586, %v2626
        %v2628 = vpop.f32.mrf.mxu0
        %v2629 = vpop.f32.mrf.mxu0
        %2630 = vdwg.mxu0
        %2631 = vmatprep.subr.bf16.mxu0 %v2299
        %2632 = vmatpush1.bf16.msra.mxu0 %v2298
        %2633 = vmatprep.subr.bf16.mxu0 %v2291
        %2634 = vmatpush1.bf16.msra.mxu0 %v2290
        %2635 = vmatprep.subr.bf16.mxu0 %v2283
        %2636 = vmatpush1.bf16.msra.mxu0 %v2282
        %2637 = vmatprep.subr.bf16.mxu0 %v2275
        %2638 = vmatpush1.bf16.msra.mxu0 %v2274
        %2639 = vmatprep.subr.bf16.mxu0 %v2267
        %2640 = vmatpush1.bf16.msra.mxu0 %v2266
        %2641 = vmatprep.subr.bf16.mxu0 %v2259
        %2642 = vmatpush1.bf16.msra.mxu0 %v2258
        %2643 = vmatprep.subr.bf16.mxu0 %v2251
        %2644 = vmatpush1.bf16.msra.mxu0 %v2250
        %2645 = vmatprep.subr.bf16.mxu0 %v2243
        %2646 = vmatpush1.bf16.msra.mxu0 %v2242
        %2647 = vmatprep.subr.bf16.mxu0 %v2363
        %2648 = vmatpush2.bf16.msra.mxu0 %v2362
        %2649 = vmatprep.subr.bf16.mxu0 %v2355
        %2650 = vmatpush2.bf16.msra.mxu0 %v2354
        %2651 = vmatprep.subr.bf16.mxu0 %v2347
        %2652 = vmatpush2.bf16.msra.mxu0 %v2346
        %2653 = vmatprep.subr.bf16.mxu0 %v2339
        %2654 = vmatpush2.bf16.msra.mxu0 %v2338
        %2655 = vmatprep.subr.bf16.mxu0 %v2331
        %2656 = vmatpush2.bf16.msra.mxu0 %v2330
        %2657 = vmatprep.subr.bf16.mxu0 %v2323
        %2658 = vmatpush2.bf16.msra.mxu0 %v2322
        %2659 = vmatprep.subr.bf16.mxu0 %v2315
        %2660 = vmatpush2.bf16.msra.mxu0 %v2314
        %2661 = vmatprep.subr.bf16.mxu0 %v2307
        %2662 = vmatpush2.bf16.msra.mxu0 %v2306
        %2663 = vmatprep.mubr.bf16.mxu0 %v2505
        %2664 = vmatmul.mubr.bf16.gmra.mxu0 %v2504
        %v2665 = vpop.f32.mrf.mxu0
        %v2666 = vadd.f32 %v2625, %v2665
        %v2667 = vpop.f32.mrf.mxu0
        %v2668 = vadd.f32 %v2627, %v2667
        %v2669 = vpop.f32.mrf.mxu0
        %v2670 = vpop.f32.mrf.mxu0
        %2671 = vdwg.mxu0
        %2672 = vmatprep.subr.bf16.mxu0 %v2427
        %2673 = vmatpush1.bf16.msra.mxu0 %v2426
        %2674 = vmatprep.subr.bf16.mxu0 %v2419
        %2675 = vmatpush1.bf16.msra.mxu0 %v2418
        %2676 = vmatprep.subr.bf16.mxu0 %v2411
        %2677 = vmatpush1.bf16.msra.mxu0 %v2410
        %2678 = vmatprep.subr.bf16.mxu0 %v2403
        %2679 = vmatpush1.bf16.msra.mxu0 %v2402
        %2680 = vmatprep.subr.bf16.mxu0 %v2395
        %2681 = vmatpush1.bf16.msra.mxu0 %v2394
        %2682 = vmatprep.subr.bf16.mxu0 %v2387
        %2683 = vmatpush1.bf16.msra.mxu0 %v2386
        %2684 = vmatprep.subr.bf16.mxu0 %v2379
        %2685 = vmatpush1.bf16.msra.mxu0 %v2378
        %2686 = vmatprep.subr.bf16.mxu0 %v2371
        %2687 = vmatpush1.bf16.msra.mxu0 %v2370
        %2688 = vmatprep.subr.bf16.mxu0 %v2491
        %2689 = vmatpush2.bf16.msra.mxu0 %v2490
        %2690 = vmatprep.subr.bf16.mxu0 %v2483
        %2691 = vmatpush2.bf16.msra.mxu0 %v2482
        %2692 = vmatprep.subr.bf16.mxu0 %v2475
        %2693 = vmatpush2.bf16.msra.mxu0 %v2474
        %2694 = vmatprep.subr.bf16.mxu0 %v2467
        %2695 = vmatpush2.bf16.msra.mxu0 %v2466
        %2696 = vmatprep.subr.bf16.mxu0 %v2459
        %2697 = vmatpush2.bf16.msra.mxu0 %v2458
        %2698 = vmatprep.subr.bf16.mxu0 %v2451
        %2699 = vmatpush2.bf16.msra.mxu0 %v2450
        %2700 = vmatprep.subr.bf16.mxu0 %v2443
        %2701 = vmatpush2.bf16.msra.mxu0 %v2442
        %2702 = vmatprep.subr.bf16.mxu0 %v2435
        %2703 = vmatpush2.bf16.msra.mxu0 %v2434
        %2704 = vmatprep.mubr.bf16.mxu0 %v2507
        %2705 = vmatmul.mubr.bf16.gmra.mxu0 %v2506
        %v2706 = vpop.f32.mrf.mxu0
        %v2707 = vadd.f32 %v2666, %v2706
        %v2708 = vpop.f32.mrf.mxu0
        %v2709 = vadd.f32 %v2668, %v2708
        %v2710 = vpop.f32.mrf.mxu0
        %v2711 = vpop.f32.mrf.mxu0
        %2712 = vdwg.mxu0
        %2713 = vmatprep.subr.bf16.mxu0 %v1917
        %2714 = vmatpush1.bf16.msra.mxu0 %v1916
        %2715 = vmatprep.subr.bf16.mxu0 %v1909
        %2716 = vmatpush1.bf16.msra.mxu0 %v1908
        %2717 = vmatprep.subr.bf16.mxu0 %v1901
        %2718 = vmatpush1.bf16.msra.mxu0 %v1900
        %2719 = vmatprep.subr.bf16.mxu0 %v1893
        %2720 = vmatpush1.bf16.msra.mxu0 %v1892
        %2721 = vmatprep.subr.bf16.mxu0 %v1885
        %2722 = vmatpush1.bf16.msra.mxu0 %v1884
        %2723 = vmatprep.subr.bf16.mxu0 %v1877
        %2724 = vmatpush1.bf16.msra.mxu0 %v1876
        %2725 = vmatprep.subr.bf16.mxu0 %v1869
        %2726 = vmatpush1.bf16.msra.mxu0 %v1868
        %2727 = vmatprep.subr.bf16.mxu0 %v1861
        %2728 = vmatpush1.bf16.msra.mxu0 %v1860
        %2729 = vmatprep.subr.bf16.mxu0 %v1981
        %2730 = vmatpush2.bf16.msra.mxu0 %v1980
        %2731 = vmatprep.subr.bf16.mxu0 %v1973
        %2732 = vmatpush2.bf16.msra.mxu0 %v1972
        %2733 = vmatprep.subr.bf16.mxu0 %v1965
        %2734 = vmatpush2.bf16.msra.mxu0 %v1964
        %2735 = vmatprep.subr.bf16.mxu0 %v1957
        %2736 = vmatpush2.bf16.msra.mxu0 %v1956
        %2737 = vmatprep.subr.bf16.mxu0 %v1949
        %2738 = vmatpush2.bf16.msra.mxu0 %v1948
        %2739 = vmatprep.subr.bf16.mxu0 %v1941
        %2740 = vmatpush2.bf16.msra.mxu0 %v1940
        %2741 = vmatprep.subr.bf16.mxu0 %v1933
        %2742 = vmatpush2.bf16.msra.mxu0 %v1932
        %2743 = vmatprep.subr.bf16.mxu0 %v1925
        %2744 = vmatpush2.bf16.msra.mxu0 %v1924
        %2745 = vmatprep.mubr.bf16.mxu0 %v2499
        %2746 = vmatmul.mubr.bf16.gmra.mxu0 %v2498
        %v2747 = vpop.f32.mrf.mxu0
        %v2748 = vadd.f32 0.0, %v2747
        %v2749 = vpop.f32.mrf.mxu0
        %v2750 = vadd.f32 0.0, %v2749
        %v2751 = vpop.f32.mrf.mxu0
        %v2752 = vpop.f32.mrf.mxu0
        %2753 = vdwg.mxu0
        %2754 = vmatprep.subr.bf16.mxu0 %v2045
        %2755 = vmatpush1.bf16.msra.mxu0 %v2044
        %2756 = vmatprep.subr.bf16.mxu0 %v2037
        %2757 = vmatpush1.bf16.msra.mxu0 %v2036
        %2758 = vmatprep.subr.bf16.mxu0 %v2029
        %2759 = vmatpush1.bf16.msra.mxu0 %v2028
        %2760 = vmatprep.subr.bf16.mxu0 %v2021
        %2761 = vmatpush1.bf16.msra.mxu0 %v2020
        %2762 = vmatprep.subr.bf16.mxu0 %v2013
        %2763 = vmatpush1.bf16.msra.mxu0 %v2012
        %2764 = vmatprep.subr.bf16.mxu0 %v2005
        %2765 = vmatpush1.bf16.msra.mxu0 %v2004
        %2766 = vmatprep.subr.bf16.mxu0 %v1997
        %2767 = vmatpush1.bf16.msra.mxu0 %v1996
        %2768 = vmatprep.subr.bf16.mxu0 %v1989
        %2769 = vmatpush1.bf16.msra.mxu0 %v1988
        %2770 = vmatprep.subr.bf16.mxu0 %v2109
        %2771 = vmatpush2.bf16.msra.mxu0 %v2108
        %2772 = vmatprep.subr.bf16.mxu0 %v2101
        %2773 = vmatpush2.bf16.msra.mxu0 %v2100
        %2774 = vmatprep.subr.bf16.mxu0 %v2093
        %2775 = vmatpush2.bf16.msra.mxu0 %v2092
        %2776 = vmatprep.subr.bf16.mxu0 %v2085
        %2777 = vmatpush2.bf16.msra.mxu0 %v2084
        %2778 = vmatprep.subr.bf16.mxu0 %v2077
        %2779 = vmatpush2.bf16.msra.mxu0 %v2076
        %2780 = vmatprep.subr.bf16.mxu0 %v2069
        %2781 = vmatpush2.bf16.msra.mxu0 %v2068
        %2782 = vmatprep.subr.bf16.mxu0 %v2061
        %2783 = vmatpush2.bf16.msra.mxu0 %v2060
        %2784 = vmatprep.subr.bf16.mxu0 %v2053
        %2785 = vmatpush2.bf16.msra.mxu0 %v2052
        %2786 = vmatprep.mubr.bf16.mxu0 %v2501
        %2787 = vmatmul.mubr.bf16.gmra.mxu0 %v2500
        %v2788 = vpop.f32.mrf.mxu0
        %v2789 = vadd.f32 %v2748, %v2788
        %v2790 = vpop.f32.mrf.mxu0
        %v2791 = vadd.f32 %v2750, %v2790
        %v2792 = vpop.f32.mrf.mxu0
        %v2793 = vpop.f32.mrf.mxu0
        %2794 = vdwg.mxu0
        %2795 = vmatprep.subr.bf16.mxu0 %v2173
        %2796 = vmatpush1.bf16.msra.mxu0 %v2172
        %2797 = vmatprep.subr.bf16.mxu0 %v2165
        %2798 = vmatpush1.bf16.msra.mxu0 %v2164
        %2799 = vmatprep.subr.bf16.mxu0 %v2157
        %2800 = vmatpush1.bf16.msra.mxu0 %v2156
        %2801 = vmatprep.subr.bf16.mxu0 %v2149
        %2802 = vmatpush1.bf16.msra.mxu0 %v2148
        %2803 = vmatprep.subr.bf16.mxu0 %v2141
        %2804 = vmatpush1.bf16.msra.mxu0 %v2140
        %2805 = vmatprep.subr.bf16.mxu0 %v2133
        %2806 = vmatpush1.bf16.msra.mxu0 %v2132
        %2807 = vmatprep.subr.bf16.mxu0 %v2125
        %2808 = vmatpush1.bf16.msra.mxu0 %v2124
        %2809 = vmatprep.subr.bf16.mxu0 %v2117
        %2810 = vmatpush1.bf16.msra.mxu0 %v2116
        %2811 = vmatprep.subr.bf16.mxu0 %v2237
        %2812 = vmatpush2.bf16.msra.mxu0 %v2236
        %2813 = vmatprep.subr.bf16.mxu0 %v2229
        %2814 = vmatpush2.bf16.msra.mxu0 %v2228
        %2815 = vmatprep.subr.bf16.mxu0 %v2221
        %2816 = vmatpush2.bf16.msra.mxu0 %v2220
        %2817 = vmatprep.subr.bf16.mxu0 %v2213
        %2818 = vmatpush2.bf16.msra.mxu0 %v2212
        %2819 = vmatprep.subr.bf16.mxu0 %v2205
        %2820 = vmatpush2.bf16.msra.mxu0 %v2204
        %2821 = vmatprep.subr.bf16.mxu0 %v2197
        %2822 = vmatpush2.bf16.msra.mxu0 %v2196
        %2823 = vmatprep.subr.bf16.mxu0 %v2189
        %2824 = vmatpush2.bf16.msra.mxu0 %v2188
        %2825 = vmatprep.subr.bf16.mxu0 %v2181
        %2826 = vmatpush2.bf16.msra.mxu0 %v2180
        %2827 = vmatprep.mubr.bf16.mxu0 %v2503
        %2828 = vmatmul.mubr.bf16.gmra.mxu0 %v2502
        %v2829 = vpop.f32.mrf.mxu0
        %v2830 = vadd.f32 %v2789, %v2829
        %v2831 = vpop.f32.mrf.mxu0
        %v2832 = vadd.f32 %v2791, %v2831
        %v2833 = vpop.f32.mrf.mxu0
        %v2834 = vpop.f32.mrf.mxu0
        %2835 = vdwg.mxu0
        %2836 = vmatprep.subr.bf16.mxu0 %v2301
        %2837 = vmatpush1.bf16.msra.mxu0 %v2300
        %2838 = vmatprep.subr.bf16.mxu0 %v2293
        %2839 = vmatpush1.bf16.msra.mxu0 %v2292
        %2840 = vmatprep.subr.bf16.mxu0 %v2285
        %2841 = vmatpush1.bf16.msra.mxu0 %v2284
        %2842 = vmatprep.subr.bf16.mxu0 %v2277
        %2843 = vmatpush1.bf16.msra.mxu0 %v2276
        %2844 = vmatprep.subr.bf16.mxu0 %v2269
        %2845 = vmatpush1.bf16.msra.mxu0 %v2268
        %2846 = vmatprep.subr.bf16.mxu0 %v2261
        %2847 = vmatpush1.bf16.msra.mxu0 %v2260
        %2848 = vmatprep.subr.bf16.mxu0 %v2253
        %2849 = vmatpush1.bf16.msra.mxu0 %v2252
        %2850 = vmatprep.subr.bf16.mxu0 %v2245
        %2851 = vmatpush1.bf16.msra.mxu0 %v2244
        %2852 = vmatprep.subr.bf16.mxu0 %v2365
        %2853 = vmatpush2.bf16.msra.mxu0 %v2364
        %2854 = vmatprep.subr.bf16.mxu0 %v2357
        %2855 = vmatpush2.bf16.msra.mxu0 %v2356
        %2856 = vmatprep.subr.bf16.mxu0 %v2349
        %2857 = vmatpush2.bf16.msra.mxu0 %v2348
        %2858 = vmatprep.subr.bf16.mxu0 %v2341
        %2859 = vmatpush2.bf16.msra.mxu0 %v2340
        %2860 = vmatprep.subr.bf16.mxu0 %v2333
        %2861 = vmatpush2.bf16.msra.mxu0 %v2332
        %2862 = vmatprep.subr.bf16.mxu0 %v2325
        %2863 = vmatpush2.bf16.msra.mxu0 %v2324
        %2864 = vmatprep.subr.bf16.mxu0 %v2317
        %2865 = vmatpush2.bf16.msra.mxu0 %v2316
        %2866 = vmatprep.subr.bf16.mxu0 %v2309
        %2867 = vmatpush2.bf16.msra.mxu0 %v2308
        %2868 = vmatprep.mubr.bf16.mxu0 %v2505
        %2869 = vmatmul.mubr.bf16.gmra.mxu0 %v2504
        %v2870 = vpop.f32.mrf.mxu0
        %v2871 = vadd.f32 %v2830, %v2870
        %v2872 = vpop.f32.mrf.mxu0
        %v2873 = vadd.f32 %v2832, %v2872
        %v2874 = vpop.f32.mrf.mxu0
        %v2875 = vpop.f32.mrf.mxu0
        %2876 = vdwg.mxu0
        %2877 = vmatprep.subr.bf16.mxu0 %v2429
        %2878 = vmatpush1.bf16.msra.mxu0 %v2428
        %2879 = vmatprep.subr.bf16.mxu0 %v2421
        %2880 = vmatpush1.bf16.msra.mxu0 %v2420
        %2881 = vmatprep.subr.bf16.mxu0 %v2413
        %2882 = vmatpush1.bf16.msra.mxu0 %v2412
        %2883 = vmatprep.subr.bf16.mxu0 %v2405
        %2884 = vmatpush1.bf16.msra.mxu0 %v2404
        %2885 = vmatprep.subr.bf16.mxu0 %v2397
        %2886 = vmatpush1.bf16.msra.mxu0 %v2396
        %2887 = vmatprep.subr.bf16.mxu0 %v2389
        %2888 = vmatpush1.bf16.msra.mxu0 %v2388
        %2889 = vmatprep.subr.bf16.mxu0 %v2381
        %2890 = vmatpush1.bf16.msra.mxu0 %v2380
        %2891 = vmatprep.subr.bf16.mxu0 %v2373
        %2892 = vmatpush1.bf16.msra.mxu0 %v2372
        %2893 = vmatprep.subr.bf16.mxu0 %v2493
        %2894 = vmatpush2.bf16.msra.mxu0 %v2492
        %2895 = vmatprep.subr.bf16.mxu0 %v2485
        %2896 = vmatpush2.bf16.msra.mxu0 %v2484
        %2897 = vmatprep.subr.bf16.mxu0 %v2477
        %2898 = vmatpush2.bf16.msra.mxu0 %v2476
        %2899 = vmatprep.subr.bf16.mxu0 %v2469
        %2900 = vmatpush2.bf16.msra.mxu0 %v2468
        %2901 = vmatprep.subr.bf16.mxu0 %v2461
        %2902 = vmatpush2.bf16.msra.mxu0 %v2460
        %2903 = vmatprep.subr.bf16.mxu0 %v2453
        %2904 = vmatpush2.bf16.msra.mxu0 %v2452
        %2905 = vmatprep.subr.bf16.mxu0 %v2445
        %2906 = vmatpush2.bf16.msra.mxu0 %v2444
        %2907 = vmatprep.subr.bf16.mxu0 %v2437
        %2908 = vmatpush2.bf16.msra.mxu0 %v2436
        %2909 = vmatprep.mubr.bf16.mxu0 %v2507
        %2910 = vmatmul.mubr.bf16.gmra.mxu0 %v2506
        %v2911 = vpop.f32.mrf.mxu0
        %v2912 = vadd.f32 %v2871, %v2911
        %v2913 = vpop.f32.mrf.mxu0
        %v2914 = vadd.f32 %v2873, %v2913
        %v2915 = vpop.f32.mrf.mxu0
        %v2916 = vpop.f32.mrf.mxu0
        %2917 = vdwg.mxu0
        %2918 = vmatprep.subr.bf16.mxu0 %v1919
        %2919 = vmatpush1.bf16.msra.mxu0 %v1918
        %2920 = vmatprep.subr.bf16.mxu0 %v1911
        %2921 = vmatpush1.bf16.msra.mxu0 %v1910
        %2922 = vmatprep.subr.bf16.mxu0 %v1903
        %2923 = vmatpush1.bf16.msra.mxu0 %v1902
        %2924 = vmatprep.subr.bf16.mxu0 %v1895
        %2925 = vmatpush1.bf16.msra.mxu0 %v1894
        %2926 = vmatprep.subr.bf16.mxu0 %v1887
        %2927 = vmatpush1.bf16.msra.mxu0 %v1886
        %2928 = vmatprep.subr.bf16.mxu0 %v1879
        %2929 = vmatpush1.bf16.msra.mxu0 %v1878
        %2930 = vmatprep.subr.bf16.mxu0 %v1871
        %2931 = vmatpush1.bf16.msra.mxu0 %v1870
        %2932 = vmatprep.subr.bf16.mxu0 %v1863
        %2933 = vmatpush1.bf16.msra.mxu0 %v1862
        %2934 = vmatprep.subr.bf16.mxu0 %v1983
        %2935 = vmatpush2.bf16.msra.mxu0 %v1982
        %2936 = vmatprep.subr.bf16.mxu0 %v1975
        %2937 = vmatpush2.bf16.msra.mxu0 %v1974
        %2938 = vmatprep.subr.bf16.mxu0 %v1967
        %2939 = vmatpush2.bf16.msra.mxu0 %v1966
        %2940 = vmatprep.subr.bf16.mxu0 %v1959
        %2941 = vmatpush2.bf16.msra.mxu0 %v1958
        %2942 = vmatprep.subr.bf16.mxu0 %v1951
        %2943 = vmatpush2.bf16.msra.mxu0 %v1950
        %2944 = vmatprep.subr.bf16.mxu0 %v1943
        %2945 = vmatpush2.bf16.msra.mxu0 %v1942
        %2946 = vmatprep.subr.bf16.mxu0 %v1935
        %2947 = vmatpush2.bf16.msra.mxu0 %v1934
        %2948 = vmatprep.subr.bf16.mxu0 %v1927
        %2949 = vmatpush2.bf16.msra.mxu0 %v1926
        %2950 = vmatprep.mubr.bf16.mxu0 %v2499
        %2951 = vmatmul.mubr.bf16.gmra.mxu0 %v2498
        %v2952 = vpop.f32.mrf.mxu0
        %v2953 = vadd.f32 0.0, %v2952
        %v2954 = vpop.f32.mrf.mxu0
        %v2955 = vadd.f32 0.0, %v2954
        %v2956 = vpop.f32.mrf.mxu0
        %v2957 = vpop.f32.mrf.mxu0
        %2958 = vdwg.mxu0
        %2959 = vmatprep.subr.bf16.mxu0 %v2047
        %2960 = vmatpush1.bf16.msra.mxu0 %v2046
        %2961 = vmatprep.subr.bf16.mxu0 %v2039
        %2962 = vmatpush1.bf16.msra.mxu0 %v2038
        %2963 = vmatprep.subr.bf16.mxu0 %v2031
        %2964 = vmatpush1.bf16.msra.mxu0 %v2030
        %2965 = vmatprep.subr.bf16.mxu0 %v2023
        %2966 = vmatpush1.bf16.msra.mxu0 %v2022
        %2967 = vmatprep.subr.bf16.mxu0 %v2015
        %2968 = vmatpush1.bf16.msra.mxu0 %v2014
        %2969 = vmatprep.subr.bf16.mxu0 %v2007
        %2970 = vmatpush1.bf16.msra.mxu0 %v2006
        %2971 = vmatprep.subr.bf16.mxu0 %v1999
        %2972 = vmatpush1.bf16.msra.mxu0 %v1998
        %2973 = vmatprep.subr.bf16.mxu0 %v1991
        %2974 = vmatpush1.bf16.msra.mxu0 %v1990
        %2975 = vmatprep.subr.bf16.mxu0 %v2111
        %2976 = vmatpush2.bf16.msra.mxu0 %v2110
        %2977 = vmatprep.subr.bf16.mxu0 %v2103
        %2978 = vmatpush2.bf16.msra.mxu0 %v2102
        %2979 = vmatprep.subr.bf16.mxu0 %v2095
        %2980 = vmatpush2.bf16.msra.mxu0 %v2094
        %2981 = vmatprep.subr.bf16.mxu0 %v2087
        %2982 = vmatpush2.bf16.msra.mxu0 %v2086
        %2983 = vmatprep.subr.bf16.mxu0 %v2079
        %2984 = vmatpush2.bf16.msra.mxu0 %v2078
        %2985 = vmatprep.subr.bf16.mxu0 %v2071
        %2986 = vmatpush2.bf16.msra.mxu0 %v2070
        %2987 = vmatprep.subr.bf16.mxu0 %v2063
        %2988 = vmatpush2.bf16.msra.mxu0 %v2062
        %2989 = vmatprep.subr.bf16.mxu0 %v2055
        %2990 = vmatpush2.bf16.msra.mxu0 %v2054
        %2991 = vmatprep.mubr.bf16.mxu0 %v2501
        %2992 = vmatmul.mubr.bf16.gmra.mxu0 %v2500
        %v2993 = vpop.f32.mrf.mxu0
        %v2994 = vadd.f32 %v2953, %v2993
        %v2995 = vpop.f32.mrf.mxu0
        %v2996 = vadd.f32 %v2955, %v2995
        %v2997 = vpop.f32.mrf.mxu0
        %v2998 = vpop.f32.mrf.mxu0
        %2999 = vdwg.mxu0
        %3000 = vmatprep.subr.bf16.mxu0 %v2175
        %3001 = vmatpush1.bf16.msra.mxu0 %v2174
        %3002 = vmatprep.subr.bf16.mxu0 %v2167
        %3003 = vmatpush1.bf16.msra.mxu0 %v2166
        %3004 = vmatprep.subr.bf16.mxu0 %v2159
        %3005 = vmatpush1.bf16.msra.mxu0 %v2158
        %3006 = vmatprep.subr.bf16.mxu0 %v2151
        %3007 = vmatpush1.bf16.msra.mxu0 %v2150
        %3008 = vmatprep.subr.bf16.mxu0 %v2143
        %3009 = vmatpush1.bf16.msra.mxu0 %v2142
        %3010 = vmatprep.subr.bf16.mxu0 %v2135
        %3011 = vmatpush1.bf16.msra.mxu0 %v2134
        %3012 = vmatprep.subr.bf16.mxu0 %v2127
        %3013 = vmatpush1.bf16.msra.mxu0 %v2126
        %3014 = vmatprep.subr.bf16.mxu0 %v2119
        %3015 = vmatpush1.bf16.msra.mxu0 %v2118
        %3016 = vmatprep.subr.bf16.mxu0 %v2239
        %3017 = vmatpush2.bf16.msra.mxu0 %v2238
        %3018 = vmatprep.subr.bf16.mxu0 %v2231
        %3019 = vmatpush2.bf16.msra.mxu0 %v2230
        %3020 = vmatprep.subr.bf16.mxu0 %v2223
        %3021 = vmatpush2.bf16.msra.mxu0 %v2222
        %3022 = vmatprep.subr.bf16.mxu0 %v2215
        %3023 = vmatpush2.bf16.msra.mxu0 %v2214
        %3024 = vmatprep.subr.bf16.mxu0 %v2207
        %3025 = vmatpush2.bf16.msra.mxu0 %v2206
        %3026 = vmatprep.subr.bf16.mxu0 %v2199
        %3027 = vmatpush2.bf16.msra.mxu0 %v2198
        %3028 = vmatprep.subr.bf16.mxu0 %v2191
        %3029 = vmatpush2.bf16.msra.mxu0 %v2190
        %3030 = vmatprep.subr.bf16.mxu0 %v2183
        %3031 = vmatpush2.bf16.msra.mxu0 %v2182
        %3032 = vmatprep.mubr.bf16.mxu0 %v2503
        %3033 = vmatmul.mubr.bf16.gmra.mxu0 %v2502
        %v3034 = vpop.f32.mrf.mxu0
        %v3035 = vadd.f32 %v2994, %v3034
        %v3036 = vpop.f32.mrf.mxu0
        %v3037 = vadd.f32 %v2996, %v3036
        %v3038 = vpop.f32.mrf.mxu0
        %v3039 = vpop.f32.mrf.mxu0
        %3040 = vdwg.mxu0
        %3041 = vmatprep.subr.bf16.mxu0 %v2303
        %3042 = vmatpush1.bf16.msra.mxu0 %v2302
        %3043 = vmatprep.subr.bf16.mxu0 %v2295
        %3044 = vmatpush1.bf16.msra.mxu0 %v2294
        %3045 = vmatprep.subr.bf16.mxu0 %v2287
        %3046 = vmatpush1.bf16.msra.mxu0 %v2286
        %3047 = vmatprep.subr.bf16.mxu0 %v2279
        %3048 = vmatpush1.bf16.msra.mxu0 %v2278
        %3049 = vmatprep.subr.bf16.mxu0 %v2271
        %3050 = vmatpush1.bf16.msra.mxu0 %v2270
        %3051 = vmatprep.subr.bf16.mxu0 %v2263
        %3052 = vmatpush1.bf16.msra.mxu0 %v2262
        %3053 = vmatprep.subr.bf16.mxu0 %v2255
        %3054 = vmatpush1.bf16.msra.mxu0 %v2254
        %3055 = vmatprep.subr.bf16.mxu0 %v2247
        %3056 = vmatpush1.bf16.msra.mxu0 %v2246
        %3057 = vmatprep.subr.bf16.mxu0 %v2367
        %3058 = vmatpush2.bf16.msra.mxu0 %v2366
        %3059 = vmatprep.subr.bf16.mxu0 %v2359
        %3060 = vmatpush2.bf16.msra.mxu0 %v2358
        %3061 = vmatprep.subr.bf16.mxu0 %v2351
        %3062 = vmatpush2.bf16.msra.mxu0 %v2350
        %3063 = vmatprep.subr.bf16.mxu0 %v2343
        %3064 = vmatpush2.bf16.msra.mxu0 %v2342
        %3065 = vmatprep.subr.bf16.mxu0 %v2335
        %3066 = vmatpush2.bf16.msra.mxu0 %v2334
        %3067 = vmatprep.subr.bf16.mxu0 %v2327
        %3068 = vmatpush2.bf16.msra.mxu0 %v2326
        %3069 = vmatprep.subr.bf16.mxu0 %v2319
        %3070 = vmatpush2.bf16.msra.mxu0 %v2318
        %3071 = vmatprep.subr.bf16.mxu0 %v2311
        %3072 = vmatpush2.bf16.msra.mxu0 %v2310
        %3073 = vmatprep.mubr.bf16.mxu0 %v2505
        %3074 = vmatmul.mubr.bf16.gmra.mxu0 %v2504
        %v3075 = vpop.f32.mrf.mxu0
        %v3076 = vadd.f32 %v3035, %v3075
        %v3077 = vpop.f32.mrf.mxu0
        %v3078 = vadd.f32 %v3037, %v3077
        %v3079 = vpop.f32.mrf.mxu0
        %v3080 = vpop.f32.mrf.mxu0
        %3081 = vdwg.mxu0
        %3082 = vmatprep.subr.bf16.mxu0 %v2431
        %3083 = vmatpush1.bf16.msra.mxu0 %v2430
        %3084 = vmatprep.subr.bf16.mxu0 %v2423
        %3085 = vmatpush1.bf16.msra.mxu0 %v2422
        %3086 = vmatprep.subr.bf16.mxu0 %v2415
        %3087 = vmatpush1.bf16.msra.mxu0 %v2414
        %3088 = vmatprep.subr.bf16.mxu0 %v2407
        %3089 = vmatpush1.bf16.msra.mxu0 %v2406
        %3090 = vmatprep.subr.bf16.mxu0 %v2399
        %3091 = vmatpush1.bf16.msra.mxu0 %v2398
        %3092 = vmatprep.subr.bf16.mxu0 %v2391
        %3093 = vmatpush1.bf16.msra.mxu0 %v2390
        %3094 = vmatprep.subr.bf16.mxu0 %v2383
        %3095 = vmatpush1.bf16.msra.mxu0 %v2382
        %3096 = vmatprep.subr.bf16.mxu0 %v2375
        %3097 = vmatpush1.bf16.msra.mxu0 %v2374
        %3098 = vmatprep.subr.bf16.mxu0 %v2495
        %3099 = vmatpush2.bf16.msra.mxu0 %v2494
        %3100 = vmatprep.subr.bf16.mxu0 %v2487
        %3101 = vmatpush2.bf16.msra.mxu0 %v2486
        %3102 = vmatprep.subr.bf16.mxu0 %v2479
        %3103 = vmatpush2.bf16.msra.mxu0 %v2478
        %3104 = vmatprep.subr.bf16.mxu0 %v2471
        %3105 = vmatpush2.bf16.msra.mxu0 %v2470
        %3106 = vmatprep.subr.bf16.mxu0 %v2463
        %3107 = vmatpush2.bf16.msra.mxu0 %v2462
        %3108 = vmatprep.subr.bf16.mxu0 %v2455
        %3109 = vmatpush2.bf16.msra.mxu0 %v2454
        %3110 = vmatprep.subr.bf16.mxu0 %v2447
        %3111 = vmatpush2.bf16.msra.mxu0 %v2446
        %3112 = vmatprep.subr.bf16.mxu0 %v2439
        %3113 = vmatpush2.bf16.msra.mxu0 %v2438
        %3114 = vmatprep.mubr.bf16.mxu0 %v2507
        %3115 = vmatmul.mubr.bf16.gmra.mxu0 %v2506
        %v3116 = vpop.f32.mrf.mxu0
        %v3117 = vadd.f32 %v3076, %v3116
        %v3118 = vpop.f32.mrf.mxu0
        %v3119 = vadd.f32 %v3078, %v3118
        %v3120 = vpop.f32.mrf.mxu0
        %v3121 = vpop.f32.mrf.mxu0
        %3122 = vdwg.mxu0
        %3123 = vmatprep.subr.bf16.mxu0 %v1921
        %3124 = vmatpush1.bf16.msra.mxu0 %v1920
        %3125 = vmatprep.subr.bf16.mxu0 %v1913
        %3126 = vmatpush1.bf16.msra.mxu0 %v1912
        %3127 = vmatprep.subr.bf16.mxu0 %v1905
        %3128 = vmatpush1.bf16.msra.mxu0 %v1904
        %3129 = vmatprep.subr.bf16.mxu0 %v1897
        %3130 = vmatpush1.bf16.msra.mxu0 %v1896
        %3131 = vmatprep.subr.bf16.mxu0 %v1889
        %3132 = vmatpush1.bf16.msra.mxu0 %v1888
        %3133 = vmatprep.subr.bf16.mxu0 %v1881
        %3134 = vmatpush1.bf16.msra.mxu0 %v1880
        %3135 = vmatprep.subr.bf16.mxu0 %v1873
        %3136 = vmatpush1.bf16.msra.mxu0 %v1872
        %3137 = vmatprep.subr.bf16.mxu0 %v1865
        %3138 = vmatpush1.bf16.msra.mxu0 %v1864
        %3139 = vmatprep.subr.bf16.mxu0 %v1985
        %3140 = vmatpush2.bf16.msra.mxu0 %v1984
        %3141 = vmatprep.subr.bf16.mxu0 %v1977
        %3142 = vmatpush2.bf16.msra.mxu0 %v1976
        %3143 = vmatprep.subr.bf16.mxu0 %v1969
        %3144 = vmatpush2.bf16.msra.mxu0 %v1968
        %3145 = vmatprep.subr.bf16.mxu0 %v1961
        %3146 = vmatpush2.bf16.msra.mxu0 %v1960
        %3147 = vmatprep.subr.bf16.mxu0 %v1953
        %3148 = vmatpush2.bf16.msra.mxu0 %v1952
        %3149 = vmatprep.subr.bf16.mxu0 %v1945
        %3150 = vmatpush2.bf16.msra.mxu0 %v1944
        %3151 = vmatprep.subr.bf16.mxu0 %v1937
        %3152 = vmatpush2.bf16.msra.mxu0 %v1936
        %3153 = vmatprep.subr.bf16.mxu0 %v1929
        %3154 = vmatpush2.bf16.msra.mxu0 %v1928
        %3155 = vmatprep.mubr.bf16.mxu0 %v2499
        %3156 = vmatmul.mubr.bf16.gmra.mxu0 %v2498
        %v3157 = vpop.f32.mrf.mxu0
        %v3158 = vadd.f32 0.0, %v3157
        %v3159 = vpop.f32.mrf.mxu0
        %v3160 = vadd.f32 0.0, %v3159
        %v3161 = vpop.f32.mrf.mxu0
        %v3162 = vpop.f32.mrf.mxu0
        %3163 = vdwg.mxu0
        %3164 = vmatprep.subr.bf16.mxu0 %v2049
        %3165 = vmatpush1.bf16.msra.mxu0 %v2048
        %3166 = vmatprep.subr.bf16.mxu0 %v2041
        %3167 = vmatpush1.bf16.msra.mxu0 %v2040
        %3168 = vmatprep.subr.bf16.mxu0 %v2033
        %3169 = vmatpush1.bf16.msra.mxu0 %v2032
        %3170 = vmatprep.subr.bf16.mxu0 %v2025
        %3171 = vmatpush1.bf16.msra.mxu0 %v2024
        %3172 = vmatprep.subr.bf16.mxu0 %v2017
        %3173 = vmatpush1.bf16.msra.mxu0 %v2016
        %3174 = vmatprep.subr.bf16.mxu0 %v2009
        %3175 = vmatpush1.bf16.msra.mxu0 %v2008
        %3176 = vmatprep.subr.bf16.mxu0 %v2001
        %3177 = vmatpush1.bf16.msra.mxu0 %v2000
        %3178 = vmatprep.subr.bf16.mxu0 %v1993
        %3179 = vmatpush1.bf16.msra.mxu0 %v1992
        %3180 = vmatprep.subr.bf16.mxu0 %v2113
        %3181 = vmatpush2.bf16.msra.mxu0 %v2112
        %3182 = vmatprep.subr.bf16.mxu0 %v2105
        %3183 = vmatpush2.bf16.msra.mxu0 %v2104
        %3184 = vmatprep.subr.bf16.mxu0 %v2097
        %3185 = vmatpush2.bf16.msra.mxu0 %v2096
        %3186 = vmatprep.subr.bf16.mxu0 %v2089
        %3187 = vmatpush2.bf16.msra.mxu0 %v2088
        %3188 = vmatprep.subr.bf16.mxu0 %v2081
        %3189 = vmatpush2.bf16.msra.mxu0 %v2080
        %3190 = vmatprep.subr.bf16.mxu0 %v2073
        %3191 = vmatpush2.bf16.msra.mxu0 %v2072
        %3192 = vmatprep.subr.bf16.mxu0 %v2065
        %3193 = vmatpush2.bf16.msra.mxu0 %v2064
        %3194 = vmatprep.subr.bf16.mxu0 %v2057
        %3195 = vmatpush2.bf16.msra.mxu0 %v2056
        %3196 = vmatprep.mubr.bf16.mxu0 %v2501
        %3197 = vmatmul.mubr.bf16.gmra.mxu0 %v2500
        %v3198 = vpop.f32.mrf.mxu0
        %v3199 = vadd.f32 %v3158, %v3198
        %v3200 = vpop.f32.mrf.mxu0
        %v3201 = vadd.f32 %v3160, %v3200
        %v3202 = vpop.f32.mrf.mxu0
        %v3203 = vpop.f32.mrf.mxu0
        %3204 = vdwg.mxu0
        %3205 = vmatprep.subr.bf16.mxu0 %v2177
        %3206 = vmatpush1.bf16.msra.mxu0 %v2176
        %3207 = vmatprep.subr.bf16.mxu0 %v2169
        %3208 = vmatpush1.bf16.msra.mxu0 %v2168
        %3209 = vmatprep.subr.bf16.mxu0 %v2161
        %3210 = vmatpush1.bf16.msra.mxu0 %v2160
        %3211 = vmatprep.subr.bf16.mxu0 %v2153
        %3212 = vmatpush1.bf16.msra.mxu0 %v2152
        %3213 = vmatprep.subr.bf16.mxu0 %v2145
        %3214 = vmatpush1.bf16.msra.mxu0 %v2144
        %3215 = vmatprep.subr.bf16.mxu0 %v2137
        %3216 = vmatpush1.bf16.msra.mxu0 %v2136
        %3217 = vmatprep.subr.bf16.mxu0 %v2129
        %3218 = vmatpush1.bf16.msra.mxu0 %v2128
        %3219 = vmatprep.subr.bf16.mxu0 %v2121
        %3220 = vmatpush1.bf16.msra.mxu0 %v2120
        %3221 = vmatprep.subr.bf16.mxu0 %v2241
        %3222 = vmatpush2.bf16.msra.mxu0 %v2240
        %3223 = vmatprep.subr.bf16.mxu0 %v2233
        %3224 = vmatpush2.bf16.msra.mxu0 %v2232
        %3225 = vmatprep.subr.bf16.mxu0 %v2225
        %3226 = vmatpush2.bf16.msra.mxu0 %v2224
        %3227 = vmatprep.subr.bf16.mxu0 %v2217
        %3228 = vmatpush2.bf16.msra.mxu0 %v2216
        %3229 = vmatprep.subr.bf16.mxu0 %v2209
        %3230 = vmatpush2.bf16.msra.mxu0 %v2208
        %3231 = vmatprep.subr.bf16.mxu0 %v2201
        %3232 = vmatpush2.bf16.msra.mxu0 %v2200
        %3233 = vmatprep.subr.bf16.mxu0 %v2193
        %3234 = vmatpush2.bf16.msra.mxu0 %v2192
        %3235 = vmatprep.subr.bf16.mxu0 %v2185
        %3236 = vmatpush2.bf16.msra.mxu0 %v2184
        %3237 = vmatprep.mubr.bf16.mxu0 %v2503
        %3238 = vmatmul.mubr.bf16.gmra.mxu0 %v2502
        %v3239 = vpop.f32.mrf.mxu0
        %v3240 = vadd.f32 %v3199, %v3239
        %v3241 = vpop.f32.mrf.mxu0
        %v3242 = vadd.f32 %v3201, %v3241
        %v3243 = vpop.f32.mrf.mxu0
        %v3244 = vpop.f32.mrf.mxu0
        %3245 = vdwg.mxu0
        %3246 = vmatprep.subr.bf16.mxu0 %v2305
        %3247 = vmatpush1.bf16.msra.mxu0 %v2304
        %3248 = vmatprep.subr.bf16.mxu0 %v2297
        %3249 = vmatpush1.bf16.msra.mxu0 %v2296
        %3250 = vmatprep.subr.bf16.mxu0 %v2289
        %3251 = vmatpush1.bf16.msra.mxu0 %v2288
        %3252 = vmatprep.subr.bf16.mxu0 %v2281
        %3253 = vmatpush1.bf16.msra.mxu0 %v2280
        %3254 = vmatprep.subr.bf16.mxu0 %v2273
        %3255 = vmatpush1.bf16.msra.mxu0 %v2272
        %3256 = vmatprep.subr.bf16.mxu0 %v2265
        %3257 = vmatpush1.bf16.msra.mxu0 %v2264
        %3258 = vmatprep.subr.bf16.mxu0 %v2257
        %3259 = vmatpush1.bf16.msra.mxu0 %v2256
        %3260 = vmatprep.subr.bf16.mxu0 %v2249
        %3261 = vmatpush1.bf16.msra.mxu0 %v2248
        %3262 = vmatprep.subr.bf16.mxu0 %v2369
        %3263 = vmatpush2.bf16.msra.mxu0 %v2368
        %3264 = vmatprep.subr.bf16.mxu0 %v2361
        %3265 = vmatpush2.bf16.msra.mxu0 %v2360
        %3266 = vmatprep.subr.bf16.mxu0 %v2353
        %3267 = vmatpush2.bf16.msra.mxu0 %v2352
        %3268 = vmatprep.subr.bf16.mxu0 %v2345
        %3269 = vmatpush2.bf16.msra.mxu0 %v2344
        %3270 = vmatprep.subr.bf16.mxu0 %v2337
        %3271 = vmatpush2.bf16.msra.mxu0 %v2336
        %3272 = vmatprep.subr.bf16.mxu0 %v2329
        %3273 = vmatpush2.bf16.msra.mxu0 %v2328
        %3274 = vmatprep.subr.bf16.mxu0 %v2321
        %3275 = vmatpush2.bf16.msra.mxu0 %v2320
        %3276 = vmatprep.subr.bf16.mxu0 %v2313
        %3277 = vmatpush2.bf16.msra.mxu0 %v2312
        %3278 = vmatprep.mubr.bf16.mxu0 %v2505
        %3279 = vmatmul.mubr.bf16.gmra.mxu0 %v2504
        %v3280 = vpop.f32.mrf.mxu0
        %v3281 = vadd.f32 %v3240, %v3280
        %v3282 = vpop.f32.mrf.mxu0
        %v3283 = vadd.f32 %v3242, %v3282
        %v3284 = vpop.f32.mrf.mxu0
        %v3285 = vpop.f32.mrf.mxu0
        %3286 = vdwg.mxu0
        %3287 = vmatprep.subr.bf16.mxu0 %v2433
        %3288 = vmatpush1.bf16.msra.mxu0 %v2432
        %3289 = vmatprep.subr.bf16.mxu0 %v2425
        %3290 = vmatpush1.bf16.msra.mxu0 %v2424
        %3291 = vmatprep.subr.bf16.mxu0 %v2417
        %3292 = vmatpush1.bf16.msra.mxu0 %v2416
        %3293 = vmatprep.subr.bf16.mxu0 %v2409
        %3294 = vmatpush1.bf16.msra.mxu0 %v2408
        %3295 = vmatprep.subr.bf16.mxu0 %v2401
        %3296 = vmatpush1.bf16.msra.mxu0 %v2400
        %3297 = vmatprep.subr.bf16.mxu0 %v2393
        %3298 = vmatpush1.bf16.msra.mxu0 %v2392
        %3299 = vmatprep.subr.bf16.mxu0 %v2385
        %3300 = vmatpush1.bf16.msra.mxu0 %v2384
        %3301 = vmatprep.subr.bf16.mxu0 %v2377
        %3302 = vmatpush1.bf16.msra.mxu0 %v2376
        %3303 = vmatprep.subr.bf16.mxu0 %v2497
        %3304 = vmatpush2.bf16.msra.mxu0 %v2496
        %3305 = vmatprep.subr.bf16.mxu0 %v2489
        %3306 = vmatpush2.bf16.msra.mxu0 %v2488
        %3307 = vmatprep.subr.bf16.mxu0 %v2481
        %3308 = vmatpush2.bf16.msra.mxu0 %v2480
        %3309 = vmatprep.subr.bf16.mxu0 %v2473
        %3310 = vmatpush2.bf16.msra.mxu0 %v2472
        %3311 = vmatprep.subr.bf16.mxu0 %v2465
        %3312 = vmatpush2.bf16.msra.mxu0 %v2464
        %3313 = vmatprep.subr.bf16.mxu0 %v2457
        %3314 = vmatpush2.bf16.msra.mxu0 %v2456
        %3315 = vmatprep.subr.bf16.mxu0 %v2449
        %3316 = vmatpush2.bf16.msra.mxu0 %v2448
        %3317 = vmatprep.subr.bf16.mxu0 %v2441
        %3318 = vmatpush2.bf16.msra.mxu0 %v2440
        %3319 = vmatprep.mubr.bf16.mxu0 %v2507
        %3320 = vmatmul.mubr.bf16.gmra.mxu0 %v2506
        %v3321 = vpop.f32.mrf.mxu0
        %v3322 = vadd.f32 %v3281, %v3321
        %v3323 = vpop.f32.mrf.mxu0
        %v3324 = vadd.f32 %v3283, %v3323
        %v3325 = vpop.f32.mrf.mxu0
        %v3326 = vpop.f32.mrf.mxu0
        %3327 = vdwg.mxu0
        %v3328 = vld [vmem:[%s863] sm:$0xff]
        %v3330 = vlaneseq
        %v3331 = vshrl.u32 %v3330, 7
        %v3332 = vsub.s32 0, %v3331
        %v3333 = vrot.slane %v3328, %v3332
        %v3334 = vlaneseq
        %v3335 = vshrl.u32 %v3334, 7
        %v3336 = vsub.s32 1, %v3335
        %v3337 = vrot.slane %v3328, %v3336
        %v3338 = vlaneseq
        %v3339 = vshrl.u32 %v3338, 7
        %v3340 = vsub.s32 2, %v3339
        %v3341 = vrot.slane %v3328, %v3340
        %v3342 = vlaneseq
        %v3343 = vshrl.u32 %v3342, 7
        %v3344 = vsub.s32 3, %v3343
        %v3345 = vrot.slane %v3328, %v3344
        %v3346 = vlaneseq
        %v3347 = vshrl.u32 %v3346, 7
        %v3348 = vsub.s32 4, %v3347
        %v3349 = vrot.slane %v3328, %v3348
        %v3350 = vlaneseq
        %v3351 = vshrl.u32 %v3350, 7
        %v3352 = vsub.s32 5, %v3351
        %v3353 = vrot.slane %v3328, %v3352
        %v3354 = vlaneseq
        %v3355 = vshrl.u32 %v3354, 7
        %v3356 = vsub.s32 6, %v3355
        %v3357 = vrot.slane %v3328, %v3356
        %v3358 = vlaneseq
        %v3359 = vshrl.u32 %v3358, 7
        %v3360 = vsub.s32 7, %v3359
        %v3361 = vrot.slane %v3328, %v3360
        %v3370 = vmul.f32 %v2707, %v3333
        %v3371 = vmul.f32 %v2709, %v3337
        %v3372 = vmul.f32 %v2912, %v3341
        %v3373 = vmul.f32 %v2914, %v3345
        %v3374 = vmul.f32 %v3117, %v3349
        %v3375 = vmul.f32 %v3119, %v3353
        %v3376 = vmul.f32 %v3322, %v3357
        %v3377 = vmul.f32 %v3324, %v3361
        %v3378 = vld [vmem:[%s872] sm:$0xff]
        %v3380 = vlaneseq
        %v3381 = vshrl.u32 %v3380, 7
        %v3382 = vsub.s32 0, %v3381
        %v3383 = vrot.slane %v3378, %v3382
        %v3384 = vlaneseq
        %v3385 = vshrl.u32 %v3384, 7
        %v3386 = vsub.s32 1, %v3385
        %v3387 = vrot.slane %v3378, %v3386
        %v3388 = vlaneseq
        %v3389 = vshrl.u32 %v3388, 7
        %v3390 = vsub.s32 2, %v3389
        %v3391 = vrot.slane %v3378, %v3390
        %v3392 = vlaneseq
        %v3393 = vshrl.u32 %v3392, 7
        %v3394 = vsub.s32 3, %v3393
        %v3395 = vrot.slane %v3378, %v3394
        %v3396 = vlaneseq
        %v3397 = vshrl.u32 %v3396, 7
        %v3398 = vsub.s32 4, %v3397
        %v3399 = vrot.slane %v3378, %v3398
        %v3400 = vlaneseq
        %v3401 = vshrl.u32 %v3400, 7
        %v3402 = vsub.s32 5, %v3401
        %v3403 = vrot.slane %v3378, %v3402
        %v3404 = vlaneseq
        %v3405 = vshrl.u32 %v3404, 7
        %v3406 = vsub.s32 6, %v3405
        %v3407 = vrot.slane %v3378, %v3406
        %v3408 = vlaneseq
        %v3409 = vshrl.u32 %v3408, 7
        %v3410 = vsub.s32 7, %v3409
        %v3411 = vrot.slane %v3378, %v3410
        %v3420 = vadd.f32 %v3370, %v3383
        %v3421 = vadd.f32 %v3371, %v3387
        %v3422 = vadd.f32 %v3372, %v3391
        %v3423 = vadd.f32 %v3373, %v3395
        %v3424 = vadd.f32 %v3374, %v3399
        %v3425 = vadd.f32 %v3375, %v3403
        %v3426 = vadd.f32 %v3376, %v3407
        %v3427 = vadd.f32 %v3377, %v3411
        %v3428 = vmax.f32 %v3420, 0.0
        %v3429 = vmax.f32 %v3421, 0.0
        %v3430 = vmax.f32 %v3422, 0.0
        %v3431 = vmax.f32 %v3423, 0.0
        %v3432 = vmax.f32 %v3424, 0.0
        %v3433 = vmax.f32 %v3425, 0.0
        %v3434 = vmax.f32 %v3426, 0.0
        %v3435 = vmax.f32 %v3427, 0.0
        %v3436 = vld [vmem:[%s1] sm:$0xff]
        %v3437 = vpack.c.bf16 %v3436, %v3436
        %v3438 = vld [vmem:[%s881] sm:$0xf]
        %v3439 = vld [vmem:[%s881 + $0x4] sm:$0xf]
        %v3440 = vld [vmem:[%s889] sm:$0x1]
        %v3442 = vlaneseq
        %v3443 = vshrl.u32 %v3442, 7
        %v3444 = vsub.s32 0, %v3443
        %v3445 = vrot.slane %v3440, %v3444
        %v3449 = vunpack.c.l.b16 %v3438
        %v3450 = vunpack.c.l.b16 %v3439
        %v3451 = vpack.c.b16 %v3450, %v3449
        %vm3453 = vcmask 130048
        %v3455 = vsel %vm3453, %v3437, 0
        %3457 = vmatprep.subr.bf16.mxu0 0
        %3458 = vmatpush1.bf16.msra.mxu0 0
        %3459 = vmatprep.subr.bf16.mxu0 0
        %3460 = vmatpush1.bf16.msra.mxu0 0
        %3461 = vmatprep.subr.bf16.mxu0 0
        %3462 = vmatpush1.bf16.msra.mxu0 0
        %3463 = vmatprep.subr.bf16.mxu0 0
        %3464 = vmatpush1.bf16.msra.mxu0 0
        %3465 = vmatprep.subr.bf16.mxu0 0
        %3466 = vmatpush1.bf16.msra.mxu0 0
        %3467 = vmatprep.subr.bf16.mxu0 0
        %3468 = vmatpush1.bf16.msra.mxu0 0
        %3469 = vmatprep.subr.bf16.mxu0 0
        %3470 = vmatpush1.bf16.msra.mxu0 0
        %3471 = vmatprep.subr.bf16.mxu0 0
        %3472 = vmatpush1.bf16.msra.mxu0 %v3451
        %3473 = vmatprep.subr.bf16.mxu0 0
        %3474 = vmatpush2.bf16.msra.mxu0 0
        %3475 = vmatprep.subr.bf16.mxu0 0
        %3476 = vmatpush2.bf16.msra.mxu0 0
        %3477 = vmatprep.subr.bf16.mxu0 0
        %3478 = vmatpush2.bf16.msra.mxu0 0
        %3479 = vmatprep.subr.bf16.mxu0 0
        %3480 = vmatpush2.bf16.msra.mxu0 0
        %3481 = vmatprep.subr.bf16.mxu0 0
        %3482 = vmatpush2.bf16.msra.mxu0 0
        %3483 = vmatprep.subr.bf16.mxu0 0
        %3484 = vmatpush2.bf16.msra.mxu0 0
        %3485 = vmatprep.subr.bf16.mxu0 0
        %3486 = vmatpush2.bf16.msra.mxu0 0
        %3487 = vmatprep.subr.bf16.mxu0 0
        %3488 = vmatpush2.bf16.msra.mxu0 0
        %3489 = vmatprep.mubr.bf16.mxu0 0
        %3490 = vmatmul.mubr.bf16.gmra.mxu0 %v3455
        %v3491 = vpop.f32.mrf.mxu0
        %v3492 = vadd.f32 %v3445, %v3491
        %v3493 = vpop.f32.mrf.mxu0
        %v3494 = vpop.f32.mrf.mxu0
        %v3495 = vpop.f32.mrf.mxu0
        %3496 = vdwg.mxu0
        %v3497 = vmax.f32 %v3492, 0.0
        %v3498 = vpack.c.bf16 %v3497, %v3497
        %v3499 = vld [vmem:[%s898] sm:$0xff]
        %v3500 = vld [vmem:[%s898 + $0x8] sm:$0xff]
        %v3501 = vld [vmem:[%s898 + $0x10] sm:$0xff]
        %v3502 = vld [vmem:[%s898 + $0x18] sm:$0xff]
        %v3503 = vld [vmem:[%s898 + $0x20] sm:$0xff]
        %v3504 = vld [vmem:[%s898 + $0x28] sm:$0xff]
        %v3505 = vld [vmem:[%s898 + $0x30] sm:$0xff]
        %v3506 = vld [vmem:[%s898 + $0x38] sm:$0xff]
        %v3507 = vld [vmem:[%s898 + $0x40] sm:$0xff]
        %v3508 = vld [vmem:[%s898 + $0x48] sm:$0xff]
        %v3509 = vld [vmem:[%s898 + $0x50] sm:$0xff]
        %v3510 = vld [vmem:[%s898 + $0x58] sm:$0xff]
        %v3511 = vld [vmem:[%s898 + $0x60] sm:$0xff]
        %v3512 = vld [vmem:[%s898 + $0x68] sm:$0xff]
        %v3513 = vld [vmem:[%s898 + $0x70] sm:$0xff]
        %v3514 = vld [vmem:[%s898 + $0x78] sm:$0xff]
        %v3515 = vld [vmem:[%s907] sm:$0x3]
        %v3517 = vlaneseq
        %v3518 = vshrl.u32 %v3517, 7
        %v3519 = vsub.s32 0, %v3518
        %v3520 = vrot.slane %v3515, %v3519
        %v3521 = vlaneseq
        %v3522 = vshrl.u32 %v3521, 7
        %v3523 = vsub.s32 1, %v3522
        %v3524 = vrot.slane %v3515, %v3523
        %v3543 = vunpack.c.l.b16 %v3499
        %v3544 = vunpack.c.h.b16 %v3499
        %v3545 = vunpack.c.l.b16 %v3500
        %v3546 = vunpack.c.h.b16 %v3500
        %v3547 = vunpack.c.l.b16 %v3501
        %v3548 = vunpack.c.h.b16 %v3501
        %v3549 = vunpack.c.l.b16 %v3502
        %v3550 = vunpack.c.h.b16 %v3502
        %v3551 = vunpack.c.l.b16 %v3503
        %v3552 = vunpack.c.h.b16 %v3503
        %v3553 = vunpack.c.l.b16 %v3504
        %v3554 = vunpack.c.h.b16 %v3504
        %v3555 = vunpack.c.l.b16 %v3505
        %v3556 = vunpack.c.h.b16 %v3505
        %v3557 = vunpack.c.l.b16 %v3506
        %v3558 = vunpack.c.h.b16 %v3506
        %v3559 = vunpack.c.l.b16 %v3507
        %v3560 = vunpack.c.h.b16 %v3507
        %v3561 = vunpack.c.l.b16 %v3508
        %v3562 = vunpack.c.h.b16 %v3508
        %v3563 = vunpack.c.l.b16 %v3509
        %v3564 = vunpack.c.h.b16 %v3509
        %v3565 = vunpack.c.l.b16 %v3510
        %v3566 = vunpack.c.h.b16 %v3510
        %v3567 = vunpack.c.l.b16 %v3511
        %v3568 = vunpack.c.h.b16 %v3511
        %v3569 = vunpack.c.l.b16 %v3512
        %v3570 = vunpack.c.h.b16 %v3512
        %v3571 = vunpack.c.l.b16 %v3513
        %v3572 = vunpack.c.h.b16 %v3513
        %v3573 = vunpack.c.l.b16 %v3514
        %v3574 = vunpack.c.h.b16 %v3514
        %v3575 = vpack.c.b16 %v3545, %v3543
        %v3576 = vpack.c.b16 %v3546, %v3544
        %v3577 = vpack.c.b16 %v3549, %v3547
        %v3578 = vpack.c.b16 %v3550, %v3548
        %v3579 = vpack.c.b16 %v3553, %v3551
        %v3580 = vpack.c.b16 %v3554, %v3552
        %v3581 = vpack.c.b16 %v3557, %v3555
        %v3582 = vpack.c.b16 %v3558, %v3556
        %v3583 = vpack.c.b16 %v3561, %v3559
        %v3584 = vpack.c.b16 %v3562, %v3560
        %v3585 = vpack.c.b16 %v3565, %v3563
        %v3586 = vpack.c.b16 %v3566, %v3564
        %v3587 = vpack.c.b16 %v3569, %v3567
        %v3588 = vpack.c.b16 %v3570, %v3568
        %v3589 = vpack.c.b16 %v3573, %v3571
        %v3590 = vpack.c.b16 %v3574, %v3572
        %3607 = vmatprep.subr.bf16.mxu0 %v3590
        %3608 = vmatpush1.bf16.msra.mxu0 %v3589
        %3609 = vmatprep.subr.bf16.mxu0 %v3588
        %3610 = vmatpush1.bf16.msra.mxu0 %v3587
        %3611 = vmatprep.subr.bf16.mxu0 %v3586
        %3612 = vmatpush1.bf16.msra.mxu0 %v3585
        %3613 = vmatprep.subr.bf16.mxu0 %v3584
        %3614 = vmatpush1.bf16.msra.mxu0 %v3583
        %3615 = vmatprep.subr.bf16.mxu0 %v3582
        %3616 = vmatpush1.bf16.msra.mxu0 %v3581
        %3617 = vmatprep.subr.bf16.mxu0 %v3580
        %3618 = vmatpush1.bf16.msra.mxu0 %v3579
        %3619 = vmatprep.subr.bf16.mxu0 %v3578
        %3620 = vmatpush1.bf16.msra.mxu0 %v3577
        %3621 = vmatprep.subr.bf16.mxu0 %v3576
        %3622 = vmatpush1.bf16.msra.mxu0 %v3575
        %3623 = vmatprep.subr.bf16.mxu0 0
        %3624 = vmatpush2.bf16.msra.mxu0 0
        %3625 = vmatprep.subr.bf16.mxu0 0
        %3626 = vmatpush2.bf16.msra.mxu0 0
        %3627 = vmatprep.subr.bf16.mxu0 0
        %3628 = vmatpush2.bf16.msra.mxu0 0
        %3629 = vmatprep.subr.bf16.mxu0 0
        %3630 = vmatpush2.bf16.msra.mxu0 0
        %3631 = vmatprep.subr.bf16.mxu0 0
        %3632 = vmatpush2.bf16.msra.mxu0 0
        %3633 = vmatprep.subr.bf16.mxu0 0
        %3634 = vmatpush2.bf16.msra.mxu0 0
        %3635 = vmatprep.subr.bf16.mxu0 0
        %3636 = vmatpush2.bf16.msra.mxu0 0
        %3637 = vmatprep.subr.bf16.mxu0 0
        %3638 = vmatpush2.bf16.msra.mxu0 0
        %3639 = vmatprep.mubr.bf16.mxu0 0
        %3640 = vmatmul.mubr.bf16.gmra.mxu0 %v3498
        %v3641 = vpop.f32.mrf.mxu0
        %v3642 = vadd.f32 %v3520, %v3641
        %v3643 = vpop.f32.mrf.mxu0
        %v3644 = vadd.f32 %v3524, %v3643
        %v3645 = vpop.f32.mrf.mxu0
        %v3646 = vpop.f32.mrf.mxu0
        %3647 = vdwg.mxu0
        %v3648 = vmax.f32 %v3642, 0.0
        %v3649 = vmax.f32 %v3644, 0.0
        %v3650 = vld [vmem:[%s916] sm:$0xff]
        %v3651 = vld [vmem:[%s916 + $0x8] sm:$0xff]
        %v3652 = vld [vmem:[%s916 + $0x10] sm:$0xff]
        %v3653 = vld [vmem:[%s916 + $0x18] sm:$0xff]
        %v3654 = vld [vmem:[%s916 + $0x20] sm:$0xff]
        %v3655 = vld [vmem:[%s916 + $0x28] sm:$0xff]
        %v3656 = vld [vmem:[%s916 + $0x30] sm:$0xff]
        %v3657 = vld [vmem:[%s916 + $0x38] sm:$0xff]
        %v3658 = vld [vmem:[%s916 + $0x40] sm:$0xff]
        %v3659 = vld [vmem:[%s916 + $0x48] sm:$0xff]
        %v3660 = vld [vmem:[%s916 + $0x50] sm:$0xff]
        %v3661 = vld [vmem:[%s916 + $0x58] sm:$0xff]
        %v3662 = vld [vmem:[%s916 + $0x60] sm:$0xff]
        %v3663 = vld [vmem:[%s916 + $0x68] sm:$0xff]
        %v3664 = vld [vmem:[%s916 + $0x70] sm:$0xff]
        %v3665 = vld [vmem:[%s916 + $0x78] sm:$0xff]
        %v3666 = vld [vmem:[%s916 + $0x80] sm:$0xff]
        %v3667 = vld [vmem:[%s916 + $0x88] sm:$0xff]
        %v3668 = vld [vmem:[%s916 + $0x90] sm:$0xff]
        %v3669 = vld [vmem:[%s916 + $0x98] sm:$0xff]
        %v3670 = vld [vmem:[%s916 + $0xa0] sm:$0xff]
        %v3671 = vld [vmem:[%s916 + $0xa8] sm:$0xff]
        %v3672 = vld [vmem:[%s916 + $0xb0] sm:$0xff]
        %v3673 = vld [vmem:[%s916 + $0xb8] sm:$0xff]
        %v3674 = vld [vmem:[%s916 + $0xc0] sm:$0xff]
        %v3675 = vld [vmem:[%s916 + $0xc8] sm:$0xff]
        %v3676 = vld [vmem:[%s916 + $0xd0] sm:$0xff]
        %v3677 = vld [vmem:[%s916 + $0xd8] sm:$0xff]
        %v3678 = vld [vmem:[%s916 + $0xe0] sm:$0xff]
        %v3679 = vld [vmem:[%s916 + $0xe8] sm:$0xff]
        %v3680 = vld [vmem:[%s916 + $0xf0] sm:$0xff]
        %v3681 = vld [vmem:[%s916 + $0xf8] sm:$0xff]
        %v3682 = vld [vmem:[%s916 + $0x100] sm:$0xff]
        %v3683 = vld [vmem:[%s916 + $0x108] sm:$0xff]
        %v3684 = vld [vmem:[%s916 + $0x110] sm:$0xff]
        %v3685 = vld [vmem:[%s916 + $0x118] sm:$0xff]
        %v3686 = vld [vmem:[%s916 + $0x120] sm:$0xff]
        %v3687 = vld [vmem:[%s916 + $0x128] sm:$0xff]
        %v3688 = vld [vmem:[%s916 + $0x130] sm:$0xff]
        %v3689 = vld [vmem:[%s916 + $0x138] sm:$0xff]
        %v3690 = vld [vmem:[%s916 + $0x140] sm:$0xff]
        %v3691 = vld [vmem:[%s916 + $0x148] sm:$0xff]
        %v3692 = vld [vmem:[%s916 + $0x150] sm:$0xff]
        %v3693 = vld [vmem:[%s916 + $0x158] sm:$0xff]
        %v3694 = vld [vmem:[%s916 + $0x160] sm:$0xff]
        %v3695 = vld [vmem:[%s916 + $0x168] sm:$0xff]
        %v3696 = vld [vmem:[%s916 + $0x170] sm:$0xff]
        %v3697 = vld [vmem:[%s916 + $0x178] sm:$0xff]
        %v3698 = vld [vmem:[%s916 + $0x180] sm:$0xff]
        %v3699 = vld [vmem:[%s916 + $0x188] sm:$0xff]
        %v3700 = vld [vmem:[%s916 + $0x190] sm:$0xff]
        %v3701 = vld [vmem:[%s916 + $0x198] sm:$0xff]
        %v3702 = vld [vmem:[%s916 + $0x1a0] sm:$0xff]
        %v3703 = vld [vmem:[%s916 + $0x1a8] sm:$0xff]
        %v3704 = vld [vmem:[%s916 + $0x1b0] sm:$0xff]
        %v3705 = vld [vmem:[%s916 + $0x1b8] sm:$0xff]
        %v3706 = vld [vmem:[%s916 + $0x1c0] sm:$0xff]
        %v3707 = vld [vmem:[%s916 + $0x1c8] sm:$0xff]
        %v3708 = vld [vmem:[%s916 + $0x1d0] sm:$0xff]
        %v3709 = vld [vmem:[%s916 + $0x1d8] sm:$0xff]
        %v3710 = vld [vmem:[%s916 + $0x1e0] sm:$0xff]
        %v3711 = vld [vmem:[%s916 + $0x1e8] sm:$0xff]
        %v3712 = vld [vmem:[%s916 + $0x1f0] sm:$0xff]
        %v3713 = vld [vmem:[%s916 + $0x1f8] sm:$0xff]
        %v3714 = vunpack.c.l.s8.bf16 %v3650
        %v3715 = vunpack.c.l.s8.bf16 %v3651
        %v3716 = vunpack.c.h.s8.bf16 %v3650
        %v3717 = vunpack.c.h.s8.bf16 %v3651
        %v3718 = vunpack.c.l.s8.bf16 %v3652
        %v3719 = vunpack.c.l.s8.bf16 %v3653
        %v3720 = vunpack.c.h.s8.bf16 %v3652
        %v3721 = vunpack.c.h.s8.bf16 %v3653
        %v3722 = vunpack.c.l.s8.bf16 %v3654
        %v3723 = vunpack.c.l.s8.bf16 %v3655
        %v3724 = vunpack.c.h.s8.bf16 %v3654
        %v3725 = vunpack.c.h.s8.bf16 %v3655
        %v3726 = vunpack.c.l.s8.bf16 %v3656
        %v3727 = vunpack.c.l.s8.bf16 %v3657
        %v3728 = vunpack.c.h.s8.bf16 %v3656
        %v3729 = vunpack.c.h.s8.bf16 %v3657
        %v3730 = vunpack.c.l.s8.bf16 %v3658
        %v3731 = vunpack.c.l.s8.bf16 %v3659
        %v3732 = vunpack.c.h.s8.bf16 %v3658
        %v3733 = vunpack.c.h.s8.bf16 %v3659
        %v3734 = vunpack.c.l.s8.bf16 %v3660
        %v3735 = vunpack.c.l.s8.bf16 %v3661
        %v3736 = vunpack.c.h.s8.bf16 %v3660
        %v3737 = vunpack.c.h.s8.bf16 %v3661
        %v3738 = vunpack.c.l.s8.bf16 %v3662
        %v3739 = vunpack.c.l.s8.bf16 %v3663
        %v3740 = vunpack.c.h.s8.bf16 %v3662
        %v3741 = vunpack.c.h.s8.bf16 %v3663
        %v3742 = vunpack.c.l.s8.bf16 %v3664
        %v3743 = vunpack.c.l.s8.bf16 %v3665
        %v3744 = vunpack.c.h.s8.bf16 %v3664
        %v3745 = vunpack.c.h.s8.bf16 %v3665
        %v3746 = vunpack.c.l.s8.bf16 %v3666
        %v3747 = vunpack.c.l.s8.bf16 %v3667
        %v3748 = vunpack.c.h.s8.bf16 %v3666
        %v3749 = vunpack.c.h.s8.bf16 %v3667
        %v3750 = vunpack.c.l.s8.bf16 %v3668
        %v3751 = vunpack.c.l.s8.bf16 %v3669
        %v3752 = vunpack.c.h.s8.bf16 %v3668
        %v3753 = vunpack.c.h.s8.bf16 %v3669
        %v3754 = vunpack.c.l.s8.bf16 %v3670
        %v3755 = vunpack.c.l.s8.bf16 %v3671
        %v3756 = vunpack.c.h.s8.bf16 %v3670
        %v3757 = vunpack.c.h.s8.bf16 %v3671
        %v3758 = vunpack.c.l.s8.bf16 %v3672
        %v3759 = vunpack.c.l.s8.bf16 %v3673
        %v3760 = vunpack.c.h.s8.bf16 %v3672
        %v3761 = vunpack.c.h.s8.bf16 %v3673
        %v3762 = vunpack.c.l.s8.bf16 %v3674
        %v3763 = vunpack.c.l.s8.bf16 %v3675
        %v3764 = vunpack.c.h.s8.bf16 %v3674
        %v3765 = vunpack.c.h.s8.bf16 %v3675
        %v3766 = vunpack.c.l.s8.bf16 %v3676
        %v3767 = vunpack.c.l.s8.bf16 %v3677
        %v3768 = vunpack.c.h.s8.bf16 %v3676
        %v3769 = vunpack.c.h.s8.bf16 %v3677
        %v3770 = vunpack.c.l.s8.bf16 %v3678
        %v3771 = vunpack.c.l.s8.bf16 %v3679
        %v3772 = vunpack.c.h.s8.bf16 %v3678
        %v3773 = vunpack.c.h.s8.bf16 %v3679
        %v3774 = vunpack.c.l.s8.bf16 %v3680
        %v3775 = vunpack.c.l.s8.bf16 %v3681
        %v3776 = vunpack.c.h.s8.bf16 %v3680
        %v3777 = vunpack.c.h.s8.bf16 %v3681
        %v3778 = vunpack.c.l.s8.bf16 %v3682
        %v3779 = vunpack.c.l.s8.bf16 %v3683
        %v3780 = vunpack.c.h.s8.bf16 %v3682
        %v3781 = vunpack.c.h.s8.bf16 %v3683
        %v3782 = vunpack.c.l.s8.bf16 %v3684
        %v3783 = vunpack.c.l.s8.bf16 %v3685
        %v3784 = vunpack.c.h.s8.bf16 %v3684
        %v3785 = vunpack.c.h.s8.bf16 %v3685
        %v3786 = vunpack.c.l.s8.bf16 %v3686
        %v3787 = vunpack.c.l.s8.bf16 %v3687
        %v3788 = vunpack.c.h.s8.bf16 %v3686
        %v3789 = vunpack.c.h.s8.bf16 %v3687
        %v3790 = vunpack.c.l.s8.bf16 %v3688
        %v3791 = vunpack.c.l.s8.bf16 %v3689
        %v3792 = vunpack.c.h.s8.bf16 %v3688
        %v3793 = vunpack.c.h.s8.bf16 %v3689
        %v3794 = vunpack.c.l.s8.bf16 %v3690
        %v3795 = vunpack.c.l.s8.bf16 %v3691
        %v3796 = vunpack.c.h.s8.bf16 %v3690
        %v3797 = vunpack.c.h.s8.bf16 %v3691
        %v3798 = vunpack.c.l.s8.bf16 %v3692
        %v3799 = vunpack.c.l.s8.bf16 %v3693
        %v3800 = vunpack.c.h.s8.bf16 %v3692
        %v3801 = vunpack.c.h.s8.bf16 %v3693
        %v3802 = vunpack.c.l.s8.bf16 %v3694
        %v3803 = vunpack.c.l.s8.bf16 %v3695
        %v3804 = vunpack.c.h.s8.bf16 %v3694
        %v3805 = vunpack.c.h.s8.bf16 %v3695
        %v3806 = vunpack.c.l.s8.bf16 %v3696
        %v3807 = vunpack.c.l.s8.bf16 %v3697
        %v3808 = vunpack.c.h.s8.bf16 %v3696
        %v3809 = vunpack.c.h.s8.bf16 %v3697
        %v3810 = vunpack.c.l.s8.bf16 %v3698
        %v3811 = vunpack.c.l.s8.bf16 %v3699
        %v3812 = vunpack.c.h.s8.bf16 %v3698
        %v3813 = vunpack.c.h.s8.bf16 %v3699
        %v3814 = vunpack.c.l.s8.bf16 %v3700
        %v3815 = vunpack.c.l.s8.bf16 %v3701
        %v3816 = vunpack.c.h.s8.bf16 %v3700
        %v3817 = vunpack.c.h.s8.bf16 %v3701
        %v3818 = vunpack.c.l.s8.bf16 %v3702
        %v3819 = vunpack.c.l.s8.bf16 %v3703
        %v3820 = vunpack.c.h.s8.bf16 %v3702
        %v3821 = vunpack.c.h.s8.bf16 %v3703
        %v3822 = vunpack.c.l.s8.bf16 %v3704
        %v3823 = vunpack.c.l.s8.bf16 %v3705
        %v3824 = vunpack.c.h.s8.bf16 %v3704
        %v3825 = vunpack.c.h.s8.bf16 %v3705
        %v3826 = vunpack.c.l.s8.bf16 %v3706
        %v3827 = vunpack.c.l.s8.bf16 %v3707
        %v3828 = vunpack.c.h.s8.bf16 %v3706
        %v3829 = vunpack.c.h.s8.bf16 %v3707
        %v3830 = vunpack.c.l.s8.bf16 %v3708
        %v3831 = vunpack.c.l.s8.bf16 %v3709
        %v3832 = vunpack.c.h.s8.bf16 %v3708
        %v3833 = vunpack.c.h.s8.bf16 %v3709
        %v3834 = vunpack.c.l.s8.bf16 %v3710
        %v3835 = vunpack.c.l.s8.bf16 %v3711
        %v3836 = vunpack.c.h.s8.bf16 %v3710
        %v3837 = vunpack.c.h.s8.bf16 %v3711
        %v3838 = vunpack.c.l.s8.bf16 %v3712
        %v3839 = vunpack.c.l.s8.bf16 %v3713
        %v3840 = vunpack.c.h.s8.bf16 %v3712
        %v3841 = vunpack.c.h.s8.bf16 %v3713
        %v3842 = vpack.c.bf16 %v3428, %v3428
        %v3843 = vpack.c.bf16 %v3429, %v3429
        %v3844 = vpack.c.bf16 %v3430, %v3430
        %v3845 = vpack.c.bf16 %v3431, %v3431
        %v3846 = vpack.c.bf16 %v3432, %v3432
        %v3847 = vpack.c.bf16 %v3433, %v3433
        %v3848 = vpack.c.bf16 %v3434, %v3434
        %v3849 = vpack.c.bf16 %v3435, %v3435
        %3850 = vmatprep.subr.bf16.mxu0 %v3729
        %3851 = vmatpush1.bf16.msra.mxu0 %v3728
        %3852 = vmatprep.subr.bf16.mxu0 %v3727
        %3853 = vmatpush1.bf16.msra.mxu0 %v3726
        %3854 = vmatprep.subr.bf16.mxu0 %v3725
        %3855 = vmatpush1.bf16.msra.mxu0 %v3724
        %3856 = vmatprep.subr.bf16.mxu0 %v3723
        %3857 = vmatpush1.bf16.msra.mxu0 %v3722
        %3858 = vmatprep.subr.bf16.mxu0 %v3721
        %3859 = vmatpush1.bf16.msra.mxu0 %v3720
        %3860 = vmatprep.subr.bf16.mxu0 %v3719
        %3861 = vmatpush1.bf16.msra.mxu0 %v3718
        %3862 = vmatprep.subr.bf16.mxu0 %v3717
        %3863 = vmatpush1.bf16.msra.mxu0 %v3716
        %3864 = vmatprep.subr.bf16.mxu0 %v3715
        %3865 = vmatpush1.bf16.msra.mxu0 %v3714
        %3866 = vmatprep.subr.bf16.mxu0 %v3745
        %3867 = vmatpush2.bf16.msra.mxu0 %v3744
        %3868 = vmatprep.subr.bf16.mxu0 %v3743
        %3869 = vmatpush2.bf16.msra.mxu0 %v3742
        %3870 = vmatprep.subr.bf16.mxu0 %v3741
        %3871 = vmatpush2.bf16.msra.mxu0 %v3740
        %3872 = vmatprep.subr.bf16.mxu0 %v3739
        %3873 = vmatpush2.bf16.msra.mxu0 %v3738
        %3874 = vmatprep.subr.bf16.mxu0 %v3737
        %3875 = vmatpush2.bf16.msra.mxu0 %v3736
        %3876 = vmatprep.subr.bf16.mxu0 %v3735
        %3877 = vmatpush2.bf16.msra.mxu0 %v3734
        %3878 = vmatprep.subr.bf16.mxu0 %v3733
        %3879 = vmatpush2.bf16.msra.mxu0 %v3732
        %3880 = vmatprep.subr.bf16.mxu0 %v3731
        %3881 = vmatpush2.bf16.msra.mxu0 %v3730
        %3882 = vmatprep.mubr.bf16.mxu0 %v3843
        %3883 = vmatmul.mubr.bf16.gmra.mxu0 %v3842
        %v3884 = vpop.f32.mrf.mxu0
        %v3885 = vadd.f32 0.0, %v3884
        %v3886 = vpop.f32.mrf.mxu0
        %v3887 = vadd.f32 0.0, %v3886
        %v3888 = vpop.f32.mrf.mxu0
        %v3889 = vpop.f32.mrf.mxu0
        %3890 = vdwg.mxu0
        %3891 = vmatprep.subr.bf16.mxu0 %v3761
        %3892 = vmatpush1.bf16.msra.mxu0 %v3760
        %3893 = vmatprep.subr.bf16.mxu0 %v3759
        %3894 = vmatpush1.bf16.msra.mxu0 %v3758
        %3895 = vmatprep.subr.bf16.mxu0 %v3757
        %3896 = vmatpush1.bf16.msra.mxu0 %v3756
        %3897 = vmatprep.subr.bf16.mxu0 %v3755
        %3898 = vmatpush1.bf16.msra.mxu0 %v3754
        %3899 = vmatprep.subr.bf16.mxu0 %v3753
        %3900 = vmatpush1.bf16.msra.mxu0 %v3752
        %3901 = vmatprep.subr.bf16.mxu0 %v3751
        %3902 = vmatpush1.bf16.msra.mxu0 %v3750
        %3903 = vmatprep.subr.bf16.mxu0 %v3749
        %3904 = vmatpush1.bf16.msra.mxu0 %v3748
        %3905 = vmatprep.subr.bf16.mxu0 %v3747
        %3906 = vmatpush1.bf16.msra.mxu0 %v3746
        %3907 = vmatprep.subr.bf16.mxu0 %v3777
        %3908 = vmatpush2.bf16.msra.mxu0 %v3776
        %3909 = vmatprep.subr.bf16.mxu0 %v3775
        %3910 = vmatpush2.bf16.msra.mxu0 %v3774
        %3911 = vmatprep.subr.bf16.mxu0 %v3773
        %3912 = vmatpush2.bf16.msra.mxu0 %v3772
        %3913 = vmatprep.subr.bf16.mxu0 %v3771
        %3914 = vmatpush2.bf16.msra.mxu0 %v3770
        %3915 = vmatprep.subr.bf16.mxu0 %v3769
        %3916 = vmatpush2.bf16.msra.mxu0 %v3768
        %3917 = vmatprep.subr.bf16.mxu0 %v3767
        %3918 = vmatpush2.bf16.msra.mxu0 %v3766
        %3919 = vmatprep.subr.bf16.mxu0 %v3765
        %3920 = vmatpush2.bf16.msra.mxu0 %v3764
        %3921 = vmatprep.subr.bf16.mxu0 %v3763
        %3922 = vmatpush2.bf16.msra.mxu0 %v3762
        %3923 = vmatprep.mubr.bf16.mxu0 %v3845
        %3924 = vmatmul.mubr.bf16.gmra.mxu0 %v3844
        %v3925 = vpop.f32.mrf.mxu0
        %v3926 = vadd.f32 %v3885, %v3925
        %v3927 = vpop.f32.mrf.mxu0
        %v3928 = vadd.f32 %v3887, %v3927
        %v3929 = vpop.f32.mrf.mxu0
        %v3930 = vpop.f32.mrf.mxu0
        %3931 = vdwg.mxu0
        %3932 = vmatprep.subr.bf16.mxu0 %v3793
        %3933 = vmatpush1.bf16.msra.mxu0 %v3792
        %3934 = vmatprep.subr.bf16.mxu0 %v3791
        %3935 = vmatpush1.bf16.msra.mxu0 %v3790
        %3936 = vmatprep.subr.bf16.mxu0 %v3789
        %3937 = vmatpush1.bf16.msra.mxu0 %v3788
        %3938 = vmatprep.subr.bf16.mxu0 %v3787
        %3939 = vmatpush1.bf16.msra.mxu0 %v3786
        %3940 = vmatprep.subr.bf16.mxu0 %v3785
        %3941 = vmatpush1.bf16.msra.mxu0 %v3784
        %3942 = vmatprep.subr.bf16.mxu0 %v3783
        %3943 = vmatpush1.bf16.msra.mxu0 %v3782
        %3944 = vmatprep.subr.bf16.mxu0 %v3781
        %3945 = vmatpush1.bf16.msra.mxu0 %v3780
        %3946 = vmatprep.subr.bf16.mxu0 %v3779
        %3947 = vmatpush1.bf16.msra.mxu0 %v3778
        %3948 = vmatprep.subr.bf16.mxu0 %v3809
        %3949 = vmatpush2.bf16.msra.mxu0 %v3808
        %3950 = vmatprep.subr.bf16.mxu0 %v3807
        %3951 = vmatpush2.bf16.msra.mxu0 %v3806
        %3952 = vmatprep.subr.bf16.mxu0 %v3805
        %3953 = vmatpush2.bf16.msra.mxu0 %v3804
        %3954 = vmatprep.subr.bf16.mxu0 %v3803
        %3955 = vmatpush2.bf16.msra.mxu0 %v3802
        %3956 = vmatprep.subr.bf16.mxu0 %v3801
        %3957 = vmatpush2.bf16.msra.mxu0 %v3800
        %3958 = vmatprep.subr.bf16.mxu0 %v3799
        %3959 = vmatpush2.bf16.msra.mxu0 %v3798
        %3960 = vmatprep.subr.bf16.mxu0 %v3797
        %3961 = vmatpush2.bf16.msra.mxu0 %v3796
        %3962 = vmatprep.subr.bf16.mxu0 %v3795
        %3963 = vmatpush2.bf16.msra.mxu0 %v3794
        %3964 = vmatprep.mubr.bf16.mxu0 %v3847
        %3965 = vmatmul.mubr.bf16.gmra.mxu0 %v3846
        %v3966 = vpop.f32.mrf.mxu0
        %v3967 = vadd.f32 %v3926, %v3966
        %v3968 = vpop.f32.mrf.mxu0
        %v3969 = vadd.f32 %v3928, %v3968
        %v3970 = vpop.f32.mrf.mxu0
        %v3971 = vpop.f32.mrf.mxu0
        %3972 = vdwg.mxu0
        %3973 = vmatprep.subr.bf16.mxu0 %v3825
        %3974 = vmatpush1.bf16.msra.mxu0 %v3824
        %3975 = vmatprep.subr.bf16.mxu0 %v3823
        %3976 = vmatpush1.bf16.msra.mxu0 %v3822
        %3977 = vmatprep.subr.bf16.mxu0 %v3821
        %3978 = vmatpush1.bf16.msra.mxu0 %v3820
        %3979 = vmatprep.subr.bf16.mxu0 %v3819
        %3980 = vmatpush1.bf16.msra.mxu0 %v3818
        %3981 = vmatprep.subr.bf16.mxu0 %v3817
        %3982 = vmatpush1.bf16.msra.mxu0 %v3816
        %3983 = vmatprep.subr.bf16.mxu0 %v3815
        %3984 = vmatpush1.bf16.msra.mxu0 %v3814
        %3985 = vmatprep.subr.bf16.mxu0 %v3813
        %3986 = vmatpush1.bf16.msra.mxu0 %v3812
        %3987 = vmatprep.subr.bf16.mxu0 %v3811
        %3988 = vmatpush1.bf16.msra.mxu0 %v3810
        %3989 = vmatprep.subr.bf16.mxu0 %v3841
        %3990 = vmatpush2.bf16.msra.mxu0 %v3840
        %3991 = vmatprep.subr.bf16.mxu0 %v3839
        %3992 = vmatpush2.bf16.msra.mxu0 %v3838
        %3993 = vmatprep.subr.bf16.mxu0 %v3837
        %3994 = vmatpush2.bf16.msra.mxu0 %v3836
        %3995 = vmatprep.subr.bf16.mxu0 %v3835
        %3996 = vmatpush2.bf16.msra.mxu0 %v3834
        %3997 = vmatprep.subr.bf16.mxu0 %v3833
        %3998 = vmatpush2.bf16.msra.mxu0 %v3832
        %3999 = vmatprep.subr.bf16.mxu0 %v3831
        %4000 = vmatpush2.bf16.msra.mxu0 %v3830
        %4001 = vmatprep.subr.bf16.mxu0 %v3829
        %4002 = vmatpush2.bf16.msra.mxu0 %v3828
        %4003 = vmatprep.subr.bf16.mxu0 %v3827
        %4004 = vmatpush2.bf16.msra.mxu0 %v3826
        %4005 = vmatprep.mubr.bf16.mxu0 %v3849
        %4006 = vmatmul.mubr.bf16.gmra.mxu0 %v3848
        %v4007 = vpop.f32.mrf.mxu0
        %v4008 = vadd.f32 %v3967, %v4007
        %v4009 = vpop.f32.mrf.mxu0
        %v4010 = vadd.f32 %v3969, %v4009
        %v4011 = vpop.f32.mrf.mxu0
        %v4012 = vpop.f32.mrf.mxu0
        %4013 = vdwg.mxu0
        %v4014 = vld [vmem:[%s925] sm:$0x3]
        %v4016 = vlaneseq
        %v4017 = vshrl.u32 %v4016, 7
        %v4018 = vsub.s32 0, %v4017
        %v4019 = vrot.slane %v4014, %v4018
        %v4020 = vlaneseq
        %v4021 = vshrl.u32 %v4020, 7
        %v4022 = vsub.s32 1, %v4021
        %v4023 = vrot.slane %v4014, %v4022
        %v4026 = vmul.f32 %v4008, %v4019
        %v4027 = vmul.f32 %v4010, %v4023
        %v4028 = vpack.c.bf16 %v3648, %v3648
        %v4029 = vpack.c.bf16 %v3649, %v3649
        %v4030 = vld [vmem:[%s934] sm:$0xff]
        %v4031 = vld [vmem:[%s934 + $0x8] sm:$0xff]
        %v4032 = vld [vmem:[%s934 + $0x10] sm:$0xff]
        %v4033 = vld [vmem:[%s934 + $0x18] sm:$0xff]
        %v4034 = vld [vmem:[%s934 + $0x20] sm:$0xff]
        %v4035 = vld [vmem:[%s934 + $0x28] sm:$0xff]
        %v4036 = vld [vmem:[%s934 + $0x30] sm:$0xff]
        %v4037 = vld [vmem:[%s934 + $0x38] sm:$0xff]
        %v4038 = vld [vmem:[%s934 + $0x40] sm:$0xff]
        %v4039 = vld [vmem:[%s934 + $0x48] sm:$0xff]
        %v4040 = vld [vmem:[%s934 + $0x50] sm:$0xff]
        %v4041 = vld [vmem:[%s934 + $0x58] sm:$0xff]
        %v4042 = vld [vmem:[%s934 + $0x60] sm:$0xff]
        %v4043 = vld [vmem:[%s934 + $0x68] sm:$0xff]
        %v4044 = vld [vmem:[%s934 + $0x70] sm:$0xff]
        %v4045 = vld [vmem:[%s934 + $0x78] sm:$0xff]
        %v4046 = vld [vmem:[%s934 + $0x80] sm:$0xff]
        %v4047 = vld [vmem:[%s934 + $0x88] sm:$0xff]
        %v4048 = vld [vmem:[%s934 + $0x90] sm:$0xff]
        %v4049 = vld [vmem:[%s934 + $0x98] sm:$0xff]
        %v4050 = vld [vmem:[%s934 + $0xa0] sm:$0xff]
        %v4051 = vld [vmem:[%s934 + $0xa8] sm:$0xff]
        %v4052 = vld [vmem:[%s934 + $0xb0] sm:$0xff]
        %v4053 = vld [vmem:[%s934 + $0xb8] sm:$0xff]
        %v4054 = vld [vmem:[%s934 + $0xc0] sm:$0xff]
        %v4055 = vld [vmem:[%s934 + $0xc8] sm:$0xff]
        %v4056 = vld [vmem:[%s934 + $0xd0] sm:$0xff]
        %v4057 = vld [vmem:[%s934 + $0xd8] sm:$0xff]
        %v4058 = vld [vmem:[%s934 + $0xe0] sm:$0xff]
        %v4059 = vld [vmem:[%s934 + $0xe8] sm:$0xff]
        %v4060 = vld [vmem:[%s934 + $0xf0] sm:$0xff]
        %v4061 = vld [vmem:[%s934 + $0xf8] sm:$0xff]
        %v4094 = vunpack.c.l.b16 %v4030
        %v4095 = vunpack.c.h.b16 %v4030
        %v4096 = vunpack.c.l.b16 %v4031
        %v4097 = vunpack.c.h.b16 %v4031
        %v4098 = vunpack.c.l.b16 %v4032
        %v4099 = vunpack.c.h.b16 %v4032
        %v4100 = vunpack.c.l.b16 %v4033
        %v4101 = vunpack.c.h.b16 %v4033
        %v4102 = vunpack.c.l.b16 %v4034
        %v4103 = vunpack.c.h.b16 %v4034
        %v4104 = vunpack.c.l.b16 %v4035
        %v4105 = vunpack.c.h.b16 %v4035
        %v4106 = vunpack.c.l.b16 %v4036
        %v4107 = vunpack.c.h.b16 %v4036
        %v4108 = vunpack.c.l.b16 %v4037
        %v4109 = vunpack.c.h.b16 %v4037
        %v4110 = vunpack.c.l.b16 %v4038
        %v4111 = vunpack.c.h.b16 %v4038
        %v4112 = vunpack.c.l.b16 %v4039
        %v4113 = vunpack.c.h.b16 %v4039
        %v4114 = vunpack.c.l.b16 %v4040
        %v4115 = vunpack.c.h.b16 %v4040
        %v4116 = vunpack.c.l.b16 %v4041
        %v4117 = vunpack.c.h.b16 %v4041
        %v4118 = vunpack.c.l.b16 %v4042
        %v4119 = vunpack.c.h.b16 %v4042
        %v4120 = vunpack.c.l.b16 %v4043
        %v4121 = vunpack.c.h.b16 %v4043
        %v4122 = vunpack.c.l.b16 %v4044
        %v4123 = vunpack.c.h.b16 %v4044
        %v4124 = vunpack.c.l.b16 %v4045
        %v4125 = vunpack.c.h.b16 %v4045
        %v4126 = vunpack.c.l.b16 %v4046
        %v4127 = vunpack.c.h.b16 %v4046
        %v4128 = vunpack.c.l.b16 %v4047
        %v4129 = vunpack.c.h.b16 %v4047
        %v4130 = vunpack.c.l.b16 %v4048
        %v4131 = vunpack.c.h.b16 %v4048
        %v4132 = vunpack.c.l.b16 %v4049
        %v4133 = vunpack.c.h.b16 %v4049
        %v4134 = vunpack.c.l.b16 %v4050
        %v4135 = vunpack.c.h.b16 %v4050
        %v4136 = vunpack.c.l.b16 %v4051
        %v4137 = vunpack.c.h.b16 %v4051
        %v4138 = vunpack.c.l.b16 %v4052
        %v4139 = vunpack.c.h.b16 %v4052
        %v4140 = vunpack.c.l.b16 %v4053
        %v4141 = vunpack.c.h.b16 %v4053
        %v4142 = vunpack.c.l.b16 %v4054
        %v4143 = vunpack.c.h.b16 %v4054
        %v4144 = vunpack.c.l.b16 %v4055
        %v4145 = vunpack.c.h.b16 %v4055
        %v4146 = vunpack.c.l.b16 %v4056
        %v4147 = vunpack.c.h.b16 %v4056
        %v4148 = vunpack.c.l.b16 %v4057
        %v4149 = vunpack.c.h.b16 %v4057
        %v4150 = vunpack.c.l.b16 %v4058
        %v4151 = vunpack.c.h.b16 %v4058
        %v4152 = vunpack.c.l.b16 %v4059
        %v4153 = vunpack.c.h.b16 %v4059
        %v4154 = vunpack.c.l.b16 %v4060
        %v4155 = vunpack.c.h.b16 %v4060
        %v4156 = vunpack.c.l.b16 %v4061
        %v4157 = vunpack.c.h.b16 %v4061
        %v4158 = vpack.c.b16 %v4096, %v4094
        %v4159 = vpack.c.b16 %v4097, %v4095
        %v4160 = vpack.c.b16 %v4100, %v4098
        %v4161 = vpack.c.b16 %v4101, %v4099
        %v4162 = vpack.c.b16 %v4104, %v4102
        %v4163 = vpack.c.b16 %v4105, %v4103
        %v4164 = vpack.c.b16 %v4108, %v4106
        %v4165 = vpack.c.b16 %v4109, %v4107
        %v4166 = vpack.c.b16 %v4112, %v4110
        %v4167 = vpack.c.b16 %v4113, %v4111
        %v4168 = vpack.c.b16 %v4116, %v4114
        %v4169 = vpack.c.b16 %v4117, %v4115
        %v4170 = vpack.c.b16 %v4120, %v4118
        %v4171 = vpack.c.b16 %v4121, %v4119
        %v4172 = vpack.c.b16 %v4124, %v4122
        %v4173 = vpack.c.b16 %v4125, %v4123
        %v4174 = vpack.c.b16 %v4128, %v4126
        %v4175 = vpack.c.b16 %v4129, %v4127
        %v4176 = vpack.c.b16 %v4132, %v4130
        %v4177 = vpack.c.b16 %v4133, %v4131
        %v4178 = vpack.c.b16 %v4136, %v4134
        %v4179 = vpack.c.b16 %v4137, %v4135
        %v4180 = vpack.c.b16 %v4140, %v4138
        %v4181 = vpack.c.b16 %v4141, %v4139
        %v4182 = vpack.c.b16 %v4144, %v4142
        %v4183 = vpack.c.b16 %v4145, %v4143
        %v4184 = vpack.c.b16 %v4148, %v4146
        %v4185 = vpack.c.b16 %v4149, %v4147
        %v4186 = vpack.c.b16 %v4152, %v4150
        %v4187 = vpack.c.b16 %v4153, %v4151
        %v4188 = vpack.c.b16 %v4156, %v4154
        %v4189 = vpack.c.b16 %v4157, %v4155
        %4222 = vmatprep.subr.bf16.mxu0 %v4173
        %4223 = vmatpush1.bf16.msra.mxu0 %v4172
        %4224 = vmatprep.subr.bf16.mxu0 %v4171
        %4225 = vmatpush1.bf16.msra.mxu0 %v4170
        %4226 = vmatprep.subr.bf16.mxu0 %v4169
        %4227 = vmatpush1.bf16.msra.mxu0 %v4168
        %4228 = vmatprep.subr.bf16.mxu0 %v4167
        %4229 = vmatpush1.bf16.msra.mxu0 %v4166
        %4230 = vmatprep.subr.bf16.mxu0 %v4165
        %4231 = vmatpush1.bf16.msra.mxu0 %v4164
        %4232 = vmatprep.subr.bf16.mxu0 %v4163
        %4233 = vmatpush1.bf16.msra.mxu0 %v4162
        %4234 = vmatprep.subr.bf16.mxu0 %v4161
        %4235 = vmatpush1.bf16.msra.mxu0 %v4160
        %4236 = vmatprep.subr.bf16.mxu0 %v4159
        %4237 = vmatpush1.bf16.msra.mxu0 %v4158
        %4238 = vmatprep.subr.bf16.mxu0 %v4189
        %4239 = vmatpush2.bf16.msra.mxu0 %v4188
        %4240 = vmatprep.subr.bf16.mxu0 %v4187
        %4241 = vmatpush2.bf16.msra.mxu0 %v4186
        %4242 = vmatprep.subr.bf16.mxu0 %v4185
        %4243 = vmatpush2.bf16.msra.mxu0 %v4184
        %4244 = vmatprep.subr.bf16.mxu0 %v4183
        %4245 = vmatpush2.bf16.msra.mxu0 %v4182
        %4246 = vmatprep.subr.bf16.mxu0 %v4181
        %4247 = vmatpush2.bf16.msra.mxu0 %v4180
        %4248 = vmatprep.subr.bf16.mxu0 %v4179
        %4249 = vmatpush2.bf16.msra.mxu0 %v4178
        %4250 = vmatprep.subr.bf16.mxu0 %v4177
        %4251 = vmatpush2.bf16.msra.mxu0 %v4176
        %4252 = vmatprep.subr.bf16.mxu0 %v4175
        %4253 = vmatpush2.bf16.msra.mxu0 %v4174
        %4254 = vmatprep.mubr.bf16.mxu0 %v4029
        %4255 = vmatmul.mubr.bf16.gmra.mxu0 %v4028
        %v4256 = vpop.f32.mrf.mxu0
        %v4257 = vadd.f32 0.0, %v4256
        %v4258 = vpop.f32.mrf.mxu0
        %v4259 = vadd.f32 0.0, %v4258
        %v4260 = vpop.f32.mrf.mxu0
        %v4261 = vpop.f32.mrf.mxu0
        %4262 = vdwg.mxu0
        %v4263 = vadd.f32 %v4026, %v4257
        %v4264 = vadd.f32 %v4027, %v4259
        %v4265 = vld [vmem:[%s943] sm:$0x3]
        %v4267 = vlaneseq
        %v4268 = vshrl.u32 %v4267, 7
        %v4269 = vsub.s32 0, %v4268
        %v4270 = vrot.slane %v4265, %v4269
        %v4271 = vlaneseq
        %v4272 = vshrl.u32 %v4271, 7
        %v4273 = vsub.s32 1, %v4272
        %v4274 = vrot.slane %v4265, %v4273
        %v4277 = vadd.f32 %v4263, %v4270
        %v4278 = vadd.f32 %v4264, %v4274
        %v4279 = vmax.f32 %v4277, 0.0
        %v4280 = vmax.f32 %v4278, 0.0
        %v4281 = vpack.c.bf16 %v4279, %v4279
        %v4282 = vpack.c.bf16 %v4280, %v4280
        %v4283 = vld [vmem:[%s952] sm:$0xf]
        %v4284 = vld [vmem:[%s952 + $0x4] sm:$0xf]
        %v4285 = vld [vmem:[%s952 + $0x8] sm:$0xf]
        %v4286 = vld [vmem:[%s952 + $0xc] sm:$0xf]
        %v4287 = vld [vmem:[%s952 + $0x10] sm:$0xf]
        %v4288 = vld [vmem:[%s952 + $0x14] sm:$0xf]
        %v4289 = vld [vmem:[%s952 + $0x18] sm:$0xf]
        %v4290 = vld [vmem:[%s952 + $0x1c] sm:$0xf]
        %v4291 = vld [vmem:[%s952 + $0x20] sm:$0xf]
        %v4292 = vld [vmem:[%s952 + $0x24] sm:$0xf]
        %v4293 = vld [vmem:[%s952 + $0x28] sm:$0xf]
        %v4294 = vld [vmem:[%s952 + $0x2c] sm:$0xf]
        %v4295 = vld [vmem:[%s952 + $0x30] sm:$0xf]
        %v4296 = vld [vmem:[%s952 + $0x34] sm:$0xf]
        %v4297 = vld [vmem:[%s952 + $0x38] sm:$0xf]
        %v4298 = vld [vmem:[%s952 + $0x3c] sm:$0xf]
        %v4299 = vld [vmem:[%s952 + $0x40] sm:$0xf]
        %v4300 = vld [vmem:[%s952 + $0x44] sm:$0xf]
        %v4301 = vld [vmem:[%s952 + $0x48] sm:$0xf]
        %v4302 = vld [vmem:[%s952 + $0x4c] sm:$0xf]
        %v4303 = vld [vmem:[%s952 + $0x50] sm:$0xf]
        %v4304 = vld [vmem:[%s952 + $0x54] sm:$0xf]
        %v4305 = vld [vmem:[%s952 + $0x58] sm:$0xf]
        %v4306 = vld [vmem:[%s952 + $0x5c] sm:$0xf]
        %v4307 = vld [vmem:[%s952 + $0x60] sm:$0xf]
        %v4308 = vld [vmem:[%s952 + $0x64] sm:$0xf]
        %v4309 = vld [vmem:[%s952 + $0x68] sm:$0xf]
        %v4310 = vld [vmem:[%s952 + $0x6c] sm:$0xf]
        %v4311 = vld [vmem:[%s952 + $0x70] sm:$0xf]
        %v4312 = vld [vmem:[%s952 + $0x74] sm:$0xf]
        %v4313 = vld [vmem:[%s952 + $0x78] sm:$0xf]
        %v4314 = vld [vmem:[%s952 + $0x7c] sm:$0xf]
        %v4315 = vld [vmem:[%s960] sm:$0x1]
        %v4317 = vlaneseq
        %v4318 = vshrl.u32 %v4317, 7
        %v4319 = vsub.s32 0, %v4318
        %v4320 = vrot.slane %v4315, %v4319
        %v4354 = vunpack.c.l.b16 %v4283
        %v4355 = vunpack.c.l.b16 %v4284
        %v4356 = vunpack.c.l.b16 %v4285
        %v4357 = vunpack.c.l.b16 %v4286
        %v4358 = vunpack.c.l.b16 %v4287
        %v4359 = vunpack.c.l.b16 %v4288
        %v4360 = vunpack.c.l.b16 %v4289
        %v4361 = vunpack.c.l.b16 %v4290
        %v4362 = vunpack.c.l.b16 %v4291
        %v4363 = vunpack.c.l.b16 %v4292
        %v4364 = vunpack.c.l.b16 %v4293
        %v4365 = vunpack.c.l.b16 %v4294
        %v4366 = vunpack.c.l.b16 %v4295
        %v4367 = vunpack.c.l.b16 %v4296
        %v4368 = vunpack.c.l.b16 %v4297
        %v4369 = vunpack.c.l.b16 %v4298
        %v4370 = vunpack.c.l.b16 %v4299
        %v4371 = vunpack.c.l.b16 %v4300
        %v4372 = vunpack.c.l.b16 %v4301
        %v4373 = vunpack.c.l.b16 %v4302
        %v4374 = vunpack.c.l.b16 %v4303
        %v4375 = vunpack.c.l.b16 %v4304
        %v4376 = vunpack.c.l.b16 %v4305
        %v4377 = vunpack.c.l.b16 %v4306
        %v4378 = vunpack.c.l.b16 %v4307
        %v4379 = vunpack.c.l.b16 %v4308
        %v4380 = vunpack.c.l.b16 %v4309
        %v4381 = vunpack.c.l.b16 %v4310
        %v4382 = vunpack.c.l.b16 %v4311
        %v4383 = vunpack.c.l.b16 %v4312
        %v4384 = vunpack.c.l.b16 %v4313
        %v4385 = vunpack.c.l.b16 %v4314
        %v4386 = vpack.c.b16 %v4355, %v4354
        %v4387 = vpack.c.b16 %v4357, %v4356
        %v4388 = vpack.c.b16 %v4359, %v4358
        %v4389 = vpack.c.b16 %v4361, %v4360
        %v4390 = vpack.c.b16 %v4363, %v4362
        %v4391 = vpack.c.b16 %v4365, %v4364
        %v4392 = vpack.c.b16 %v4367, %v4366
        %v4393 = vpack.c.b16 %v4369, %v4368
        %v4394 = vpack.c.b16 %v4371, %v4370
        %v4395 = vpack.c.b16 %v4373, %v4372
        %v4396 = vpack.c.b16 %v4375, %v4374
        %v4397 = vpack.c.b16 %v4377, %v4376
        %v4398 = vpack.c.b16 %v4379, %v4378
        %v4399 = vpack.c.b16 %v4381, %v4380
        %v4400 = vpack.c.b16 %v4383, %v4382
        %v4401 = vpack.c.b16 %v4385, %v4384
        %4418 = vmatprep.subr.bf16.mxu0 0
        %4419 = vmatpush1.bf16.msra.mxu0 %v4393
        %4420 = vmatprep.subr.bf16.mxu0 0
        %4421 = vmatpush1.bf16.msra.mxu0 %v4392
        %4422 = vmatprep.subr.bf16.mxu0 0
        %4423 = vmatpush1.bf16.msra.mxu0 %v4391
        %4424 = vmatprep.subr.bf16.mxu0 0
        %4425 = vmatpush1.bf16.msra.mxu0 %v4390
        %4426 = vmatprep.subr.bf16.mxu0 0
        %4427 = vmatpush1.bf16.msra.mxu0 %v4389
        %4428 = vmatprep.subr.bf16.mxu0 0
        %4429 = vmatpush1.bf16.msra.mxu0 %v4388
        %4430 = vmatprep.subr.bf16.mxu0 0
        %4431 = vmatpush1.bf16.msra.mxu0 %v4387
        %4432 = vmatprep.subr.bf16.mxu0 0
        %4433 = vmatpush1.bf16.msra.mxu0 %v4386
        %4434 = vmatprep.subr.bf16.mxu0 0
        %4435 = vmatpush2.bf16.msra.mxu0 %v4401
        %4436 = vmatprep.subr.bf16.mxu0 0
        %4437 = vmatpush2.bf16.msra.mxu0 %v4400
        %4438 = vmatprep.subr.bf16.mxu0 0
        %4439 = vmatpush2.bf16.msra.mxu0 %v4399
        %4440 = vmatprep.subr.bf16.mxu0 0
        %4441 = vmatpush2.bf16.msra.mxu0 %v4398
        %4442 = vmatprep.subr.bf16.mxu0 0
        %4443 = vmatpush2.bf16.msra.mxu0 %v4397
        %4444 = vmatprep.subr.bf16.mxu0 0
        %4445 = vmatpush2.bf16.msra.mxu0 %v4396
        %4446 = vmatprep.subr.bf16.mxu0 0
        %4447 = vmatpush2.bf16.msra.mxu0 %v4395
        %4448 = vmatprep.subr.bf16.mxu0 0
        %4449 = vmatpush2.bf16.msra.mxu0 %v4394
        %4450 = vmatprep.mubr.bf16.mxu0 %v4282
        %4451 = vmatmul.mubr.bf16.gmra.mxu0 %v4281
        %v4452 = vpop.f32.mrf.mxu0
        %v4453 = vadd.f32 %v4320, %v4452
        %v4454 = vpop.f32.mrf.mxu0
        %v4455 = vpop.f32.mrf.mxu0
        %v4456 = vpop.f32.mrf.mxu0
        %4457 = vdwg.mxu0
        %4458 = vst [vmem:[%s1081] sm:$0xff] %v4453
        %p4459 = scmp.lt.s32.totalorder %s52, 1
        %s4460 = scalar_select %p4459, %s52, 1
        %s4461 = smul.addr %s4460, 8
        %s4462 = scalar_lea.vmem %s17, %s4461
        // Predicated region
        $region149: #{forward.1} parent=87 // pred_check
          %p4463 = pneg %p502
        $region150: #{forward.1} parent=87 // pred_check_branch
          %4465 = sbr.rel (%p4463) target = $region152
        $region151: #{forward.1} parent=87 // pred_region
          _
        $region152: #{forward.1} parent=87 // pred_fallthru
          _
      $region88: #{forward.1} parent=5 // pred_fallthru
        _
      %p4466 = scmp.le.s32.totalorder 2, %s47
      // Predicated region
      $region153: #{forward.1} parent=5 // pred_check
        %p4467 = pneg %p4466
      $region154: #{forward.1} parent=5 // pred_check_branch
        %4469 = sbr.rel (%p4467) target = $region156
      $region155: #{forward.1} parent=5 // pred_region
        %s4470 = ssub.s32 %s47, 2
        // Predicated region
        $region157: #{forward.1} parent=155 // pred_check
          %p4471 = pneg %p508
        $region158: #{forward.1} parent=155 // pred_check_branch
          %4473 = sbr.rel (%p4471) target = $region160
        $region159: #{forward.1} parent=155 // pred_region
          %p4474 = scmp.lt.s32.totalorder %s53, 1
          %s4475 = scalar_select %p4474, %s53, 1
          %s4476 = smul.addr %s4475, 8
          %s4477 = scalar_lea.vmem %s17, %s4476
        $region160: #{forward.1} parent=155 // pred_fallthru
          _
      $region156: #{forward.1} parent=5 // pred_fallthru
        _
    $region6: #{forward.1} parent=1 // loop_footer
      %s51 = sadd.s32 1, %s47
    $region7: #{forward.1} parent=1 // loop_footer_branch
      %46 = sbr.rel target = $region3
    $region8: #{forward.1} parent=1 // loop_exit
      _
    %4478 = vsyncpa [#allocation3], 1
    %s4479 = scalar_lea.sflag [#allocation3], 1
    %4480 = vsyncpa %s4479, 1
    %4481 = vsyncpa [#allocation5], 1
    %s4482 = scalar_lea.sflag [#allocation5], 1
    %4483 = vsyncpa %s4482, 1
    %4484 = vsyncpa [#allocation8], 1
    %s4485 = scalar_lea.sflag [#allocation8], 1
    %4486 = vsyncpa %s4485, 1
    %4487 = vsyncpa [#allocation11], 1
    %s4488 = scalar_lea.sflag [#allocation11], 1
    %4489 = vsyncpa %s4488, 1
    %4490 = vsyncpa [#allocation14], 1
    %s4491 = scalar_lea.sflag [#allocation14], 1
    %4492 = vsyncpa %s4491, 1
    %4493 = vsyncpa [#allocation17], 1
    %s4494 = scalar_lea.sflag [#allocation17], 1
    %4495 = vsyncpa %s4494, 1
    %4496 = vsyncpa [#allocation20], 1
    %s4497 = scalar_lea.sflag [#allocation20], 1
    %4498 = vsyncpa %s4497, 1
    %4499 = vsyncpa [#allocation23], 1
    %s4500 = scalar_lea.sflag [#allocation23], 1
    %4501 = vsyncpa %s4500, 1

</llo_original>
